<compile_context>
chip_gen: v5e
topology: v5e:2x2
jax: 0.10.0
libtpu: 0.0.40
codegen_flags: <defaults>
</compile_context>

<pallas_src>
import jax
import jax.numpy as jnp
import numpy as np
from jax.experimental import pallas as pl
from jax.experimental.pallas import tpu as pltpu


# ----------------------------- Pallas kernel --------------------------------

def _elu(x):
    # ELU(alpha=1): x if x > 0 else exp(x) - 1   (clamped exp arg for safety)
    return jnp.where(x > 0, x, jnp.exp(jnp.minimum(x, 0.0)) - 1.0)


def coordconv_kernel(
    # edge-tiled inputs
    offsets_ref, src_idx_ref, dst_idx_ref, dst_idx_row_ref,
    # resident node features
    feat_ref, xdst_ref,
    # resident weights
    wk1_ref, bk1_ref, wk2_ref, bk2_ref,
    ws1_ref, bs1_ref, ws2_ref, bs2_ref,
    wm1a_ref, wm1b_ref, bm1_ref,
    wm2_ref, bm2_ref, wm3_ref, bm3_ref, wm4_ref, bm4_ref,
    # output
    out_ref,
    # scratch (persists across the whole grid)
    dst_max_ref,    # [1, ND]  running per-dst max of the edge score
    dst_den_ref,    # [ND, 1]  running per-dst softmax denominator
    acc_ref,        # [ND, F]  running per-dst un-normalized message sum
):
    phase = pl.program_id(0)          # 0: segment max pass, 1: accumulate + finalize
    t = pl.program_id(1)              # edge-tile index
    nt = pl.num_programs(1)

    offsets = offsets_ref[...]        # [E_T, C]
    dst_idx = dst_idx_ref[...]        # [E_T, 1] int32 (-1 => padded edge)
    e_t = offsets.shape[0]
    n_dst = acc_ref.shape[0]

    # per-edge raw score: 1 / (||offsets||_1 + 0.001)          (edges on sublanes)
    score = 1.0 / (jnp.sum(jnp.abs(offsets), axis=1, keepdims=True) + 0.001)   # [E_T, 1]
    # destination one-hot, built in-registers from the index vector (no O(E*N) HBM traffic)
    dst_hit = jax.lax.broadcasted_iota(jnp.int32, (e_t, n_dst), 1) == dst_idx  # [E_T, ND] bool

    @pl.when(jnp.logical_and(phase == 0, t == 0))
    def _init():
        dst_max_ref[...] = jnp.full_like(dst_max_ref, -1e30)
        dst_den_ref[...] = jnp.zeros_like(dst_den_ref)
        acc_ref[...] = jnp.zeros_like(acc_ref)

    @pl.when(phase == 0)
    def _segment_max():
        masked = jnp.where(dst_hit, score, -1e30)                         # [E_T, ND]
        tile_max = jnp.max(masked, axis=0, keepdims=True)                 # [1, ND]
        dst_max_ref[...] = jnp.maximum(dst_max_ref[...], tile_max)

    @pl.when(phase == 1)
    def _accumulate():
        valid = (dst_idx >= 0).astype(jnp.float32)                        # [E_T, 1]
        dst_oh = dst_hit.astype(jnp.float32)                              # [E_T, ND]

        # gather the per-dst max back onto edges, exponentiate (exact: diff <= 0 for real edges)
        edge_max = jnp.sum(dst_oh * dst_max_ref[...], axis=1, keepdims=True)   # [E_T, 1]
        exp_s = jnp.exp(jnp.minimum(score - edge_max, 0.0)) * valid            # [E_T, 1]

        # transposed one-hot (dst on sublanes) so denominator + scatter are plain MXU matmuls
        dst_oh_t = (jax.lax.broadcasted_iota(jnp.int32, (n_dst, e_t), 0)
                    == dst_idx_row_ref[...]).astype(jnp.float32)          # [ND, E_T]
        dst_den_ref[...] += jnp.dot(dst_oh_t, exp_s,
                                    preferred_element_type=jnp.float32)   # [ND, 1]

        # offset-kernel MLP -> per-edge kernel weights
        k_h = _elu(jnp.dot(offsets, wk1_ref[...],
                           preferred_element_type=jnp.float32) + bk1_ref[...])
        kernel_w = jnp.dot(k_h, wk2_ref[...],
                           preferred_element_type=jnp.float32) + bk2_ref[...]  # [E_T, F]

        # gather source-node features via in-register one-hot on the MXU
        src_oh = (jax.lax.broadcasted_iota(jnp.int32, (e_t, feat_ref.shape[0]), 1)
                  == src_idx_ref[...]).astype(jnp.float32)                # [E_T, NS]
        x_src = jnp.dot(src_oh, feat_ref[...],
                        preferred_element_type=jnp.float32)               # [E_T, F]

        msg = (exp_s * kernel_w) * x_src                                  # [E_T, F]
        # scatter-add messages to destination rows (contraction over the edge axis)
        acc_ref[...] += jnp.dot(dst_oh_t, msg,
                                preferred_element_type=jnp.float32)       # [ND, F]

    @pl.when(jnp.logical_and(phase == 1, t == nt - 1))
    def _finalize():
        den = dst_den_ref[...]                                            # [ND, 1]
        # deferred softmax normalization; dst nodes with no edges aggregate to 0
        agg = acc_ref[...] / jnp.where(den > 0.0, den, 1.0)               # [ND, F]

        x_dst = xdst_ref[...]
        s_h = _elu(jnp.dot(x_dst, ws1_ref[...],
                           preferred_element_type=jnp.float32) + bs1_ref[...])
        h_self = jnp.dot(s_h, ws2_ref[...],
                         preferred_element_type=jnp.float32) + bs2_ref[...]

        # final MLP on concat(agg, h_self); the concat is folded into split first-layer weights
        h = _elu(jnp.dot(agg, wm1a_ref[...], preferred_element_type=jnp.float32)
                 + jnp.dot(h_self, wm1b_ref[...], preferred_element_type=jnp.float32)
                 + bm1_ref[...])
        h = _elu(jnp.dot(h, wm2_ref[...], preferred_element_type=jnp.float32) + bm2_ref[...])
        h = _elu(jnp.dot(h, wm3_ref[...], preferred_element_type=jnp.float32) + bm3_ref[...])
        h = jnp.dot(h, wm4_ref[...], preferred_element_type=jnp.float32) + bm4_ref[...]
        out_ref[...] = h.astype(out_ref.dtype)


# ----------------------------- Wrapper ---------------------------------------

def _round_up(x, m):
    return ((x + m - 1) // m) * m


def coord_conv(feat, offsets, src_idx, dst_idx, num_dst, params, *, edge_tile=128):
    """Pallas forward. params is the flat tuple produced by make_params()."""
    n_src, in_feat = feat.shape
    n_edges, coord_dim = offsets.shape
    (wk1, bk1, wk2, bk2, ws1, bs1, ws2, bs2,
     wm1a, wm1b, bm1, wm2, bm2, wm3, bm3, wm4, bm4) = params
    h_feat = wk1.shape[1]
    out_feat = wm4.shape[1]
    f32 = jnp.float32

    # lane-dense padding of all feature dims; sublane/row padding of nodes and edges
    F = _round_up(in_feat, 128)
    H = _round_up(h_feat, 128)
    O = _round_up(out_feat, 128)
    NS = _round_up(n_src, 128)
    ND = _round_up(num_dst, 128)
    E = _round_up(n_edges, edge_tile)
    nt = E // edge_tile

    def pad2(a, rows, cols):
        a = a.astype(f32)
        return jnp.pad(a, ((0, rows - a.shape[0]), (0, cols - a.shape[1])))

    feat_p = pad2(feat, NS, F)
    xdst_p = pad2(feat[:num_dst], ND, F)
    off_p = pad2(offsets, E, coord_dim)
    src_col = jnp.pad(src_idx.astype(jnp.int32), (0, E - n_edges),
                      constant_values=0).reshape(E, 1)
    dst_col = jnp.pad(dst_idx.astype(jnp.int32), (0, E - n_edges),
                      constant_values=-1).reshape(E, 1)
    dst_row = jnp.pad(dst_idx.astype(jnp.int32), (0, E - n_edges),
                      constant_values=-1).reshape(1, E)

    weights = (
        pad2(wk1, coord_dim, H), pad2(bk1, 1, H),
        pad2(wk2, H, F),         pad2(bk2, 1, F),
        pad2(ws1, F, H),         pad2(bs1, 1, H),
        pad2(ws2, H, H),         pad2(bs2, 1, H),
        pad2(wm1a, F, H), pad2(wm1b, H, H), pad2(bm1, 1, H),
        pad2(wm2, H, H), pad2(bm2, 1, H),
        pad2(wm3, H, H), pad2(bm3, 1, H),
        pad2(wm4, H, O), pad2(bm4, 1, O),
    )

    inputs = (off_p, src_col, dst_col, dst_row, feat_p, xdst_p) + weights

    in_specs = [
        pl.BlockSpec((edge_tile, coord_dim), lambda p, t: (t, 0)),   # offsets (edge tiles)
        pl.BlockSpec((edge_tile, 1), lambda p, t: (t, 0)),           # src_idx (column)
        pl.BlockSpec((edge_tile, 1), lambda p, t: (t, 0)),           # dst_idx (column)
        pl.BlockSpec((1, edge_tile), lambda p, t: (0, t)),           # dst_idx (row)
        pl.BlockSpec(feat_p.shape, lambda p, t: (0, 0)),             # feat   (resident)
        pl.BlockSpec(xdst_p.shape, lambda p, t: (0, 0)),             # x_dst  (resident)
    ] + [pl.BlockSpec(w.shape, lambda p, t: (0, 0)) for w in weights]  # weights (resident)

    grid_spec = pltpu.PrefetchScalarGridSpec(
        num_scalar_prefetch=0,
        grid=(2, nt),                                   # (phase, edge tile) -- both sequential
        in_specs=in_specs,
        out_specs=pl.BlockSpec((ND, O), lambda p, t: (0, 0)),
        scratch_shapes=[
            pltpu.VMEM((1, ND), f32),    # per-dst score max
            pltpu.VMEM((ND, 1), f32),    # per-dst softmax denominator
            pltpu.VMEM((ND, F), f32),    # per-dst message accumulator
        ],
    )

    out = pl.pallas_call(
        coordconv_kernel,
        out_shape=jax.ShapeDtypeStruct((ND, O), f32),
        grid_spec=grid_spec,
        compiler_params=pltpu.CompilerParams(
            dimension_semantics=("arbitrary", "arbitrary"),
            vmem_limit_bytes=32 * 1024 * 1024,
        ),
    )(*inputs)
    return out[:num_dst, :out_feat]


# ----------------------------- Params (deterministic) ------------------------

def _linear_init(key, fan_in, fan_out):
    # PyTorch nn.Linear default: U(-1/sqrt(fan_in), 1/sqrt(fan_in)); stored as [in, out].
    kw, kb = jax.random.split(key)
    bound = 1.0 / np.sqrt(fan_in)
    w = jax.random.uniform(kw, (fan_in, fan_out), jnp.float32, -bound, bound)
    b = jax.random.uniform(kb, (1, fan_out), jnp.float32, -bound, bound)
    return w, b


def make_params(key, in_feat, h_feat, out_feat, coord_dim):
    keys = jax.random.split(key, 8)
    wk1, bk1 = _linear_init(keys[0], coord_dim, h_feat)
    wk2, bk2 = _linear_init(keys[1], h_feat, in_feat)
    ws1, bs1 = _linear_init(keys[2], in_feat, h_feat)
    ws2, bs2 = _linear_init(keys[3], h_feat, h_feat)
    wm1, bm1 = _linear_init(keys[4], in_feat + h_feat, h_feat)
    wm2, bm2 = _linear_init(keys[5], h_feat, h_feat)
    wm3, bm3 = _linear_init(keys[6], h_feat, h_feat)
    wm4, bm4 = _linear_init(keys[7], h_feat, out_feat)
    wm1a, wm1b = wm1[:in_feat], wm1[in_feat:]
    return (wk1, bk1, wk2, bk2, ws1, bs1, ws2, bs2,
            wm1a, wm1b, bm1, wm2, bm2, wm3, bm3, wm4, bm4)


# ----------------------------- Pure-JAX reference ----------------------------

def ref_forward(feat, offsets, src_idx, dst_idx, num_dst, params):
    (wk1, bk1, wk2, bk2, ws1, bs1, ws2, bs2,
     wm1a, wm1b, bm1, wm2, bm2, wm3, bm3, wm4, bm4) = params
    elu = jax.nn.elu

    kernel_w = elu(offsets @ wk1 + bk1) @ wk2 + bk2
    score = 1.0 / (jnp.sum(jnp.abs(offsets), axis=1) + 0.001)
    seg_max = jax.ops.segment_max(score, dst_idx, num_segments=num_dst)
    exp_s = jnp.exp(score - seg_max[dst_idx])
    den = jax.ops.segment_sum(exp_s, dst_idx, num_segments=num_dst)
    w = exp_s / den[dst_idx]
    msg = feat[src_idx] * (w[:, None] * kernel_w)
    agg = jax.ops.segment_sum(msg, dst_idx, num_segments=num_dst)

    x_dst = feat[:num_dst]
    h_self = elu(x_dst @ ws1 + bs1) @ ws2 + bs2
    wm1 = jnp.concatenate([wm1a, wm1b], axis=0)
    cat = jnp.concatenate([agg, h_self], axis=1)
    h = elu(cat @ wm1 + bm1)
    h = elu(h @ wm2 + bm2)
    h = elu(h @ wm3 + bm3)
    return h @ wm4 + bm4


# ----------------------------- Main -------------------------------------------

if __name__ == "__main__":
    in_feat, h_feat, out_feat, coord_dim = 8, 32, 16, 2
    n_src, n_dst, n_edges = 24, 10, 300          # 300 edges -> 3 edge tiles of 128 (padded)

    key = jax.random.PRNGKey(0)
    k_feat, k_off, k_src, k_dst, k_par = jax.random.split(key, 5)

    feat = jax.random.normal(k_feat, (n_src, in_feat), jnp.float32)
    offsets = jax.random.normal(k_off, (n_edges, coord_dim), jnp.float32)
    src_idx = jax.random.randint(k_src, (n_edges,), 0, n_src)
    dst_idx = jax.random.randint(k_dst, (n_edges,), 0, n_dst)
    params = make_params(k_par, in_feat, h_feat, out_feat, coord_dim)

    out = coord_conv(feat, offsets, src_idx, dst_idx, n_dst, params, edge_tile=128)
    out = jax.block_until_ready(out)

    ref = jax.block_until_ready(ref_forward(feat, offsets, src_idx, dst_idx, n_dst, params))
    np.testing.assert_allclose(np.asarray(out), np.asarray(ref), rtol=5e-4, atol=5e-4)

    print("KERNEL_OK")
</pallas_src>

<mosaic_0001>
module attributes {stable_mosaic.version = 11 : i64} {
  func.func @coordconv_kernel(%arg0: i32, %arg1: i32, %arg2: memref<128x2xf32, #tpu.memory_space<vmem>>, %arg3: memref<128x1xi32, #tpu.memory_space<vmem>>, %arg4: memref<128x1xi32, #tpu.memory_space<vmem>>, %arg5: memref<1x128xi32, #tpu.memory_space<vmem>>, %arg6: memref<128x128xf32, #tpu.memory_space<vmem>>, %arg7: memref<128x128xf32, #tpu.memory_space<vmem>>, %arg8: memref<2x128xf32, #tpu.memory_space<vmem>>, %arg9: memref<1x128xf32, #tpu.memory_space<vmem>>, %arg10: memref<128x128xf32, #tpu.memory_space<vmem>>, %arg11: memref<1x128xf32, #tpu.memory_space<vmem>>, %arg12: memref<128x128xf32, #tpu.memory_space<vmem>>, %arg13: memref<1x128xf32, #tpu.memory_space<vmem>>, %arg14: memref<128x128xf32, #tpu.memory_space<vmem>>, %arg15: memref<1x128xf32, #tpu.memory_space<vmem>>, %arg16: memref<128x128xf32, #tpu.memory_space<vmem>>, %arg17: memref<128x128xf32, #tpu.memory_space<vmem>>, %arg18: memref<1x128xf32, #tpu.memory_space<vmem>>, %arg19: memref<128x128xf32, #tpu.memory_space<vmem>>, %arg20: memref<1x128xf32, #tpu.memory_space<vmem>>, %arg21: memref<128x128xf32, #tpu.memory_space<vmem>>, %arg22: memref<1x128xf32, #tpu.memory_space<vmem>>, %arg23: memref<128x128xf32, #tpu.memory_space<vmem>>, %arg24: memref<1x128xf32, #tpu.memory_space<vmem>>, %arg25: memref<128x128xf32, #tpu.memory_space<vmem>>, %arg26: memref<1x128xf32, #tpu.memory_space<vmem>>, %arg27: memref<128x1xf32, #tpu.memory_space<vmem>>, %arg28: memref<128x128xf32, #tpu.memory_space<vmem>>) attributes {dimension_semantics = [#tpu.dimension_semantics<arbitrary>, #tpu.dimension_semantics<arbitrary>], iteration_bounds = array<i64: 2, 3>, scalar_prefetch = 0 : i64, scratch_operands = 3 : i64, tpu.core_type = #tpu.core_type<tc>, window_params = [{transform_indices = @transform_0, window_bounds = array<i64: 128, 2>}, {transform_indices = @transform_1, window_bounds = array<i64: 128, 1>}, {transform_indices = @transform_2, window_bounds = array<i64: 128, 1>}, {transform_indices = @transform_3, window_bounds = array<i64: 1, 128>}, {pipeline_mode = #tpu.pipeline_mode<synchronous>, transform_indices = @transform_4, window_bounds = array<i64: 128, 128>}, {pipeline_mode = #tpu.pipeline_mode<synchronous>, transform_indices = @transform_5, window_bounds = array<i64: 128, 128>}, {pipeline_mode = #tpu.pipeline_mode<synchronous>, transform_indices = @transform_6, window_bounds = array<i64: 2, 128>}, {pipeline_mode = #tpu.pipeline_mode<synchronous>, transform_indices = @transform_7, window_bounds = array<i64: 1, 128>}, {pipeline_mode = #tpu.pipeline_mode<synchronous>, transform_indices = @transform_8, window_bounds = array<i64: 128, 128>}, {pipeline_mode = #tpu.pipeline_mode<synchronous>, transform_indices = @transform_9, window_bounds = array<i64: 1, 128>}, {pipeline_mode = #tpu.pipeline_mode<synchronous>, transform_indices = @transform_10, window_bounds = array<i64: 128, 128>}, {pipeline_mode = #tpu.pipeline_mode<synchronous>, transform_indices = @transform_11, window_bounds = array<i64: 1, 128>}, {pipeline_mode = #tpu.pipeline_mode<synchronous>, transform_indices = @transform_12, window_bounds = array<i64: 128, 128>}, {pipeline_mode = #tpu.pipeline_mode<synchronous>, transform_indices = @transform_13, window_bounds = array<i64: 1, 128>}, {pipeline_mode = #tpu.pipeline_mode<synchronous>, transform_indices = @transform_14, window_bounds = array<i64: 128, 128>}, {pipeline_mode = #tpu.pipeline_mode<synchronous>, transform_indices = @transform_15, window_bounds = array<i64: 128, 128>}, {pipeline_mode = #tpu.pipeline_mode<synchronous>, transform_indices = @transform_16, window_bounds = array<i64: 1, 128>}, {pipeline_mode = #tpu.pipeline_mode<synchronous>, transform_indices = @transform_17, window_bounds = array<i64: 128, 128>}, {pipeline_mode = #tpu.pipeline_mode<synchronous>, transform_indices = @transform_18, window_bounds = array<i64: 1, 128>}, {pipeline_mode = #tpu.pipeline_mode<synchronous>, transform_indices = @transform_19, window_bounds = array<i64: 128, 128>}, {pipeline_mode = #tpu.pipeline_mode<synchronous>, transform_indices = @transform_20, window_bounds = array<i64: 1, 128>}, {pipeline_mode = #tpu.pipeline_mode<synchronous>, transform_indices = @transform_21, window_bounds = array<i64: 128, 128>}, {pipeline_mode = #tpu.pipeline_mode<synchronous>, transform_indices = @transform_22, window_bounds = array<i64: 1, 128>}, {pipeline_mode = #tpu.pipeline_mode<synchronous>, transform_indices = @transform_23, window_bounds = array<i64: 128, 128>}]} {
    %c0 = arith.constant 0 : index
    %c0_0 = arith.constant 0 : index
    %0 = vector.load %arg2[%c0, %c0_0] : memref<128x2xf32, #tpu.memory_space<vmem>>, vector<128x2xf32>
    %c0_1 = arith.constant 0 : index
    %c0_2 = arith.constant 0 : index
    %1 = vector.load %arg4[%c0_1, %c0_2] : memref<128x1xi32, #tpu.memory_space<vmem>>, vector<128x1xi32>
    %2 = math.absf %0 : vector<128x2xf32>
    %cst = arith.constant dense<0.000000e+00> : vector<128xf32>
    %3 = vector.multi_reduction <add>, %2, %cst [1] : vector<128x2xf32> to vector<128xf32>
    %4 = vector.shape_cast %3 : vector<128xf32> to vector<128x1xf32>
    %cst_3 = arith.constant 1.000000e-03 : f32
    %5 = vector.broadcast %cst_3 : f32 to vector<128x1xf32>
    %6 = arith.addf %4, %5 : vector<128x1xf32>
    %cst_4 = arith.constant 1.000000e+00 : f32
    %7 = vector.broadcast %cst_4 : f32 to vector<128x1xf32>
    %8 = arith.divf %7, %6 : vector<128x1xf32>
    %9 = tpu.iota {dimensions = array<i32: 1>} : vector<128x128xi32>
    %10 = vector.broadcast %1 : vector<128x1xi32> to vector<128x128xi32>
    %11 = arith.cmpi eq, %9, %10 : vector<128x128xi32>
    %c0_i32 = arith.constant 0 : i32
    %12 = arith.cmpi eq, %arg0, %c0_i32 : i32
    %c0_i32_5 = arith.constant 0 : i32
    %13 = arith.cmpi eq, %arg1, %c0_i32_5 : i32
    %14 = arith.andi %12, %13 : i1
    %15 = arith.extui %14 : i1 to i32
    %c0_i32_6 = arith.constant 0 : i32
    %16 = arith.cmpi ne, %15, %c0_i32_6 : i32
    scf.if %16 {
      %cst_12 = arith.constant -1.000000e+30 : f32
      %28 = vector.broadcast %cst_12 : f32 to vector<1x128xf32>
      %c0_13 = arith.constant 0 : index
      %c0_14 = arith.constant 0 : index
      %29 = vector.load %arg26[%c0_13, %c0_14] : memref<1x128xf32, #tpu.memory_space<vmem>>, vector<1x128xf32>
      tpu.vector_store %arg26[%c0_13, %c0_14], %28 {strides = array<i32>} : memref<1x128xf32, #tpu.memory_space<vmem>>, vector<1x128xf32>,
      %cst_15 = arith.constant 0.000000e+00 : f32
      %30 = vector.broadcast %cst_15 : f32 to vector<128x1xf32>
      %c0_16 = arith.constant 0 : index
      %c0_17 = arith.constant 0 : index
      %31 = vector.load %arg27[%c0_16, %c0_17] : memref<128x1xf32, #tpu.memory_space<vmem>>, vector<128x1xf32>
      tpu.vector_store %arg27[%c0_16, %c0_17], %30 {strides = array<i32>} : memref<128x1xf32, #tpu.memory_space<vmem>>, vector<128x1xf32>,
      %cst_18 = arith.constant 0.000000e+00 : f32
      %32 = vector.broadcast %cst_18 : f32 to vector<128x128xf32>
      %c0_19 = arith.constant 0 : index
      %c0_20 = arith.constant 0 : index
      %33 = vector.load %arg28[%c0_19, %c0_20] : memref<128x128xf32, #tpu.memory_space<vmem>>, vector<128x128xf32>
      tpu.vector_store %arg28[%c0_19, %c0_20], %32 {strides = array<i32>} : memref<128x128xf32, #tpu.memory_space<vmem>>, vector<128x128xf32>,
    } else {
    }
    %c0_i32_7 = arith.constant 0 : i32
    %17 = arith.cmpi eq, %arg0, %c0_i32_7 : i32
    %18 = arith.extui %17 : i1 to i32
    %c0_i32_8 = arith.constant 0 : i32
    %19 = arith.cmpi ne, %18, %c0_i32_8 : i32
    scf.if %19 {
      %cst_12 = arith.constant -1.000000e+30 : f32
      %28 = vector.shape_cast %8 : vector<128x1xf32> to vector<128x1xf32>
      %29 = vector.broadcast %28 : vector<128x1xf32> to vector<128x128xf32>
      %30 = vector.broadcast %cst_12 : f32 to vector<128x128xf32>
      %31 = arith.select %11, %29, %30 : vector<128x128xi1>, vector<128x128xf32>
      %cst_13 = arith.constant dense<0xFF800000> : vector<128xf32>
      %32 = vector.multi_reduction <maximumf>, %31, %cst_13 [0] : vector<128x128xf32> to vector<128xf32>
      %33 = vector.shape_cast %32 : vector<128xf32> to vector<1x128xf32>
      %c0_14 = arith.constant 0 : index
      %c0_15 = arith.constant 0 : index
      %34 = vector.load %arg26[%c0_14, %c0_15] : memref<1x128xf32, #tpu.memory_space<vmem>>, vector<1x128xf32>
      %35 = arith.maximumf %34, %33 : vector<1x128xf32>
      %c0_16 = arith.constant 0 : index
      %c0_17 = arith.constant 0 : index
      %36 = vector.load %arg26[%c0_16, %c0_17] : memref<1x128xf32, #tpu.memory_space<vmem>>, vector<1x128xf32>
      tpu.vector_store %arg26[%c0_16, %c0_17], %35 {strides = array<i32>} : memref<1x128xf32, #tpu.memory_space<vmem>>, vector<1x128xf32>,
    } else {
    }
    %c1_i32 = arith.constant 1 : i32
    %20 = arith.cmpi eq, %arg0, %c1_i32 : i32
    %21 = arith.extui %20 : i1 to i32
    %c0_i32_9 = arith.constant 0 : i32
    %22 = arith.cmpi ne, %21, %c0_i32_9 : i32
    scf.if %22 {
      %c0_i32_12 = arith.constant 0 : i32
      %28 = vector.broadcast %c0_i32_12 : i32 to vector<128x1xi32>
      %29 = arith.cmpi sge, %1, %28 : vector<128x1xi32>
      %30 = arith.extui %29 : vector<128x1xi1> to vector<128x1xi32>
      %31 = arith.sitofp %30 : vector<128x1xi32> to vector<128x1xf32>
      %32 = arith.extui %11 : vector<128x128xi1> to vector<128x128xi32>
      %33 = arith.sitofp %32 : vector<128x128xi32> to vector<128x128xf32>
      %c0_13 = arith.constant 0 : index
      %c0_14 = arith.constant 0 : index
      %34 = vector.load %arg26[%c0_13, %c0_14] : memref<1x128xf32, #tpu.memory_space<vmem>>, vector<1x128xf32>
      %35 = vector.broadcast %34 : vector<1x128xf32> to vector<128x128xf32>
      %36 = arith.mulf %33, %35 : vector<128x128xf32>
      %cst_15 = arith.constant dense<0.000000e+00> : vector<128xf32>
      %37 = vector.multi_reduction <add>, %36, %cst_15 [1] : vector<128x128xf32> to vector<128xf32>
      %38 = vector.shape_cast %37 : vector<128xf32> to vector<128x1xf32>
      %39 = arith.subf %8, %38 : vector<128x1xf32>
      %cst_16 = arith.constant 0.000000e+00 : f32
      %40 = vector.broadcast %cst_16 : f32 to vector<128x1xf32>
      %41 = arith.minimumf %39, %40 : vector<128x1xf32>
      %42 = math.exp %41 : vector<128x1xf32>
      %43 = arith.mulf %42, %31 : vector<128x1xf32>
      %44 = tpu.iota {dimensions = array<i32: 0>} : vector<128x128xi32>
      %c0_17 = arith.constant 0 : index
      %c0_18 = arith.constant 0 : index
      %45 = vector.load %arg5[%c0_17, %c0_18] : memref<1x128xi32, #tpu.memory_space<vmem>>, vector<1x128xi32>
      %46 = vector.broadcast %45 : vector<1x128xi32> to vector<128x128xi32>
      %47 = arith.cmpi eq, %44, %46 : vector<128x128xi32>
      %48 = arith.extui %47 : vector<128x128xi1> to vector<128x128xi32>
      %49 = arith.sitofp %48 : vector<128x128xi32> to vector<128x128xf32>
      %c0_19 = arith.constant 0 : index
      %c0_20 = arith.constant 0 : index
      %50 = vector.load %arg27[%c0_19, %c0_20] : memref<128x1xf32, #tpu.memory_space<vmem>>, vector<128x1xf32>
      %cst_21 = arith.constant dense<0.000000e+00> : vector<128x1xf32>
      %51 = tpu.matmul %49, %43, %cst_21 {dimension_numbers = #tpu.dot_dimension_numbers<[1], [0], [0], [1], [0, 0, 1, 1], [], []>} : vector<128x128xf32>, vector<128x1xf32>, vector<128x1xf32> -> vector<128x1xf32>
      %52 = arith.addf %50, %51 : vector<128x1xf32>
      %c0_22 = arith.constant 0 : index
      %c0_23 = arith.constant 0 : index
      %53 = vector.load %arg27[%c0_22, %c0_23] : memref<128x1xf32, #tpu.memory_space<vmem>>, vector<128x1xf32>
      tpu.vector_store %arg27[%c0_22, %c0_23], %52 {strides = array<i32>} : memref<128x1xf32, #tpu.memory_space<vmem>>, vector<128x1xf32>,
      %c0_24 = arith.constant 0 : index
      %c0_25 = arith.constant 0 : index
      %54 = vector.load %arg8[%c0_24, %c0_25] : memref<2x128xf32, #tpu.memory_space<vmem>>, vector<2x128xf32>
      %cst_26 = arith.constant dense<0.000000e+00> : vector<128x128xf32>
      %55 = tpu.matmul %0, %54, %cst_26 {dimension_numbers = #tpu.dot_dimension_numbers<[1], [0], [0], [1], [0, 0, 1, 1], [], []>} : vector<128x2xf32>, vector<2x128xf32>, vector<128x128xf32> -> vector<128x128xf32>
      %c0_27 = arith.constant 0 : index
      %c0_28 = arith.constant 0 : index
      %56 = vector.load %arg9[%c0_27, %c0_28] : memref<1x128xf32, #tpu.memory_space<vmem>>, vector<1x128xf32>
      %57 = vector.broadcast %56 : vector<1x128xf32> to vector<128x128xf32>
      %58 = arith.addf %55, %57 : vector<128x128xf32>
      %cst_29 = arith.constant 0.000000e+00 : f32
      %59 = vector.broadcast %cst_29 : f32 to vector<128x128xf32>
      %60 = arith.cmpf ogt, %58, %59 : vector<128x128xf32>
      %cst_30 = arith.constant 0.000000e+00 : f32
      %61 = vector.broadcast %cst_30 : f32 to vector<128x128xf32>
      %62 = arith.minimumf %58, %61 : vector<128x128xf32>
      %63 = math.exp %62 : vector<128x128xf32>
      %cst_31 = arith.constant 1.000000e+00 : f32
      %64 = vector.broadcast %cst_31 : f32 to vector<128x128xf32>
      %65 = arith.subf %63, %64 : vector<128x128xf32>
      %66 = arith.select %60, %58, %65 : vector<128x128xi1>, vector<128x128xf32>
      %c0_32 = arith.constant 0 : index
      %c0_33 = arith.constant 0 : index
      %67 = vector.load %arg10[%c0_32, %c0_33] : memref<128x128xf32, #tpu.memory_space<vmem>>, vector<128x128xf32>
      %cst_34 = arith.constant dense<0.000000e+00> : vector<128x128xf32>
      %68 = tpu.matmul %66, %67, %cst_34 {dimension_numbers = #tpu.dot_dimension_numbers<[1], [0], [0], [1], [0, 0, 1, 1], [], []>} : vector<128x128xf32>, vector<128x128xf32>, vector<128x128xf32> -> vector<128x128xf32>
      %c0_35 = arith.constant 0 : index
      %c0_36 = arith.constant 0 : index
      %69 = vector.load %arg11[%c0_35, %c0_36] : memref<1x128xf32, #tpu.memory_space<vmem>>, vector<1x128xf32>
      %70 = vector.broadcast %69 : vector<1x128xf32> to vector<128x128xf32>
      %71 = arith.addf %68, %70 : vector<128x128xf32>
      %72 = tpu.iota {dimensions = array<i32: 1>} : vector<128x128xi32>
      %c0_37 = arith.constant 0 : index
      %c0_38 = arith.constant 0 : index
      %73 = vector.load %arg3[%c0_37, %c0_38] : memref<128x1xi32, #tpu.memory_space<vmem>>, vector<128x1xi32>
      %74 = vector.broadcast %73 : vector<128x1xi32> to vector<128x128xi32>
      %75 = arith.cmpi eq, %72, %74 : vector<128x128xi32>
      %76 = arith.extui %75 : vector<128x128xi1> to vector<128x128xi32>
      %77 = arith.sitofp %76 : vector<128x128xi32> to vector<128x128xf32>
      %c0_39 = arith.constant 0 : index
      %c0_40 = arith.constant 0 : index
      %78 = vector.load %arg6[%c0_39, %c0_40] : memref<128x128xf32, #tpu.memory_space<vmem>>, vector<128x128xf32>
      %cst_41 = arith.constant dense<0.000000e+00> : vector<128x128xf32>
      %79 = tpu.matmul %77, %78, %cst_41 {dimension_numbers = #tpu.dot_dimension_numbers<[1], [0], [0], [1], [0, 0, 1, 1], [], []>} : vector<128x128xf32>, vector<128x128xf32>, vector<128x128xf32> -> vector<128x128xf32>
      %80 = vector.broadcast %43 : vector<128x1xf32> to vector<128x128xf32>
      %81 = arith.mulf %80, %71 : vector<128x128xf32>
      %82 = arith.mulf %81, %79 : vector<128x128xf32>
      %c0_42 = arith.constant 0 : index
      %c0_43 = arith.constant 0 : index
      %83 = vector.load %arg28[%c0_42, %c0_43] : memref<128x128xf32, #tpu.memory_space<vmem>>, vector<128x128xf32>
      %cst_44 = arith.constant dense<0.000000e+00> : vector<128x128xf32>
      %84 = tpu.matmul %49, %82, %cst_44 {dimension_numbers = #tpu.dot_dimension_numbers<[1], [0], [0], [1], [0, 0, 1, 1], [], []>} : vector<128x128xf32>, vector<128x128xf32>, vector<128x128xf32> -> vector<128x128xf32>
      %85 = arith.addf %83, %84 : vector<128x128xf32>
      %c0_45 = arith.constant 0 : index
      %c0_46 = arith.constant 0 : index
      %86 = vector.load %arg28[%c0_45, %c0_46] : memref<128x128xf32, #tpu.memory_space<vmem>>, vector<128x128xf32>
      tpu.vector_store %arg28[%c0_45, %c0_46], %85 {strides = array<i32>} : memref<128x128xf32, #tpu.memory_space<vmem>>, vector<128x128xf32>,
    } else {
    }
    %c1_i32_10 = arith.constant 1 : i32
    %23 = arith.cmpi eq, %arg0, %c1_i32_10 : i32
    %c2_i32 = arith.constant 2 : i32
    %24 = arith.cmpi eq, %arg1, %c2_i32 : i32
    %25 = arith.andi %23, %24 : i1
    %26 = arith.extui %25 : i1 to i32
    %c0_i32_11 = arith.constant 0 : i32
    %27 = arith.cmpi ne, %26, %c0_i32_11 : i32
    scf.if %27 {
      %c0_12 = arith.constant 0 : index
      %c0_13 = arith.constant 0 : index
      %28 = vector.load %arg27[%c0_12, %c0_13] : memref<128x1xf32, #tpu.memory_space<vmem>>, vector<128x1xf32>
      %c0_14 = arith.constant 0 : index
      %c0_15 = arith.constant 0 : index
      %29 = vector.load %arg28[%c0_14, %c0_15] : memref<128x128xf32, #tpu.memory_space<vmem>>, vector<128x128xf32>
      %cst_16 = arith.constant 0.000000e+00 : f32
      %30 = vector.broadcast %cst_16 : f32 to vector<128x1xf32>
      %31 = arith.cmpf ogt, %28, %30 : vector<128x1xf32>
      %cst_17 = arith.constant 1.000000e+00 : f32
      %32 = vector.broadcast %cst_17 : f32 to vector<128x1xf32>
      %33 = arith.select %31, %28, %32 : vector<128x1xi1>, vector<128x1xf32>
      %34 = vector.broadcast %33 : vector<128x1xf32> to vector<128x128xf32>
      %35 = arith.divf %29, %34 : vector<128x128xf32>
      %c0_18 = arith.constant 0 : index
      %c0_19 = arith.constant 0 : index
      %36 = vector.load %arg7[%c0_18, %c0_19] : memref<128x128xf32, #tpu.memory_space<vmem>>, vector<128x128xf32>
      %c0_20 = arith.constant 0 : index
      %c0_21 = arith.constant 0 : index
      %37 = vector.load %arg12[%c0_20, %c0_21] : memref<128x128xf32, #tpu.memory_space<vmem>>, vector<128x128xf32>
      %cst_22 = arith.constant dense<0.000000e+00> : vector<128x128xf32>
      %38 = tpu.matmul %36, %37, %cst_22 {dimension_numbers = #tpu.dot_dimension_numbers<[1], [0], [0], [1], [0, 0, 1, 1], [], []>} : vector<128x128xf32>, vector<128x128xf32>, vector<128x128xf32> -> vector<128x128xf32>
      %c0_23 = arith.constant 0 : index
      %c0_24 = arith.constant 0 : index
      %39 = vector.load %arg13[%c0_23, %c0_24] : memref<1x128xf32, #tpu.memory_space<vmem>>, vector<1x128xf32>
      %40 = vector.broadcast %39 : vector<1x128xf32> to vector<128x128xf32>
      %41 = arith.addf %38, %40 : vector<128x128xf32>
      %cst_25 = arith.constant 0.000000e+00 : f32
      %42 = vector.broadcast %cst_25 : f32 to vector<128x128xf32>
      %43 = arith.cmpf ogt, %41, %42 : vector<128x128xf32>
      %cst_26 = arith.constant 0.000000e+00 : f32
      %44 = vector.broadcast %cst_26 : f32 to vector<128x128xf32>
      %45 = arith.minimumf %41, %44 : vector<128x128xf32>
      %46 = math.exp %45 : vector<128x128xf32>
      %cst_27 = arith.constant 1.000000e+00 : f32
      %47 = vector.broadcast %cst_27 : f32 to vector<128x128xf32>
      %48 = arith.subf %46, %47 : vector<128x128xf32>
      %49 = arith.select %43, %41, %48 : vector<128x128xi1>, vector<128x128xf32>
      %c0_28 = arith.constant 0 : index
      %c0_29 = arith.constant 0 : index
      %50 = vector.load %arg14[%c0_28, %c0_29] : memref<128x128xf32, #tpu.memory_space<vmem>>, vector<128x128xf32>
      %cst_30 = arith.constant dense<0.000000e+00> : vector<128x128xf32>
      %51 = tpu.matmul %49, %50, %cst_30 {dimension_numbers = #tpu.dot_dimension_numbers<[1], [0], [0], [1], [0, 0, 1, 1], [], []>} : vector<128x128xf32>, vector<128x128xf32>, vector<128x128xf32> -> vector<128x128xf32>
      %c0_31 = arith.constant 0 : index
      %c0_32 = arith.constant 0 : index
      %52 = vector.load %arg15[%c0_31, %c0_32] : memref<1x128xf32, #tpu.memory_space<vmem>>, vector<1x128xf32>
      %53 = vector.broadcast %52 : vector<1x128xf32> to vector<128x128xf32>
      %54 = arith.addf %51, %53 : vector<128x128xf32>
      %c0_33 = arith.constant 0 : index
      %c0_34 = arith.constant 0 : index
      %55 = vector.load %arg16[%c0_33, %c0_34] : memref<128x128xf32, #tpu.memory_space<vmem>>, vector<128x128xf32>
      %cst_35 = arith.constant dense<0.000000e+00> : vector<128x128xf32>
      %56 = tpu.matmul %35, %55, %cst_35 {dimension_numbers = #tpu.dot_dimension_numbers<[1], [0], [0], [1], [0, 0, 1, 1], [], []>} : vector<128x128xf32>, vector<128x128xf32>, vector<128x128xf32> -> vector<128x128xf32>
      %c0_36 = arith.constant 0 : index
      %c0_37 = arith.constant 0 : index
      %57 = vector.load %arg17[%c0_36, %c0_37] : memref<128x128xf32, #tpu.memory_space<vmem>>, vector<128x128xf32>
      %cst_38 = arith.constant dense<0.000000e+00> : vector<128x128xf32>
      %58 = tpu.matmul %54, %57, %cst_38 {dimension_numbers = #tpu.dot_dimension_numbers<[1], [0], [0], [1], [0, 0, 1, 1], [], []>} : vector<128x128xf32>, vector<128x128xf32>, vector<128x128xf32> -> vector<128x128xf32>
      %59 = arith.addf %56, %58 : vector<128x128xf32>
      %c0_39 = arith.constant 0 : index
      %c0_40 = arith.constant 0 : index
      %60 = vector.load %arg18[%c0_39, %c0_40] : memref<1x128xf32, #tpu.memory_space<vmem>>, vector<1x128xf32>
      %61 = vector.broadcast %60 : vector<1x128xf32> to vector<128x128xf32>
      %62 = arith.addf %59, %61 : vector<128x128xf32>
      %cst_41 = arith.constant 0.000000e+00 : f32
      %63 = vector.broadcast %cst_41 : f32 to vector<128x128xf32>
      %64 = arith.cmpf ogt, %62, %63 : vector<128x128xf32>
      %cst_42 = arith.constant 0.000000e+00 : f32
      %65 = vector.broadcast %cst_42 : f32 to vector<128x128xf32>
      %66 = arith.minimumf %62, %65 : vector<128x128xf32>
      %67 = math.exp %66 : vector<128x128xf32>
      %cst_43 = arith.constant 1.000000e+00 : f32
      %68 = vector.broadcast %cst_43 : f32 to vector<128x128xf32>
      %69 = arith.subf %67, %68 : vector<128x128xf32>
      %70 = arith.select %64, %62, %69 : vector<128x128xi1>, vector<128x128xf32>
      %c0_44 = arith.constant 0 : index
      %c0_45 = arith.constant 0 : index
      %71 = vector.load %arg19[%c0_44, %c0_45] : memref<128x128xf32, #tpu.memory_space<vmem>>, vector<128x128xf32>
      %cst_46 = arith.constant dense<0.000000e+00> : vector<128x128xf32>
      %72 = tpu.matmul %70, %71, %cst_46 {dimension_numbers = #tpu.dot_dimension_numbers<[1], [0], [0], [1], [0, 0, 1, 1], [], []>} : vector<128x128xf32>, vector<128x128xf32>, vector<128x128xf32> -> vector<128x128xf32>
      %c0_47 = arith.constant 0 : index
      %c0_48 = arith.constant 0 : index
      %73 = vector.load %arg20[%c0_47, %c0_48] : memref<1x128xf32, #tpu.memory_space<vmem>>, vector<1x128xf32>
      %74 = vector.broadcast %73 : vector<1x128xf32> to vector<128x128xf32>
      %75 = arith.addf %72, %74 : vector<128x128xf32>
      %cst_49 = arith.constant 0.000000e+00 : f32
      %76 = vector.broadcast %cst_49 : f32 to vector<128x128xf32>
      %77 = arith.cmpf ogt, %75, %76 : vector<128x128xf32>
      %cst_50 = arith.constant 0.000000e+00 : f32
      %78 = vector.broadcast %cst_50 : f32 to vector<128x128xf32>
      %79 = arith.minimumf %75, %78 : vector<128x128xf32>
      %80 = math.exp %79 : vector<128x128xf32>
      %cst_51 = arith.constant 1.000000e+00 : f32
      %81 = vector.broadcast %cst_51 : f32 to vector<128x128xf32>
      %82 = arith.subf %80, %81 : vector<128x128xf32>
      %83 = arith.select %77, %75, %82 : vector<128x128xi1>, vector<128x128xf32>
      %c0_52 = arith.constant 0 : index
      %c0_53 = arith.constant 0 : index
      %84 = vector.load %arg21[%c0_52, %c0_53] : memref<128x128xf32, #tpu.memory_space<vmem>>, vector<128x128xf32>
      %cst_54 = arith.constant dense<0.000000e+00> : vector<128x128xf32>
      %85 = tpu.matmul %83, %84, %cst_54 {dimension_numbers = #tpu.dot_dimension_numbers<[1], [0], [0], [1], [0, 0, 1, 1], [], []>} : vector<128x128xf32>, vector<128x128xf32>, vector<128x128xf32> -> vector<128x128xf32>
      %c0_55 = arith.constant 0 : index
      %c0_56 = arith.constant 0 : index
      %86 = vector.load %arg22[%c0_55, %c0_56] : memref<1x128xf32, #tpu.memory_space<vmem>>, vector<1x128xf32>
      %87 = vector.broadcast %86 : vector<1x128xf32> to vector<128x128xf32>
      %88 = arith.addf %85, %87 : vector<128x128xf32>
      %cst_57 = arith.constant 0.000000e+00 : f32
      %89 = vector.broadcast %cst_57 : f32 to vector<128x128xf32>
      %90 = arith.cmpf ogt, %88, %89 : vector<128x128xf32>
      %cst_58 = arith.constant 0.000000e+00 : f32
      %91 = vector.broadcast %cst_58 : f32 to vector<128x128xf32>
      %92 = arith.minimumf %88, %91 : vector<128x128xf32>
      %93 = math.exp %92 : vector<128x128xf32>
      %cst_59 = arith.constant 1.000000e+00 : f32
      %94 = vector.broadcast %cst_59 : f32 to vector<128x128xf32>
      %95 = arith.subf %93, %94 : vector<128x128xf32>
      %96 = arith.select %90, %88, %95 : vector<128x128xi1>, vector<128x128xf32>
      %c0_60 = arith.constant 0 : index
      %c0_61 = arith.constant 0 : index
      %97 = vector.load %arg23[%c0_60, %c0_61] : memref<128x128xf32, #tpu.memory_space<vmem>>, vector<128x128xf32>
      %cst_62 = arith.constant dense<0.000000e+00> : vector<128x128xf32>
      %98 = tpu.matmul %96, %97, %cst_62 {dimension_numbers = #tpu.dot_dimension_numbers<[1], [0], [0], [1], [0, 0, 1, 1], [], []>} : vector<128x128xf32>, vector<128x128xf32>, vector<128x128xf32> -> vector<128x128xf32>
      %c0_63 = arith.constant 0 : index
      %c0_64 = arith.constant 0 : index
      %99 = vector.load %arg24[%c0_63, %c0_64] : memref<1x128xf32, #tpu.memory_space<vmem>>, vector<1x128xf32>
      %100 = vector.broadcast %99 : vector<1x128xf32> to vector<128x128xf32>
      %101 = arith.addf %98, %100 : vector<128x128xf32>
      %c0_65 = arith.constant 0 : index
      %c0_66 = arith.constant 0 : index
      %102 = vector.load %arg25[%c0_65, %c0_66] : memref<128x128xf32, #tpu.memory_space<vmem>>, vector<128x128xf32>
      tpu.vector_store %arg25[%c0_65, %c0_66], %101 {strides = array<i32>} : memref<128x128xf32, #tpu.memory_space<vmem>>, vector<128x128xf32>,
    } else {
    }
    return
  }
  func.func @transform_0(%arg0: i32, %arg1: i32) -> (i32, i32) {
    %c0_i32 = arith.constant 0 : i32
    %c0_i32_0 = arith.constant 0 : i32
    return %arg1, %c0_i32 : i32, i32
  }
  func.func @transform_1(%arg0: i32, %arg1: i32) -> (i32, i32) {
    %c0_i32 = arith.constant 0 : i32
    %c0_i32_0 = arith.constant 0 : i32
    return %arg1, %c0_i32 : i32, i32
  }
  func.func @transform_2(%arg0: i32, %arg1: i32) -> (i32, i32) {
    %c0_i32 = arith.constant 0 : i32
    %c0_i32_0 = arith.constant 0 : i32
    return %arg1, %c0_i32 : i32, i32
  }
  func.func @transform_3(%arg0: i32, %arg1: i32) -> (i32, i32) {
    %c0_i32 = arith.constant 0 : i32
    %c0_i32_0 = arith.constant 0 : i32
    return %c0_i32, %arg1 : i32, i32
  }
  func.func @transform_4(%arg0: i32, %arg1: i32) -> (i32, i32) {
    %c0_i32 = arith.constant 0 : i32
    %c0_i32_0 = arith.constant 0 : i32
    %c0_i32_1 = arith.constant 0 : i32
    return %c0_i32, %c0_i32_0 : i32, i32
  }
  func.func @transform_5(%arg0: i32, %arg1: i32) -> (i32, i32) {
    %c0_i32 = arith.constant 0 : i32
    %c0_i32_0 = arith.constant 0 : i32
    %c0_i32_1 = arith.constant 0 : i32
    return %c0_i32, %c0_i32_0 : i32, i32
  }
  func.func @transform_6(%arg0: i32, %arg1: i32) -> (i32, i32) {
    %c0_i32 = arith.constant 0 : i32
    %c0_i32_0 = arith.constant 0 : i32
    %c0_i32_1 = arith.constant 0 : i32
    return %c0_i32, %c0_i32_0 : i32, i32
  }
  func.func @transform_7(%arg0: i32, %arg1: i32) -> (i32, i32) {
    %c0_i32 = arith.constant 0 : i32
    %c0_i32_0 = arith.constant 0 : i32
    %c0_i32_1 = arith.constant 0 : i32
    return %c0_i32, %c0_i32_0 : i32, i32
  }
  func.func @transform_8(%arg0: i32, %arg1: i32) -> (i32, i32) {
    %c0_i32 = arith.constant 0 : i32
    %c0_i32_0 = arith.constant 0 : i32
    %c0_i32_1 = arith.constant 0 : i32
    return %c0_i32, %c0_i32_0 : i32, i32
  }
  func.func @transform_9(%arg0: i32, %arg1: i32) -> (i32, i32) {
    %c0_i32 = arith.constant 0 : i32
    %c0_i32_0 = arith.constant 0 : i32
    %c0_i32_1 = arith.constant 0 : i32
    return %c0_i32, %c0_i32_0 : i32, i32
  }
  func.func @transform_10(%arg0: i32, %arg1: i32) -> (i32, i32) {
    %c0_i32 = arith.constant 0 : i32
    %c0_i32_0 = arith.constant 0 : i32
    %c0_i32_1 = arith.constant 0 : i32
    return %c0_i32, %c0_i32_0 : i32, i32
  }
  func.func @transform_11(%arg0: i32, %arg1: i32) -> (i32, i32) {
    %c0_i32 = arith.constant 0 : i32
    %c0_i32_0 = arith.constant 0 : i32
    %c0_i32_1 = arith.constant 0 : i32
    return %c0_i32, %c0_i32_0 : i32, i32
  }
  func.func @transform_12(%arg0: i32, %arg1: i32) -> (i32, i32) {
    %c0_i32 = arith.constant 0 : i32
    %c0_i32_0 = arith.constant 0 : i32
    %c0_i32_1 = arith.constant 0 : i32
    return %c0_i32, %c0_i32_0 : i32, i32
  }
  func.func @transform_13(%arg0: i32, %arg1: i32) -> (i32, i32) {
    %c0_i32 = arith.constant 0 : i32
    %c0_i32_0 = arith.constant 0 : i32
    %c0_i32_1 = arith.constant 0 : i32
    return %c0_i32, %c0_i32_0 : i32, i32
  }
  func.func @transform_14(%arg0: i32, %arg1: i32) -> (i32, i32) {
    %c0_i32 = arith.constant 0 : i32
    %c0_i32_0 = arith.constant 0 : i32
    %c0_i32_1 = arith.constant 0 : i32
    return %c0_i32, %c0_i32_0 : i32, i32
  }
  func.func @transform_15(%arg0: i32, %arg1: i32) -> (i32, i32) {
    %c0_i32 = arith.constant 0 : i32
    %c0_i32_0 = arith.constant 0 : i32
    %c0_i32_1 = arith.constant 0 : i32
    return %c0_i32, %c0_i32_0 : i32, i32
  }
  func.func @transform_16(%arg0: i32, %arg1: i32) -> (i32, i32) {
    %c0_i32 = arith.constant 0 : i32
    %c0_i32_0 = arith.constant 0 : i32
    %c0_i32_1 = arith.constant 0 : i32
    return %c0_i32, %c0_i32_0 : i32, i32
  }
  func.func @transform_17(%arg0: i32, %arg1: i32) -> (i32, i32) {
    %c0_i32 = arith.constant 0 : i32
    %c0_i32_0 = arith.constant 0 : i32
    %c0_i32_1 = arith.constant 0 : i32
    return %c0_i32, %c0_i32_0 : i32, i32
  }
  func.func @transform_18(%arg0: i32, %arg1: i32) -> (i32, i32) {
    %c0_i32 = arith.constant 0 : i32
    %c0_i32_0 = arith.constant 0 : i32
    %c0_i32_1 = arith.constant 0 : i32
    return %c0_i32, %c0_i32_0 : i32, i32
  }
  func.func @transform_19(%arg0: i32, %arg1: i32) -> (i32, i32) {
    %c0_i32 = arith.constant 0 : i32
    %c0_i32_0 = arith.constant 0 : i32
    %c0_i32_1 = arith.constant 0 : i32
    return %c0_i32, %c0_i32_0 : i32, i32
  }
  func.func @transform_20(%arg0: i32, %arg1: i32) -> (i32, i32) {
    %c0_i32 = arith.constant 0 : i32
    %c0_i32_0 = arith.constant 0 : i32
    %c0_i32_1 = arith.constant 0 : i32
    return %c0_i32, %c0_i32_0 : i32, i32
  }
  func.func @transform_21(%arg0: i32, %arg1: i32) -> (i32, i32) {
    %c0_i32 = arith.constant 0 : i32
    %c0_i32_0 = arith.constant 0 : i32
    %c0_i32_1 = arith.constant 0 : i32
    return %c0_i32, %c0_i32_0 : i32, i32
  }
  func.func @transform_22(%arg0: i32, %arg1: i32) -> (i32, i32) {
    %c0_i32 = arith.constant 0 : i32
    %c0_i32_0 = arith.constant 0 : i32
    %c0_i32_1 = arith.constant 0 : i32
    return %c0_i32, %c0_i32_0 : i32, i32
  }
  func.func @transform_23(%arg0: i32, %arg1: i32) -> (i32, i32) {
    %c0_i32 = arith.constant 0 : i32
    %c0_i32_0 = arith.constant 0 : i32
    %c0_i32_1 = arith.constant 0 : i32
    return %c0_i32, %c0_i32_0 : i32, i32
  }
}

</mosaic_0001>

<llo_original>
// kernel: tpu_custom_call.1
$region0: #{tpu_custom_call.1}
  #allocation0 [shape = 'u32[]', space=smem, size = 0x4, offset = 0x4, fixed_abs, tag = 'smem constant byte address 0x4 - core index']
  #allocation1 [shape = 'u32[72,128]{1,0:T(1,128)}', space=vmem, size = 0x9000, scoped, tag = 'internal scratch']
  #allocation2 [shape = 'f32[1,128]{1,0:T(1,128)}', space=vmem, size = 0x200, scoped, tag = 'scratch operand']
  #allocation3 [shape = 'f32[128,1]{1,0:T(8,128)}', space=vmem, size = 0x10000, scoped, tag = 'scratch operand']
  #allocation4 [shape = 'f32[128,128]{1,0:T(8,128)}', space=vmem, size = 0x10000, scoped, tag = 'scratch operand']
  %s0 = inlined_call_operand.vmem [shape: f32[384,2], index: 0, kind: input, shape index: {}]
  %s1 = inlined_call_operand.vmem [shape: s32[384,1], index: 1, kind: input, shape index: {}]
  %s2 = inlined_call_operand.vmem [shape: s32[384,1], index: 2, kind: input, shape index: {}]
  %s3 = inlined_call_operand.vmem [shape: s32[1,384], index: 3, kind: input, shape index: {}]
  %s4 = inlined_call_operand.vmem [shape: f32[128,128], index: 4, kind: input, shape index: {}]
  %s5 = inlined_call_operand.vmem [shape: f32[128,128], index: 5, kind: input, shape index: {}]
  %s6 = inlined_call_operand.vmem [shape: f32[2,128], index: 6, kind: input, shape index: {}]
  %s7 = inlined_call_operand.vmem [shape: f32[1,128], index: 7, kind: input, shape index: {}]
  %s8 = inlined_call_operand.vmem [shape: f32[128,128], index: 8, kind: input, shape index: {}]
  %s9 = inlined_call_operand.hbm [shape: f32[1,128], index: 9, kind: input, shape index: {}]
  %s10 = inlined_call_operand.vmem [shape: f32[128,128], index: 10, kind: input, shape index: {}]
  %s11 = inlined_call_operand.hbm [shape: f32[1,128], index: 11, kind: input, shape index: {}]
  %s12 = inlined_call_operand.vmem [shape: f32[128,128], index: 12, kind: input, shape index: {}]
  %s13 = inlined_call_operand.vmem [shape: f32[1,128], index: 13, kind: input, shape index: {}]
  %s14 = inlined_call_operand.vmem [shape: f32[128,128], index: 14, kind: input, shape index: {}]
  %s15 = inlined_call_operand.vmem [shape: f32[128,128], index: 15, kind: input, shape index: {}]
  %s16 = inlined_call_operand.vmem [shape: f32[1,128], index: 16, kind: input, shape index: {}]
  %s17 = inlined_call_operand.vmem [shape: f32[128,128], index: 17, kind: input, shape index: {}]
  %s18 = inlined_call_operand.vmem [shape: f32[1,128], index: 18, kind: input, shape index: {}]
  %s19 = inlined_call_operand.vmem [shape: f32[128,128], index: 19, kind: input, shape index: {}]
  %s20 = inlined_call_operand.vmem [shape: f32[1,128], index: 20, kind: input, shape index: {}]
  %s21 = inlined_call_operand.hbm [shape: f32[128,128], index: 21, kind: input, shape index: {}]
  %s22 = inlined_call_operand.vmem [shape: f32[1,128], index: 22, kind: input, shape index: {}]
  %s23 = inlined_call_operand.hbm [shape: f32[128,128], index: 23, kind: output, shape index: {}]
  %s24 = sld [smem:[#allocation0]]
  $region153: #{tpu_custom_call.1} parent=0
    _
  %s26 = ssub.s32 1, %s24
  %s27 = scalar_select 0, %s26, %s24
  $region1: #{tpu_custom_call.1} parent=0
    #allocation5 [shape = 'u8[512]{0}', space=vmem, size = 0x400, scoped, tag = 'input window, operand 9, single buffered']
    #allocation6 [shape = 's32[2]{0}', space=sflag, size = 0x8, scoped, tag = 'scoped memory for tpu_custom_call.1']
    #allocation7 [shape = 's32[2]{0}', space=sflag, size = 0x8, scoped, tag = 'scoped memory for tpu_custom_call.1']
    #allocation8 [shape = 'u8[512]{0}', space=vmem, size = 0x400, scoped, tag = 'input window, operand 11, single buffered']
    #allocation9 [shape = 's32[1]{0}', space=sflag, size = 0x4, scoped, tag = 'scoped memory for tpu_custom_call.1']
    #allocation10 [shape = 'u8[65536]{0}', space=vmem, size = 0x10000, scoped, tag = 'input window, operand 21, single buffered']
    #allocation11 [shape = 'u8[65536]{0}', space=vmem, size = 0x10000, scoped, tag = 'output window, operand 0, single buffered']
    %28 = vsyncpa [#allocation6], 0
    %29 = vsyncpa [#allocation9], 0
    %30 = vsyncpa [#allocation7], 0
    loop: start=0, step=1, limit=8
    $region2: #{tpu_custom_call.1} parent=1 // loop_pre_header
      _
    $region3: #{tpu_custom_call.1} parent=1 // loop_header
      %s32 = sphi 0, %s36
      %p33 = scmp.ge.s32.totalorder %s32, 8
      %s39 = sphi 0, %s51
      %s40 = sphi 0, %s47
      %s41 = sphi 0, %s39
      %s42 = sphi 0, %s40
      %s43 = sphi 0, %s41
      %s44 = sphi 0, %s42
      %s54 = sphi 0, %s56
      %s57 = sphi 0, %s54
      %s58 = sphi 0, %s57
      %s74 = sphi 0, %s58
      %s80 = sphi 0, %s82
      %s83 = sphi 0, %s80
      %s84 = sphi 0, %s83
      %s100 = sphi 0, %s84
      %s106 = sphi 0, %s108
      %s109 = sphi 0, %s106
      %s110 = sphi 0, %s109
      %s126 = sphi 0, %s110
      %s132 = sphi 0, %s134
      %s135 = sphi 0, %s132
      %s136 = sphi 0, %s135
      %s152 = sphi 0, %s136
      %s156 = sphi 0, %s156
      %s158 = sphi 0, %s156
      %s159 = sphi 0, %s158
      %s173 = sphi 0, %s159
      %s177 = sphi 0, %s177
      %s179 = sphi 0, %s177
      %s180 = sphi 0, %s179
      %s194 = sphi 0, %s180
      %s198 = sphi 0, %s198
      %s200 = sphi 0, %s198
      %s201 = sphi 0, %s200
      %s215 = sphi 0, %s201
      %s219 = sphi 0, %s219
      %s221 = sphi 0, %s219
      %s222 = sphi 0, %s221
      %s236 = sphi 0, %s222
      %s240 = sphi 0, %s240
      %s242 = sphi 0, %s240
      %s243 = sphi 0, %s242
      %s257 = sphi 0, %s243
      %s261 = sphi 0, %s261
      %s263 = sphi 0, %s261
      %s264 = sphi 0, %s263
      %s278 = sphi 0, %s264
      %s282 = sphi 0, %s282
      %s284 = sphi 0, %s282
      %s285 = sphi 0, %s284
      %s299 = sphi 0, %s285
      %s303 = sphi 0, %s303
      %s305 = sphi 0, %s303
      %s306 = sphi 0, %s305
      %s320 = sphi 0, %s306
      %s324 = sphi 0, %s324
      %s326 = sphi 0, %s324
      %s327 = sphi 0, %s326
      %s341 = sphi 0, %s327
      %s345 = sphi 0, %s345
      %s347 = sphi 0, %s345
      %s348 = sphi 0, %s347
      %s362 = sphi 0, %s348
      %s366 = sphi 0, %s366
      %s368 = sphi 0, %s366
      %s369 = sphi 0, %s368
      %s383 = sphi 0, %s369
      %s387 = sphi 0, %s387
      %s389 = sphi 0, %s387
      %s390 = sphi 0, %s389
      %s404 = sphi 0, %s390
      %s408 = sphi 0, %s408
      %s410 = sphi 0, %s408
      %s411 = sphi 0, %s410
      %s425 = sphi 0, %s411
      %s429 = sphi 0, %s429
      %s431 = sphi 0, %s429
      %s432 = sphi 0, %s431
      %s446 = sphi 0, %s432
      %s450 = sphi 0, %s450
      %s452 = sphi 0, %s450
      %s453 = sphi 0, %s452
      %s467 = sphi 0, %s453
      %s471 = sphi 0, %s471
      %s473 = sphi 0, %s471
      %s474 = sphi 0, %s473
      %s488 = sphi 0, %s474
      %s492 = sphi 0, %s492
      %s494 = sphi 0, %s492
      %s495 = sphi 0, %s494
      %s509 = sphi 0, %s495
      %s513 = sphi 0, %s513
      %s515 = sphi 0, %s513
      %s516 = sphi 0, %s515
      %s530 = sphi 0, %s516
      %s534 = sphi 0, %s534
      %s536 = sphi 0, %s534
      %s537 = sphi 0, %s536
      %s551 = sphi 0, %s537
      %s555 = sphi 0, %s555
      %s557 = sphi 0, %s555
      %s558 = sphi 0, %s557
      %s572 = sphi 0, %s558
    $region4: #{tpu_custom_call.1} parent=1 // loop_header_branch
      %35 = sbr.rel (%p33) target = $region8
    $region5: #{tpu_custom_call.1} parent=1 // loop_body
      %s37 = ssub.s32 %s32, 1
      %s38 = ssub.s32 %s32, 2
      %s45 = sadd.s32 1, %s40
      %p46 = scmp.ge.s32.totalorder %s45, 3
      %s47 = scalar_select %p46, 0, %s45
      %s48 = sadd.s32 1, %s39
      %s49 = scalar_select %p46, %s48, %s39
      %p50 = scmp.ge.s32.totalorder %s49, 2
      %s51 = scalar_select %p50, 0, %s49
      %s52 = ssub.s32 %s40, %s47
      %p53 = scmp.eq.s32.totalorder %s52, 0
      %s55 = sadd.s32 %s54, 1
      %s56 = scalar_select %p53, %s54, %s55
      %p59 = pneg %p53
      %p60 = scmp.eq.s32.totalorder %s32, 5
      %p61 = por %p59, %p60
      %p62 = scmp.ne.s32.totalorder %s54, %s57
      %p63 = scmp.eq.s32.totalorder %s32, 0
      %p64 = por %p62, %p63
      %p65 = scmp.ne.s32.totalorder %s54, %s57
      %p66 = scmp.eq.s32.totalorder %s37, 5
      %p67 = por %p65, %p66
      %p68 = scmp.ne.s32.totalorder %s57, %s58
      %p69 = scmp.eq.s32.totalorder %s37, 0
      %p70 = por %p68, %p69
      %p71 = scmp.ne.s32.totalorder %s57, %s58
      %p72 = scmp.eq.s32.totalorder %s38, 5
      %p73 = por %p71, %p72
      %p75 = scmp.ne.s32.totalorder %s58, %s74
      %p76 = scmp.eq.s32.totalorder %s38, 0
      %p77 = por %p75, %p76
      %s78 = ssub.s32 %s40, %s47
      %p79 = scmp.eq.s32.totalorder %s78, 0
      %s81 = sadd.s32 %s80, 1
      %s82 = scalar_select %p79, %s80, %s81
      %p85 = pneg %p79
      %p86 = scmp.eq.s32.totalorder %s32, 5
      %p87 = por %p85, %p86
      %p88 = scmp.ne.s32.totalorder %s80, %s83
      %p89 = scmp.eq.s32.totalorder %s32, 0
      %p90 = por %p88, %p89
      %p91 = scmp.ne.s32.totalorder %s80, %s83
      %p92 = scmp.eq.s32.totalorder %s37, 5
      %p93 = por %p91, %p92
      %p94 = scmp.ne.s32.totalorder %s83, %s84
      %p95 = scmp.eq.s32.totalorder %s37, 0
      %p96 = por %p94, %p95
      %p97 = scmp.ne.s32.totalorder %s83, %s84
      %p98 = scmp.eq.s32.totalorder %s38, 5
      %p99 = por %p97, %p98
      %p101 = scmp.ne.s32.totalorder %s84, %s100
      %p102 = scmp.eq.s32.totalorder %s38, 0
      %p103 = por %p101, %p102
      %s104 = ssub.s32 %s40, %s47
      %p105 = scmp.eq.s32.totalorder %s104, 0
      %s107 = sadd.s32 %s106, 1
      %s108 = scalar_select %p105, %s106, %s107
      %p111 = pneg %p105
      %p112 = scmp.eq.s32.totalorder %s32, 5
      %p113 = por %p111, %p112
      %p114 = scmp.ne.s32.totalorder %s106, %s109
      %p115 = scmp.eq.s32.totalorder %s32, 0
      %p116 = por %p114, %p115
      %p117 = scmp.ne.s32.totalorder %s106, %s109
      %p118 = scmp.eq.s32.totalorder %s37, 5
      %p119 = por %p117, %p118
      %p120 = scmp.ne.s32.totalorder %s109, %s110
      %p121 = scmp.eq.s32.totalorder %s37, 0
      %p122 = por %p120, %p121
      %p123 = scmp.ne.s32.totalorder %s109, %s110
      %p124 = scmp.eq.s32.totalorder %s38, 5
      %p125 = por %p123, %p124
      %p127 = scmp.ne.s32.totalorder %s110, %s126
      %p128 = scmp.eq.s32.totalorder %s38, 0
      %p129 = por %p127, %p128
      %s130 = ssub.s32 %s40, %s47
      %p131 = scmp.eq.s32.totalorder %s130, 0
      %s133 = sadd.s32 %s132, 1
      %s134 = scalar_select %p131, %s132, %s133
      %p137 = pneg %p131
      %p138 = scmp.eq.s32.totalorder %s32, 5
      %p139 = por %p137, %p138
      %p140 = scmp.ne.s32.totalorder %s132, %s135
      %p141 = scmp.eq.s32.totalorder %s32, 0
      %p142 = por %p140, %p141
      %p143 = scmp.ne.s32.totalorder %s132, %s135
      %p144 = scmp.eq.s32.totalorder %s37, 5
      %p145 = por %p143, %p144
      %p146 = scmp.ne.s32.totalorder %s135, %s136
      %p147 = scmp.eq.s32.totalorder %s37, 0
      %p148 = por %p146, %p147
      %p149 = scmp.ne.s32.totalorder %s135, %s136
      %p150 = scmp.eq.s32.totalorder %s38, 5
      %p151 = por %p149, %p150
      %p153 = scmp.ne.s32.totalorder %s136, %s152
      %p154 = scmp.eq.s32.totalorder %s38, 0
      %p155 = por %p153, %p154
      %s157 = sadd.s32 %s156, 1
      %p160 = scmp.eq.s32.totalorder %s32, 5
      %p161 = scmp.ne.s32.totalorder %s156, %s158
      %p162 = scmp.eq.s32.totalorder %s32, 0
      %p163 = por %p161, %p162
      %p164 = scmp.ne.s32.totalorder %s156, %s158
      %p165 = scmp.eq.s32.totalorder %s37, 5
      %p166 = por %p164, %p165
      %p167 = scmp.ne.s32.totalorder %s158, %s159
      %p168 = scmp.eq.s32.totalorder %s37, 0
      %p169 = por %p167, %p168
      %p170 = scmp.ne.s32.totalorder %s158, %s159
      %p171 = scmp.eq.s32.totalorder %s38, 5
      %p172 = por %p170, %p171
      %p174 = scmp.ne.s32.totalorder %s159, %s173
      %p175 = scmp.eq.s32.totalorder %s38, 0
      %p176 = por %p174, %p175
      %s178 = sadd.s32 %s177, 1
      %p181 = scmp.eq.s32.totalorder %s32, 5
      %p182 = scmp.ne.s32.totalorder %s177, %s179
      %p183 = scmp.eq.s32.totalorder %s32, 0
      %p184 = por %p182, %p183
      %p185 = scmp.ne.s32.totalorder %s177, %s179
      %p186 = scmp.eq.s32.totalorder %s37, 5
      %p187 = por %p185, %p186
      %p188 = scmp.ne.s32.totalorder %s179, %s180
      %p189 = scmp.eq.s32.totalorder %s37, 0
      %p190 = por %p188, %p189
      %p191 = scmp.ne.s32.totalorder %s179, %s180
      %p192 = scmp.eq.s32.totalorder %s38, 5
      %p193 = por %p191, %p192
      %p195 = scmp.ne.s32.totalorder %s180, %s194
      %p196 = scmp.eq.s32.totalorder %s38, 0
      %p197 = por %p195, %p196
      %s199 = sadd.s32 %s198, 1
      %p202 = scmp.eq.s32.totalorder %s32, 5
      %p203 = scmp.ne.s32.totalorder %s198, %s200
      %p204 = scmp.eq.s32.totalorder %s32, 0
      %p205 = por %p203, %p204
      %p206 = scmp.ne.s32.totalorder %s198, %s200
      %p207 = scmp.eq.s32.totalorder %s37, 5
      %p208 = por %p206, %p207
      %p209 = scmp.ne.s32.totalorder %s200, %s201
      %p210 = scmp.eq.s32.totalorder %s37, 0
      %p211 = por %p209, %p210
      %p212 = scmp.ne.s32.totalorder %s200, %s201
      %p213 = scmp.eq.s32.totalorder %s38, 5
      %p214 = por %p212, %p213
      %p216 = scmp.ne.s32.totalorder %s201, %s215
      %p217 = scmp.eq.s32.totalorder %s38, 0
      %p218 = por %p216, %p217
      %s220 = sadd.s32 %s219, 1
      %p223 = scmp.eq.s32.totalorder %s32, 5
      %p224 = scmp.ne.s32.totalorder %s219, %s221
      %p225 = scmp.eq.s32.totalorder %s32, 0
      %p226 = por %p224, %p225
      %p227 = scmp.ne.s32.totalorder %s219, %s221
      %p228 = scmp.eq.s32.totalorder %s37, 5
      %p229 = por %p227, %p228
      %p230 = scmp.ne.s32.totalorder %s221, %s222
      %p231 = scmp.eq.s32.totalorder %s37, 0
      %p232 = por %p230, %p231
      %p233 = scmp.ne.s32.totalorder %s221, %s222
      %p234 = scmp.eq.s32.totalorder %s38, 5
      %p235 = por %p233, %p234
      %p237 = scmp.ne.s32.totalorder %s222, %s236
      %p238 = scmp.eq.s32.totalorder %s38, 0
      %p239 = por %p237, %p238
      %s241 = sadd.s32 %s240, 1
      %p244 = scmp.eq.s32.totalorder %s32, 5
      %p245 = scmp.ne.s32.totalorder %s240, %s242
      %p246 = scmp.eq.s32.totalorder %s32, 0
      %p247 = por %p245, %p246
      %p248 = scmp.ne.s32.totalorder %s240, %s242
      %p249 = scmp.eq.s32.totalorder %s37, 5
      %p250 = por %p248, %p249
      %p251 = scmp.ne.s32.totalorder %s242, %s243
      %p252 = scmp.eq.s32.totalorder %s37, 0
      %p253 = por %p251, %p252
      %p254 = scmp.ne.s32.totalorder %s242, %s243
      %p255 = scmp.eq.s32.totalorder %s38, 5
      %p256 = por %p254, %p255
      %p258 = scmp.ne.s32.totalorder %s243, %s257
      %p259 = scmp.eq.s32.totalorder %s38, 0
      %p260 = por %p258, %p259
      %s262 = sadd.s32 %s261, 1
      %p265 = scmp.eq.s32.totalorder %s32, 5
      %p266 = scmp.ne.s32.totalorder %s261, %s263
      %p267 = scmp.eq.s32.totalorder %s32, 0
      %p268 = por %p266, %p267
      %p269 = scmp.ne.s32.totalorder %s261, %s263
      %p270 = scmp.eq.s32.totalorder %s37, 5
      %p271 = por %p269, %p270
      %p272 = scmp.ne.s32.totalorder %s263, %s264
      %p273 = scmp.eq.s32.totalorder %s37, 0
      %p274 = por %p272, %p273
      %p275 = scmp.ne.s32.totalorder %s263, %s264
      %p276 = scmp.eq.s32.totalorder %s38, 5
      %p277 = por %p275, %p276
      %p279 = scmp.ne.s32.totalorder %s264, %s278
      %p280 = scmp.eq.s32.totalorder %s38, 0
      %p281 = por %p279, %p280
      %s283 = sadd.s32 %s282, 1
      %p286 = scmp.eq.s32.totalorder %s32, 5
      %p287 = scmp.ne.s32.totalorder %s282, %s284
      %p288 = scmp.eq.s32.totalorder %s32, 0
      %p289 = por %p287, %p288
      %p290 = scmp.ne.s32.totalorder %s282, %s284
      %p291 = scmp.eq.s32.totalorder %s37, 5
      %p292 = por %p290, %p291
      %p293 = scmp.ne.s32.totalorder %s284, %s285
      %p294 = scmp.eq.s32.totalorder %s37, 0
      %p295 = por %p293, %p294
      %p296 = scmp.ne.s32.totalorder %s284, %s285
      %p297 = scmp.eq.s32.totalorder %s38, 5
      %p298 = por %p296, %p297
      %p300 = scmp.ne.s32.totalorder %s285, %s299
      %p301 = scmp.eq.s32.totalorder %s38, 0
      %p302 = por %p300, %p301
      %s304 = sadd.s32 %s303, 1
      %p307 = scmp.eq.s32.totalorder %s32, 5
      %p308 = scmp.ne.s32.totalorder %s303, %s305
      %p309 = scmp.eq.s32.totalorder %s32, 0
      %p310 = por %p308, %p309
      %p311 = scmp.ne.s32.totalorder %s303, %s305
      %p312 = scmp.eq.s32.totalorder %s37, 5
      %p313 = por %p311, %p312
      %p314 = scmp.ne.s32.totalorder %s305, %s306
      %p315 = scmp.eq.s32.totalorder %s37, 0
      %p316 = por %p314, %p315
      %p317 = scmp.ne.s32.totalorder %s305, %s306
      %p318 = scmp.eq.s32.totalorder %s38, 5
      %p319 = por %p317, %p318
      %p321 = scmp.ne.s32.totalorder %s306, %s320
      %p322 = scmp.eq.s32.totalorder %s38, 0
      %p323 = por %p321, %p322
      %s325 = sadd.s32 %s324, 1
      %p328 = scmp.eq.s32.totalorder %s32, 5
      %p329 = scmp.ne.s32.totalorder %s324, %s326
      %p330 = scmp.eq.s32.totalorder %s32, 0
      %p331 = por %p329, %p330
      %p332 = scmp.ne.s32.totalorder %s324, %s326
      %p333 = scmp.eq.s32.totalorder %s37, 5
      %p334 = por %p332, %p333
      %p335 = scmp.ne.s32.totalorder %s326, %s327
      %p336 = scmp.eq.s32.totalorder %s37, 0
      %p337 = por %p335, %p336
      %p338 = scmp.ne.s32.totalorder %s326, %s327
      %p339 = scmp.eq.s32.totalorder %s38, 5
      %p340 = por %p338, %p339
      %p342 = scmp.ne.s32.totalorder %s327, %s341
      %p343 = scmp.eq.s32.totalorder %s38, 0
      %p344 = por %p342, %p343
      %s346 = sadd.s32 %s345, 1
      %p349 = scmp.eq.s32.totalorder %s32, 5
      %p350 = scmp.ne.s32.totalorder %s345, %s347
      %p351 = scmp.eq.s32.totalorder %s32, 0
      %p352 = por %p350, %p351
      %p353 = scmp.ne.s32.totalorder %s345, %s347
      %p354 = scmp.eq.s32.totalorder %s37, 5
      %p355 = por %p353, %p354
      %p356 = scmp.ne.s32.totalorder %s347, %s348
      %p357 = scmp.eq.s32.totalorder %s37, 0
      %p358 = por %p356, %p357
      %p359 = scmp.ne.s32.totalorder %s347, %s348
      %p360 = scmp.eq.s32.totalorder %s38, 5
      %p361 = por %p359, %p360
      %p363 = scmp.ne.s32.totalorder %s348, %s362
      %p364 = scmp.eq.s32.totalorder %s38, 0
      %p365 = por %p363, %p364
      %s367 = sadd.s32 %s366, 1
      %p370 = scmp.eq.s32.totalorder %s32, 5
      %p371 = scmp.ne.s32.totalorder %s366, %s368
      %p372 = scmp.eq.s32.totalorder %s32, 0
      %p373 = por %p371, %p372
      %p374 = scmp.ne.s32.totalorder %s366, %s368
      %p375 = scmp.eq.s32.totalorder %s37, 5
      %p376 = por %p374, %p375
      %p377 = scmp.ne.s32.totalorder %s368, %s369
      %p378 = scmp.eq.s32.totalorder %s37, 0
      %p379 = por %p377, %p378
      %p380 = scmp.ne.s32.totalorder %s368, %s369
      %p381 = scmp.eq.s32.totalorder %s38, 5
      %p382 = por %p380, %p381
      %p384 = scmp.ne.s32.totalorder %s369, %s383
      %p385 = scmp.eq.s32.totalorder %s38, 0
      %p386 = por %p384, %p385
      %s388 = sadd.s32 %s387, 1
      %p391 = scmp.eq.s32.totalorder %s32, 5
      %p392 = scmp.ne.s32.totalorder %s387, %s389
      %p393 = scmp.eq.s32.totalorder %s32, 0
      %p394 = por %p392, %p393
      %p395 = scmp.ne.s32.totalorder %s387, %s389
      %p396 = scmp.eq.s32.totalorder %s37, 5
      %p397 = por %p395, %p396
      %p398 = scmp.ne.s32.totalorder %s389, %s390
      %p399 = scmp.eq.s32.totalorder %s37, 0
      %p400 = por %p398, %p399
      %p401 = scmp.ne.s32.totalorder %s389, %s390
      %p402 = scmp.eq.s32.totalorder %s38, 5
      %p403 = por %p401, %p402
      %p405 = scmp.ne.s32.totalorder %s390, %s404
      %p406 = scmp.eq.s32.totalorder %s38, 0
      %p407 = por %p405, %p406
      %s409 = sadd.s32 %s408, 1
      %p412 = scmp.eq.s32.totalorder %s32, 5
      %p413 = scmp.ne.s32.totalorder %s408, %s410
      %p414 = scmp.eq.s32.totalorder %s32, 0
      %p415 = por %p413, %p414
      %p416 = scmp.ne.s32.totalorder %s408, %s410
      %p417 = scmp.eq.s32.totalorder %s37, 5
      %p418 = por %p416, %p417
      %p419 = scmp.ne.s32.totalorder %s410, %s411
      %p420 = scmp.eq.s32.totalorder %s37, 0
      %p421 = por %p419, %p420
      %p422 = scmp.ne.s32.totalorder %s410, %s411
      %p423 = scmp.eq.s32.totalorder %s38, 5
      %p424 = por %p422, %p423
      %p426 = scmp.ne.s32.totalorder %s411, %s425
      %p427 = scmp.eq.s32.totalorder %s38, 0
      %p428 = por %p426, %p427
      %s430 = sadd.s32 %s429, 1
      %p433 = scmp.eq.s32.totalorder %s32, 5
      %p434 = scmp.ne.s32.totalorder %s429, %s431
      %p435 = scmp.eq.s32.totalorder %s32, 0
      %p436 = por %p434, %p435
      %p437 = scmp.ne.s32.totalorder %s429, %s431
      %p438 = scmp.eq.s32.totalorder %s37, 5
      %p439 = por %p437, %p438
      %p440 = scmp.ne.s32.totalorder %s431, %s432
      %p441 = scmp.eq.s32.totalorder %s37, 0
      %p442 = por %p440, %p441
      %p443 = scmp.ne.s32.totalorder %s431, %s432
      %p444 = scmp.eq.s32.totalorder %s38, 5
      %p445 = por %p443, %p444
      %p447 = scmp.ne.s32.totalorder %s432, %s446
      %p448 = scmp.eq.s32.totalorder %s38, 0
      %p449 = por %p447, %p448
      %s451 = sadd.s32 %s450, 1
      %p454 = scmp.eq.s32.totalorder %s32, 5
      %p455 = scmp.ne.s32.totalorder %s450, %s452
      %p456 = scmp.eq.s32.totalorder %s32, 0
      %p457 = por %p455, %p456
      %p458 = scmp.ne.s32.totalorder %s450, %s452
      %p459 = scmp.eq.s32.totalorder %s37, 5
      %p460 = por %p458, %p459
      %p461 = scmp.ne.s32.totalorder %s452, %s453
      %p462 = scmp.eq.s32.totalorder %s37, 0
      %p463 = por %p461, %p462
      %p464 = scmp.ne.s32.totalorder %s452, %s453
      %p465 = scmp.eq.s32.totalorder %s38, 5
      %p466 = por %p464, %p465
      %p468 = scmp.ne.s32.totalorder %s453, %s467
      %p469 = scmp.eq.s32.totalorder %s38, 0
      %p470 = por %p468, %p469
      %s472 = sadd.s32 %s471, 1
      %p475 = scmp.eq.s32.totalorder %s32, 5
      %p476 = scmp.ne.s32.totalorder %s471, %s473
      %p477 = scmp.eq.s32.totalorder %s32, 0
      %p478 = por %p476, %p477
      %p479 = scmp.ne.s32.totalorder %s471, %s473
      %p480 = scmp.eq.s32.totalorder %s37, 5
      %p481 = por %p479, %p480
      %p482 = scmp.ne.s32.totalorder %s473, %s474
      %p483 = scmp.eq.s32.totalorder %s37, 0
      %p484 = por %p482, %p483
      %p485 = scmp.ne.s32.totalorder %s473, %s474
      %p486 = scmp.eq.s32.totalorder %s38, 5
      %p487 = por %p485, %p486
      %p489 = scmp.ne.s32.totalorder %s474, %s488
      %p490 = scmp.eq.s32.totalorder %s38, 0
      %p491 = por %p489, %p490
      %s493 = sadd.s32 %s492, 1
      %p496 = scmp.eq.s32.totalorder %s32, 5
      %p497 = scmp.ne.s32.totalorder %s492, %s494
      %p498 = scmp.eq.s32.totalorder %s32, 0
      %p499 = por %p497, %p498
      %p500 = scmp.ne.s32.totalorder %s492, %s494
      %p501 = scmp.eq.s32.totalorder %s37, 5
      %p502 = por %p500, %p501
      %p503 = scmp.ne.s32.totalorder %s494, %s495
      %p504 = scmp.eq.s32.totalorder %s37, 0
      %p505 = por %p503, %p504
      %p506 = scmp.ne.s32.totalorder %s494, %s495
      %p507 = scmp.eq.s32.totalorder %s38, 5
      %p508 = por %p506, %p507
      %p510 = scmp.ne.s32.totalorder %s495, %s509
      %p511 = scmp.eq.s32.totalorder %s38, 0
      %p512 = por %p510, %p511
      %s514 = sadd.s32 %s513, 1
      %p517 = scmp.eq.s32.totalorder %s32, 5
      %p518 = scmp.ne.s32.totalorder %s513, %s515
      %p519 = scmp.eq.s32.totalorder %s32, 0
      %p520 = por %p518, %p519
      %p521 = scmp.ne.s32.totalorder %s513, %s515
      %p522 = scmp.eq.s32.totalorder %s37, 5
      %p523 = por %p521, %p522
      %p524 = scmp.ne.s32.totalorder %s515, %s516
      %p525 = scmp.eq.s32.totalorder %s37, 0
      %p526 = por %p524, %p525
      %p527 = scmp.ne.s32.totalorder %s515, %s516
      %p528 = scmp.eq.s32.totalorder %s38, 5
      %p529 = por %p527, %p528
      %p531 = scmp.ne.s32.totalorder %s516, %s530
      %p532 = scmp.eq.s32.totalorder %s38, 0
      %p533 = por %p531, %p532
      %s535 = sadd.s32 %s534, 1
      %p538 = scmp.eq.s32.totalorder %s32, 5
      %p539 = scmp.ne.s32.totalorder %s534, %s536
      %p540 = scmp.eq.s32.totalorder %s32, 0
      %p541 = por %p539, %p540
      %p542 = scmp.ne.s32.totalorder %s534, %s536
      %p543 = scmp.eq.s32.totalorder %s37, 5
      %p544 = por %p542, %p543
      %p545 = scmp.ne.s32.totalorder %s536, %s537
      %p546 = scmp.eq.s32.totalorder %s37, 0
      %p547 = por %p545, %p546
      %p548 = scmp.ne.s32.totalorder %s536, %s537
      %p549 = scmp.eq.s32.totalorder %s38, 5
      %p550 = por %p548, %p549
      %p552 = scmp.ne.s32.totalorder %s537, %s551
      %p553 = scmp.eq.s32.totalorder %s38, 0
      %p554 = por %p552, %p553
      %s556 = sadd.s32 %s555, 1
      %p559 = scmp.eq.s32.totalorder %s32, 5
      %p560 = scmp.ne.s32.totalorder %s555, %s557
      %p561 = scmp.eq.s32.totalorder %s32, 0
      %p562 = por %p560, %p561
      %p563 = scmp.ne.s32.totalorder %s555, %s557
      %p564 = scmp.eq.s32.totalorder %s37, 5
      %p565 = por %p563, %p564
      %p566 = scmp.ne.s32.totalorder %s557, %s558
      %p567 = scmp.eq.s32.totalorder %s37, 0
      %p568 = por %p566, %p567
      %p569 = scmp.ne.s32.totalorder %s557, %s558
      %p570 = scmp.eq.s32.totalorder %s38, 5
      %p571 = por %p569, %p570
      %p573 = scmp.ne.s32.totalorder %s558, %s572
      %p574 = scmp.eq.s32.totalorder %s38, 0
      %p575 = por %p573, %p574
      %p576 = scmp.le.s32.totalorder 1, %s32
      %p577 = scmp.lt.s32.totalorder %s32, 7
      %p578 = pnand %p576, %p577
      %p579 = pneg %p578
      // Predicated region
      $region9: #{tpu_custom_call.1} parent=5 // pred_check
        _
      $region10: #{tpu_custom_call.1} parent=5 // pred_check_branch
        %581 = sbr.rel (%p578) target = $region12
      $region11: #{tpu_custom_call.1} parent=5 // pred_region
        %s582 = ssub.s32 %s32, 1
        // Predicated region
        $region13: #{tpu_custom_call.1} parent=11 // pred_check
          %p583 = pneg %p169
        $region14: #{tpu_custom_call.1} parent=11 // pred_check_branch
          %585 = sbr.rel (%p583) target = $region16
        $region15: #{tpu_custom_call.1} parent=11 // pred_region
          _
        $region16: #{tpu_custom_call.1} parent=11 // pred_fallthru
          _
        // Predicated region
        $region17: #{tpu_custom_call.1} parent=11 // pred_check
          %p586 = pneg %p190
        $region18: #{tpu_custom_call.1} parent=11 // pred_check_branch
          %588 = sbr.rel (%p586) target = $region20
        $region19: #{tpu_custom_call.1} parent=11 // pred_region
          _
        $region20: #{tpu_custom_call.1} parent=11 // pred_fallthru
          _
        // Predicated region
        $region21: #{tpu_custom_call.1} parent=11 // pred_check
          %p589 = pneg %p211
        $region22: #{tpu_custom_call.1} parent=11 // pred_check_branch
          %591 = sbr.rel (%p589) target = $region24
        $region23: #{tpu_custom_call.1} parent=11 // pred_region
          _
        $region24: #{tpu_custom_call.1} parent=11 // pred_fallthru
          _
        // Predicated region
        $region25: #{tpu_custom_call.1} parent=11 // pred_check
          %p592 = pneg %p232
        $region26: #{tpu_custom_call.1} parent=11 // pred_check_branch
          %594 = sbr.rel (%p592) target = $region28
        $region27: #{tpu_custom_call.1} parent=11 // pred_region
          _
        $region28: #{tpu_custom_call.1} parent=11 // pred_fallthru
          _
        // Predicated region
        $region29: #{tpu_custom_call.1} parent=11 // pred_check
          %p595 = pneg %p253
        $region30: #{tpu_custom_call.1} parent=11 // pred_check_branch
          %597 = sbr.rel (%p595) target = $region32
        $region31: #{tpu_custom_call.1} parent=11 // pred_region
          _
        $region32: #{tpu_custom_call.1} parent=11 // pred_fallthru
          _
        // Predicated region
        $region33: #{tpu_custom_call.1} parent=11 // pred_check
          %p598 = pneg %p274
        $region34: #{tpu_custom_call.1} parent=11 // pred_check_branch
          %600 = sbr.rel (%p598) target = $region36
        $region35: #{tpu_custom_call.1} parent=11 // pred_region
          %602 = vsyncadd [#allocation6], 0
          %s604 = sshll.u32 %s9, 4
          %s605 = int_to_ptr.hbm [resolvable:$true] %s604
          %s606 = sshll.u32 [#allocation5], 4
          %s607 = int_to_ptr.vmem [resolvable:$true] %s606
          %609 = dma.hbm_to_vmem [thread:$0]  %s605, 16, %s607, [#allocation6]
        $region36: #{tpu_custom_call.1} parent=11 // pred_fallthru
          _
        // Predicated region
        $region37: #{tpu_custom_call.1} parent=11 // pred_check
          %p610 = pneg %p295
        $region38: #{tpu_custom_call.1} parent=11 // pred_check_branch
          %612 = sbr.rel (%p610) target = $region40
        $region39: #{tpu_custom_call.1} parent=11 // pred_region
          _
        $region40: #{tpu_custom_call.1} parent=11 // pred_fallthru
          _
        // Predicated region
        $region41: #{tpu_custom_call.1} parent=11 // pred_check
          %p613 = pneg %p316
        $region42: #{tpu_custom_call.1} parent=11 // pred_check_branch
          %615 = sbr.rel (%p613) target = $region44
        $region43: #{tpu_custom_call.1} parent=11 // pred_region
          %617 = vsyncadd [#allocation9], 0
          %s619 = sshll.u32 %s11, 4
          %s620 = int_to_ptr.hbm [resolvable:$true] %s619
          %s621 = sshll.u32 [#allocation8], 4
          %s622 = int_to_ptr.vmem [resolvable:$true] %s621
          %624 = dma.hbm_to_vmem [thread:$0]  %s620, 16, %s622, [#allocation9]
        $region44: #{tpu_custom_call.1} parent=11 // pred_fallthru
          _
        // Predicated region
        $region45: #{tpu_custom_call.1} parent=11 // pred_check
          %p625 = pneg %p337
        $region46: #{tpu_custom_call.1} parent=11 // pred_check_branch
          %627 = sbr.rel (%p625) target = $region48
        $region47: #{tpu_custom_call.1} parent=11 // pred_region
          _
        $region48: #{tpu_custom_call.1} parent=11 // pred_fallthru
          _
        // Predicated region
        $region49: #{tpu_custom_call.1} parent=11 // pred_check
          %p628 = pneg %p358
        $region50: #{tpu_custom_call.1} parent=11 // pred_check_branch
          %630 = sbr.rel (%p628) target = $region52
        $region51: #{tpu_custom_call.1} parent=11 // pred_region
          _
        $region52: #{tpu_custom_call.1} parent=11 // pred_fallthru
          _
        // Predicated region
        $region53: #{tpu_custom_call.1} parent=11 // pred_check
          %p631 = pneg %p379
        $region54: #{tpu_custom_call.1} parent=11 // pred_check_branch
          %633 = sbr.rel (%p631) target = $region56
        $region55: #{tpu_custom_call.1} parent=11 // pred_region
          _
        $region56: #{tpu_custom_call.1} parent=11 // pred_fallthru
          _
        // Predicated region
        $region57: #{tpu_custom_call.1} parent=11 // pred_check
          %p634 = pneg %p400
        $region58: #{tpu_custom_call.1} parent=11 // pred_check_branch
          %636 = sbr.rel (%p634) target = $region60
        $region59: #{tpu_custom_call.1} parent=11 // pred_region
          _
        $region60: #{tpu_custom_call.1} parent=11 // pred_fallthru
          _
        // Predicated region
        $region61: #{tpu_custom_call.1} parent=11 // pred_check
          %p637 = pneg %p421
        $region62: #{tpu_custom_call.1} parent=11 // pred_check_branch
          %639 = sbr.rel (%p637) target = $region64
        $region63: #{tpu_custom_call.1} parent=11 // pred_region
          _
        $region64: #{tpu_custom_call.1} parent=11 // pred_fallthru
          _
        // Predicated region
        $region65: #{tpu_custom_call.1} parent=11 // pred_check
          %p640 = pneg %p442
        $region66: #{tpu_custom_call.1} parent=11 // pred_check_branch
          %642 = sbr.rel (%p640) target = $region68
        $region67: #{tpu_custom_call.1} parent=11 // pred_region
          _
        $region68: #{tpu_custom_call.1} parent=11 // pred_fallthru
          _
        // Predicated region
        $region69: #{tpu_custom_call.1} parent=11 // pred_check
          %p643 = pneg %p463
        $region70: #{tpu_custom_call.1} parent=11 // pred_check_branch
          %645 = sbr.rel (%p643) target = $region72
        $region71: #{tpu_custom_call.1} parent=11 // pred_region
          _
        $region72: #{tpu_custom_call.1} parent=11 // pred_fallthru
          _
        // Predicated region
        $region73: #{tpu_custom_call.1} parent=11 // pred_check
          %p646 = pneg %p484
        $region74: #{tpu_custom_call.1} parent=11 // pred_check_branch
          %648 = sbr.rel (%p646) target = $region76
        $region75: #{tpu_custom_call.1} parent=11 // pred_region
          _
        $region76: #{tpu_custom_call.1} parent=11 // pred_fallthru
          _
        // Predicated region
        $region77: #{tpu_custom_call.1} parent=11 // pred_check
          %p649 = pneg %p505
        $region78: #{tpu_custom_call.1} parent=11 // pred_check_branch
          %651 = sbr.rel (%p649) target = $region80
        $region79: #{tpu_custom_call.1} parent=11 // pred_region
          _
        $region80: #{tpu_custom_call.1} parent=11 // pred_fallthru
          _
        // Predicated region
        $region81: #{tpu_custom_call.1} parent=11 // pred_check
          %p652 = pneg %p526
        $region82: #{tpu_custom_call.1} parent=11 // pred_check_branch
          %654 = sbr.rel (%p652) target = $region84
        $region83: #{tpu_custom_call.1} parent=11 // pred_region
          %656 = vsyncadd [#allocation9], 0
          %s657 = sshll.u32 %s21, 4
          %s658 = int_to_ptr.hbm [resolvable:$true] %s657
          %s659 = sshll.u32 [#allocation10], 4
          %s660 = int_to_ptr.vmem [resolvable:$true] %s659
          %665 = dma.hbm_to_vmem [thread:$0]  %s658, 2048, %s660, [#allocation9], 128, 128, 8
        $region84: #{tpu_custom_call.1} parent=11 // pred_fallthru
          _
        // Predicated region
        $region85: #{tpu_custom_call.1} parent=11 // pred_check
          %p666 = pneg %p547
        $region86: #{tpu_custom_call.1} parent=11 // pred_check_branch
          %668 = sbr.rel (%p666) target = $region88
        $region87: #{tpu_custom_call.1} parent=11 // pred_region
          _
        $region88: #{tpu_custom_call.1} parent=11 // pred_fallthru
          _
      $region12: #{tpu_custom_call.1} parent=5 // pred_fallthru
        _
      %p669 = scmp.lt.s32.totalorder %s32, 6
      // Predicated region
      $region89: #{tpu_custom_call.1} parent=5 // pred_check
        %p670 = pneg %p669
      $region90: #{tpu_custom_call.1} parent=5 // pred_check_branch
        %672 = sbr.rel (%p670) target = $region92
      $region91: #{tpu_custom_call.1} parent=5 // pred_region
        // Predicated region
        $region93: #{tpu_custom_call.1} parent=91 // pred_check
          %p673 = pneg %p64
        $region94: #{tpu_custom_call.1} parent=91 // pred_check_branch
          %675 = sbr.rel (%p673) target = $region96
        $region95: #{tpu_custom_call.1} parent=91 // pred_region
          %s676 = smul.u32 16, %s40
          %p677 = scmp.lt.s32.totalorder %s676, 47
          %s678 = scalar_select %p677, %s676, 47
          %s679 = smul.addr %s678, 8
          %s680 = scalar_lea.vmem %s0, %s679
          %s681 = smul.u32 16, %s40
        $region96: #{tpu_custom_call.1} parent=91 // pred_fallthru
          _
        // Predicated region
        $region97: #{tpu_custom_call.1} parent=91 // pred_check
          %p682 = pneg %p90
        $region98: #{tpu_custom_call.1} parent=91 // pred_check_branch
          %684 = sbr.rel (%p682) target = $region100
        $region99: #{tpu_custom_call.1} parent=91 // pred_region
          %s685 = smul.u32 16, %s40
          %p686 = scmp.lt.s32.totalorder %s685, 47
          %s687 = scalar_select %p686, %s685, 47
          %s688 = smul.addr %s687, 8
          %s689 = scalar_lea.vmem %s1, %s688
          %s690 = smul.u32 16, %s40
        $region100: #{tpu_custom_call.1} parent=91 // pred_fallthru
          _
        // Predicated region
        $region101: #{tpu_custom_call.1} parent=91 // pred_check
          %p691 = pneg %p116
        $region102: #{tpu_custom_call.1} parent=91 // pred_check_branch
          %693 = sbr.rel (%p691) target = $region104
        $region103: #{tpu_custom_call.1} parent=91 // pred_region
          %s694 = smul.u32 16, %s40
          %p695 = scmp.lt.s32.totalorder %s694, 47
          %s696 = scalar_select %p695, %s694, 47
          %s697 = smul.addr %s696, 8
          %s698 = scalar_lea.vmem %s2, %s697
          %s699 = smul.u32 16, %s40
        $region104: #{tpu_custom_call.1} parent=91 // pred_fallthru
          _
        // Predicated region
        $region105: #{tpu_custom_call.1} parent=91 // pred_check
          %p700 = pneg %p142
        $region106: #{tpu_custom_call.1} parent=91 // pred_check_branch
          %702 = sbr.rel (%p700) target = $region108
        $region107: #{tpu_custom_call.1} parent=91 // pred_region
          %p703 = scmp.lt.s32.totalorder %s40, 2
          %s704 = scalar_select %p703, %s40, 2
          %s705 = scalar_lea.vmem %s3, %s704
        $region108: #{tpu_custom_call.1} parent=91 // pred_fallthru
          _
      $region92: #{tpu_custom_call.1} parent=5 // pred_fallthru
        _
      %p706 = scmp.le.s32.totalorder 1, %s32
      %p707 = scmp.lt.s32.totalorder %s32, 7
      %p708 = pnand %p706, %p707
      %p709 = pneg %p708
      // Predicated region
      $region109: #{tpu_custom_call.1} parent=5 // pred_check
        _
      $region110: #{tpu_custom_call.1} parent=5 // pred_check_branch
        %711 = sbr.rel (%p708) target = $region112
      $region111: #{tpu_custom_call.1} parent=5 // pred_region
        %s712 = ssub.s32 %s32, 1
        // Predicated region
        $region113: #{tpu_custom_call.1} parent=111 // pred_check
          %p713 = pneg %p274
        $region114: #{tpu_custom_call.1} parent=111 // pred_check_branch
          %715 = sbr.rel (%p713) target = $region116
        $region115: #{tpu_custom_call.1} parent=111 // pred_region
          %717 = dma.done [#allocation6], 16
        $region116: #{tpu_custom_call.1} parent=111 // pred_fallthru
          _
        // Predicated region
        $region117: #{tpu_custom_call.1} parent=111 // pred_check
          %p718 = pneg %p316
        $region118: #{tpu_custom_call.1} parent=111 // pred_check_branch
          %720 = sbr.rel (%p718) target = $region120
        $region119: #{tpu_custom_call.1} parent=111 // pred_region
          %722 = dma.done [#allocation9], 16
        $region120: #{tpu_custom_call.1} parent=111 // pred_fallthru
          _
        // Predicated region
        $region121: #{tpu_custom_call.1} parent=111 // pred_check
          %p723 = pneg %p526
        $region122: #{tpu_custom_call.1} parent=111 // pred_check_branch
          %725 = sbr.rel (%p723) target = $region124
        $region123: #{tpu_custom_call.1} parent=111 // pred_region
          %727 = dma.done [#allocation9], 2048
        $region124: #{tpu_custom_call.1} parent=111 // pred_fallthru
          _
        %s728 = smul.u32 16, %s42
        %p729 = scmp.lt.s32.totalorder %s728, 47
        %s730 = scalar_select %p729, %s728, 47
        %s731 = smul.addr %s730, 8
        %s732 = scalar_lea.vmem %s0, %s731
        %p733 = pneg %p70
        %p734 = pneg %p67
        %s735 = smul.u32 16, %s42
        %p736 = scmp.lt.s32.totalorder %s735, 47
        %s737 = scalar_select %p736, %s735, 47
        %s738 = smul.addr %s737, 8
        %s739 = scalar_lea.vmem %s1, %s738
        %p740 = pneg %p96
        %p741 = pneg %p93
        %s742 = smul.u32 16, %s42
        %p743 = scmp.lt.s32.totalorder %s742, 47
        %s744 = scalar_select %p743, %s742, 47
        %s745 = smul.addr %s744, 8
        %s746 = scalar_lea.vmem %s2, %s745
        %p747 = pneg %p122
        %p748 = pneg %p119
        %p749 = scmp.lt.s32.totalorder %s42, 2
        %s750 = scalar_select %p749, %s42, 2
        %s751 = scalar_lea.vmem %s3, %s750
        %p752 = pneg %p148
        %p753 = pneg %p145
        %p754 = pneg %p169
        %p755 = pneg %p166
        %p756 = pneg %p190
        %p757 = pneg %p187
        %p758 = pneg %p211
        %p759 = pneg %p208
        %p760 = pneg %p232
        %p761 = pneg %p229
        %p762 = pneg %p253
        %p763 = pneg %p250
        %p764 = pneg %p274
        %p765 = pneg %p271
        %p766 = pneg %p295
        %p767 = pneg %p292
        %p768 = pneg %p316
        %p769 = pneg %p313
        %p770 = pneg %p337
        %p771 = pneg %p334
        %p772 = pneg %p358
        %p773 = pneg %p355
        %p774 = pneg %p379
        %p775 = pneg %p376
        %p776 = pneg %p400
        %p777 = pneg %p397
        %p778 = pneg %p421
        %p779 = pneg %p418
        %p780 = pneg %p442
        %p781 = pneg %p439
        %p782 = pneg %p463
        %p783 = pneg %p460
        %p784 = pneg %p484
        %p785 = pneg %p481
        %p786 = pneg %p505
        %p787 = pneg %p502
        %p788 = pneg %p526
        %p789 = pneg %p523
        %p790 = pneg %p547
        %p791 = pneg %p544
        %p792 = pneg %p568
        %p793 = pneg %p565
        %s794 = smul.u32 16, %s42
        %p795 = scmp.lt.s32.totalorder %s794, 47
        %s796 = scalar_select %p795, %s794, 47
        %s797 = smul.addr %s796, 8
        %s798 = scalar_lea.vmem %s0, %s797
        %s799 = smul.u32 16, %s42
        %s800 = smul.u32 16, %s42
        %p801 = scmp.lt.s32.totalorder %s800, 47
        %s802 = scalar_select %p801, %s800, 47
        %s803 = smul.addr %s802, 8
        %s804 = scalar_lea.vmem %s1, %s803
        %s805 = smul.u32 16, %s42
        %s806 = smul.u32 16, %s42
        %p807 = scmp.lt.s32.totalorder %s806, 47
        %s808 = scalar_select %p807, %s806, 47
        %s809 = smul.addr %s808, 8
        %s810 = scalar_lea.vmem %s2, %s809
        %s811 = smul.u32 16, %s42
        %p812 = scmp.lt.s32.totalorder %s42, 2
        %s813 = scalar_select %p812, %s42, 2
        %s814 = scalar_lea.vmem %s3, %s813
        %v815 = vld [vmem:[%s798] sm:$0xff]
        %v816 = vld [vmem:[%s798 + $0x8] sm:$0xff]
        %v817 = vld [vmem:[%s798 + $0x10] sm:$0xff]
        %v818 = vld [vmem:[%s798 + $0x18] sm:$0xff]
        %v819 = vld [vmem:[%s798 + $0x20] sm:$0xff]
        %v820 = vld [vmem:[%s798 + $0x28] sm:$0xff]
        %v821 = vld [vmem:[%s798 + $0x30] sm:$0xff]
        %v822 = vld [vmem:[%s798 + $0x38] sm:$0xff]
        %v823 = vld [vmem:[%s798 + $0x40] sm:$0xff]
        %v824 = vld [vmem:[%s798 + $0x48] sm:$0xff]
        %v825 = vld [vmem:[%s798 + $0x50] sm:$0xff]
        %v826 = vld [vmem:[%s798 + $0x58] sm:$0xff]
        %v827 = vld [vmem:[%s798 + $0x60] sm:$0xff]
        %v828 = vld [vmem:[%s798 + $0x68] sm:$0xff]
        %v829 = vld [vmem:[%s798 + $0x70] sm:$0xff]
        %v830 = vld [vmem:[%s798 + $0x78] sm:$0xff]
        %v831 = vld [vmem:[%s810] sm:$0xff]
        %v832 = vld [vmem:[%s810 + $0x8] sm:$0xff]
        %v833 = vld [vmem:[%s810 + $0x10] sm:$0xff]
        %v834 = vld [vmem:[%s810 + $0x18] sm:$0xff]
        %v835 = vld [vmem:[%s810 + $0x20] sm:$0xff]
        %v836 = vld [vmem:[%s810 + $0x28] sm:$0xff]
        %v837 = vld [vmem:[%s810 + $0x30] sm:$0xff]
        %v838 = vld [vmem:[%s810 + $0x38] sm:$0xff]
        %v839 = vld [vmem:[%s810 + $0x40] sm:$0xff]
        %v840 = vld [vmem:[%s810 + $0x48] sm:$0xff]
        %v841 = vld [vmem:[%s810 + $0x50] sm:$0xff]
        %v842 = vld [vmem:[%s810 + $0x58] sm:$0xff]
        %v843 = vld [vmem:[%s810 + $0x60] sm:$0xff]
        %v844 = vld [vmem:[%s810 + $0x68] sm:$0xff]
        %v845 = vld [vmem:[%s810 + $0x70] sm:$0xff]
        %v846 = vld [vmem:[%s810 + $0x78] sm:$0xff]
        %v847 = vand.u32 2147483647, %v815
        %v848 = vand.u32 2147483647, %v816
        %v849 = vand.u32 2147483647, %v817
        %v850 = vand.u32 2147483647, %v818
        %v851 = vand.u32 2147483647, %v819
        %v852 = vand.u32 2147483647, %v820
        %v853 = vand.u32 2147483647, %v821
        %v854 = vand.u32 2147483647, %v822
        %v855 = vand.u32 2147483647, %v823
        %v856 = vand.u32 2147483647, %v824
        %v857 = vand.u32 2147483647, %v825
        %v858 = vand.u32 2147483647, %v826
        %v859 = vand.u32 2147483647, %v827
        %v860 = vand.u32 2147483647, %v828
        %v861 = vand.u32 2147483647, %v829
        %v862 = vand.u32 2147483647, %v830
        %vm863 = vcmask 15360
        %v864 = vsel %vm863, %v847, 0.0
        %865 = vadd.xlane.f32.xlu0 %v864
        %v866 = vpop.xlane.xlu0 %865
        %v867 = vsel %vm863, %v848, 0.0
        %868 = vadd.xlane.f32.xlu0 %v867
        %v869 = vpop.xlane.xlu0 %868
        %v870 = vsel %vm863, %v849, 0.0
        %871 = vadd.xlane.f32.xlu0 %v870
        %v872 = vpop.xlane.xlu0 %871
        %v873 = vsel %vm863, %v850, 0.0
        %874 = vadd.xlane.f32.xlu0 %v873
        %v875 = vpop.xlane.xlu0 %874
        %v876 = vsel %vm863, %v851, 0.0
        %877 = vadd.xlane.f32.xlu0 %v876
        %v878 = vpop.xlane.xlu0 %877
        %v879 = vsel %vm863, %v852, 0.0
        %880 = vadd.xlane.f32.xlu0 %v879
        %v881 = vpop.xlane.xlu0 %880
        %v882 = vsel %vm863, %v853, 0.0
        %883 = vadd.xlane.f32.xlu0 %v882
        %v884 = vpop.xlane.xlu0 %883
        %v885 = vsel %vm863, %v854, 0.0
        %886 = vadd.xlane.f32.xlu0 %v885
        %v887 = vpop.xlane.xlu0 %886
        %v888 = vsel %vm863, %v855, 0.0
        %889 = vadd.xlane.f32.xlu0 %v888
        %v890 = vpop.xlane.xlu0 %889
        %v891 = vsel %vm863, %v856, 0.0
        %892 = vadd.xlane.f32.xlu0 %v891
        %v893 = vpop.xlane.xlu0 %892
        %v894 = vsel %vm863, %v857, 0.0
        %895 = vadd.xlane.f32.xlu0 %v894
        %v896 = vpop.xlane.xlu0 %895
        %v897 = vsel %vm863, %v858, 0.0
        %898 = vadd.xlane.f32.xlu0 %v897
        %v899 = vpop.xlane.xlu0 %898
        %v900 = vsel %vm863, %v859, 0.0
        %901 = vadd.xlane.f32.xlu0 %v900
        %v902 = vpop.xlane.xlu0 %901
        %v903 = vsel %vm863, %v860, 0.0
        %904 = vadd.xlane.f32.xlu0 %v903
        %v905 = vpop.xlane.xlu0 %904
        %v906 = vsel %vm863, %v861, 0.0
        %907 = vadd.xlane.f32.xlu0 %v906
        %v908 = vpop.xlane.xlu0 %907
        %v909 = vsel %vm863, %v862, 0.0
        %910 = vadd.xlane.f32.xlu0 %v909
        %v911 = vpop.xlane.xlu0 %910
        %v912 = vadd.f32 %v866, 0.001
        %v913 = vadd.f32 %v869, 0.001
        %v914 = vadd.f32 %v872, 0.001
        %v915 = vadd.f32 %v875, 0.001
        %v916 = vadd.f32 %v878, 0.001
        %v917 = vadd.f32 %v881, 0.001
        %v918 = vadd.f32 %v884, 0.001
        %v919 = vadd.f32 %v887, 0.001
        %v920 = vadd.f32 %v890, 0.001
        %v921 = vadd.f32 %v893, 0.001
        %v922 = vadd.f32 %v896, 0.001
        %v923 = vadd.f32 %v899, 0.001
        %v924 = vadd.f32 %v902, 0.001
        %v925 = vadd.f32 %v905, 0.001
        %v926 = vadd.f32 %v908, 0.001
        %v927 = vadd.f32 %v911, 0.001
        %v928 = vrcp.pop %v912
        %v929 = vmul.f32 %v912, %v928
        %v930 = vsub.f32 1.0, %v929
        %v931 = vmul.f32 %v928, %v930
        %v932 = vadd.f32 %v928, %v931
        %vm933 = vweird.f32 %v912
        %vm934 = vweird.f32 %v928
        %vm935 = vmor %vm933, %vm934
        %v936 = vsel %vm935, %v928, %v932
        %v937 = vand.u32 2147483647, %v912
        %vm938 = vcmp.eq.f32.partialorder %v937, 8.507059e+37
        %v939 = vand.u32 %v912, 2147483648
        %v940 = vor.u32 1.1754944e-38, %v939
        %v941 = vsel %vm938, %v940, %v936
        %v942 = vmul.f32 1.0, %v941
        %v943 = vrcp.pop %v913
        %v944 = vmul.f32 %v913, %v943
        %v945 = vsub.f32 1.0, %v944
        %v946 = vmul.f32 %v943, %v945
        %v947 = vadd.f32 %v943, %v946
        %vm948 = vweird.f32 %v913
        %vm949 = vweird.f32 %v943
        %vm950 = vmor %vm948, %vm949
        %v951 = vsel %vm950, %v943, %v947
        %v952 = vand.u32 2147483647, %v913
        %vm953 = vcmp.eq.f32.partialorder %v952, 8.507059e+37
        %v954 = vand.u32 %v913, 2147483648
        %v955 = vor.u32 1.1754944e-38, %v954
        %v956 = vsel %vm953, %v955, %v951
        %v957 = vmul.f32 1.0, %v956
        %v958 = vrcp.pop %v914
        %v959 = vmul.f32 %v914, %v958
        %v960 = vsub.f32 1.0, %v959
        %v961 = vmul.f32 %v958, %v960
        %v962 = vadd.f32 %v958, %v961
        %vm963 = vweird.f32 %v914
        %vm964 = vweird.f32 %v958
        %vm965 = vmor %vm963, %vm964
        %v966 = vsel %vm965, %v958, %v962
        %v967 = vand.u32 2147483647, %v914
        %vm968 = vcmp.eq.f32.partialorder %v967, 8.507059e+37
        %v969 = vand.u32 %v914, 2147483648
        %v970 = vor.u32 1.1754944e-38, %v969
        %v971 = vsel %vm968, %v970, %v966
        %v972 = vmul.f32 1.0, %v971
        %v973 = vrcp.pop %v915
        %v974 = vmul.f32 %v915, %v973
        %v975 = vsub.f32 1.0, %v974
        %v976 = vmul.f32 %v973, %v975
        %v977 = vadd.f32 %v973, %v976
        %vm978 = vweird.f32 %v915
        %vm979 = vweird.f32 %v973
        %vm980 = vmor %vm978, %vm979
        %v981 = vsel %vm980, %v973, %v977
        %v982 = vand.u32 2147483647, %v915
        %vm983 = vcmp.eq.f32.partialorder %v982, 8.507059e+37
        %v984 = vand.u32 %v915, 2147483648
        %v985 = vor.u32 1.1754944e-38, %v984
        %v986 = vsel %vm983, %v985, %v981
        %v987 = vmul.f32 1.0, %v986
        %v988 = vrcp.pop %v916
        %v989 = vmul.f32 %v916, %v988
        %v990 = vsub.f32 1.0, %v989
        %v991 = vmul.f32 %v988, %v990
        %v992 = vadd.f32 %v988, %v991
        %vm993 = vweird.f32 %v916
        %vm994 = vweird.f32 %v988
        %vm995 = vmor %vm993, %vm994
        %v996 = vsel %vm995, %v988, %v992
        %v997 = vand.u32 2147483647, %v916
        %vm998 = vcmp.eq.f32.partialorder %v997, 8.507059e+37
        %v999 = vand.u32 %v916, 2147483648
        %v1000 = vor.u32 1.1754944e-38, %v999
        %v1001 = vsel %vm998, %v1000, %v996
        %v1002 = vmul.f32 1.0, %v1001
        %v1003 = vrcp.pop %v917
        %v1004 = vmul.f32 %v917, %v1003
        %v1005 = vsub.f32 1.0, %v1004
        %v1006 = vmul.f32 %v1003, %v1005
        %v1007 = vadd.f32 %v1003, %v1006
        %vm1008 = vweird.f32 %v917
        %vm1009 = vweird.f32 %v1003
        %vm1010 = vmor %vm1008, %vm1009
        %v1011 = vsel %vm1010, %v1003, %v1007
        %v1012 = vand.u32 2147483647, %v917
        %vm1013 = vcmp.eq.f32.partialorder %v1012, 8.507059e+37
        %v1014 = vand.u32 %v917, 2147483648
        %v1015 = vor.u32 1.1754944e-38, %v1014
        %v1016 = vsel %vm1013, %v1015, %v1011
        %v1017 = vmul.f32 1.0, %v1016
        %v1018 = vrcp.pop %v918
        %v1019 = vmul.f32 %v918, %v1018
        %v1020 = vsub.f32 1.0, %v1019
        %v1021 = vmul.f32 %v1018, %v1020
        %v1022 = vadd.f32 %v1018, %v1021
        %vm1023 = vweird.f32 %v918
        %vm1024 = vweird.f32 %v1018
        %vm1025 = vmor %vm1023, %vm1024
        %v1026 = vsel %vm1025, %v1018, %v1022
        %v1027 = vand.u32 2147483647, %v918
        %vm1028 = vcmp.eq.f32.partialorder %v1027, 8.507059e+37
        %v1029 = vand.u32 %v918, 2147483648
        %v1030 = vor.u32 1.1754944e-38, %v1029
        %v1031 = vsel %vm1028, %v1030, %v1026
        %v1032 = vmul.f32 1.0, %v1031
        %v1033 = vrcp.pop %v919
        %v1034 = vmul.f32 %v919, %v1033
        %v1035 = vsub.f32 1.0, %v1034
        %v1036 = vmul.f32 %v1033, %v1035
        %v1037 = vadd.f32 %v1033, %v1036
        %vm1038 = vweird.f32 %v919
        %vm1039 = vweird.f32 %v1033
        %vm1040 = vmor %vm1038, %vm1039
        %v1041 = vsel %vm1040, %v1033, %v1037
        %v1042 = vand.u32 2147483647, %v919
        %vm1043 = vcmp.eq.f32.partialorder %v1042, 8.507059e+37
        %v1044 = vand.u32 %v919, 2147483648
        %v1045 = vor.u32 1.1754944e-38, %v1044
        %v1046 = vsel %vm1043, %v1045, %v1041
        %v1047 = vmul.f32 1.0, %v1046
        %v1048 = vrcp.pop %v920
        %v1049 = vmul.f32 %v920, %v1048
        %v1050 = vsub.f32 1.0, %v1049
        %v1051 = vmul.f32 %v1048, %v1050
        %v1052 = vadd.f32 %v1048, %v1051
        %vm1053 = vweird.f32 %v920
        %vm1054 = vweird.f32 %v1048
        %vm1055 = vmor %vm1053, %vm1054
        %v1056 = vsel %vm1055, %v1048, %v1052
        %v1057 = vand.u32 2147483647, %v920
        %vm1058 = vcmp.eq.f32.partialorder %v1057, 8.507059e+37
        %v1059 = vand.u32 %v920, 2147483648
        %v1060 = vor.u32 1.1754944e-38, %v1059
        %v1061 = vsel %vm1058, %v1060, %v1056
        %v1062 = vmul.f32 1.0, %v1061
        %v1063 = vrcp.pop %v921
        %v1064 = vmul.f32 %v921, %v1063
        %v1065 = vsub.f32 1.0, %v1064
        %v1066 = vmul.f32 %v1063, %v1065
        %v1067 = vadd.f32 %v1063, %v1066
        %vm1068 = vweird.f32 %v921
        %vm1069 = vweird.f32 %v1063
        %vm1070 = vmor %vm1068, %vm1069
        %v1071 = vsel %vm1070, %v1063, %v1067
        %v1072 = vand.u32 2147483647, %v921
        %vm1073 = vcmp.eq.f32.partialorder %v1072, 8.507059e+37
        %v1074 = vand.u32 %v921, 2147483648
        %v1075 = vor.u32 1.1754944e-38, %v1074
        %v1076 = vsel %vm1073, %v1075, %v1071
        %v1077 = vmul.f32 1.0, %v1076
        %v1078 = vrcp.pop %v922
        %v1079 = vmul.f32 %v922, %v1078
        %v1080 = vsub.f32 1.0, %v1079
        %v1081 = vmul.f32 %v1078, %v1080
        %v1082 = vadd.f32 %v1078, %v1081
        %vm1083 = vweird.f32 %v922
        %vm1084 = vweird.f32 %v1078
        %vm1085 = vmor %vm1083, %vm1084
        %v1086 = vsel %vm1085, %v1078, %v1082
        %v1087 = vand.u32 2147483647, %v922
        %vm1088 = vcmp.eq.f32.partialorder %v1087, 8.507059e+37
        %v1089 = vand.u32 %v922, 2147483648
        %v1090 = vor.u32 1.1754944e-38, %v1089
        %v1091 = vsel %vm1088, %v1090, %v1086
        %v1092 = vmul.f32 1.0, %v1091
        %v1093 = vrcp.pop %v923
        %v1094 = vmul.f32 %v923, %v1093
        %v1095 = vsub.f32 1.0, %v1094
        %v1096 = vmul.f32 %v1093, %v1095
        %v1097 = vadd.f32 %v1093, %v1096
        %vm1098 = vweird.f32 %v923
        %vm1099 = vweird.f32 %v1093
        %vm1100 = vmor %vm1098, %vm1099
        %v1101 = vsel %vm1100, %v1093, %v1097
        %v1102 = vand.u32 2147483647, %v923
        %vm1103 = vcmp.eq.f32.partialorder %v1102, 8.507059e+37
        %v1104 = vand.u32 %v923, 2147483648
        %v1105 = vor.u32 1.1754944e-38, %v1104
        %v1106 = vsel %vm1103, %v1105, %v1101
        %v1107 = vmul.f32 1.0, %v1106
        %v1108 = vrcp.pop %v924
        %v1109 = vmul.f32 %v924, %v1108
        %v1110 = vsub.f32 1.0, %v1109
        %v1111 = vmul.f32 %v1108, %v1110
        %v1112 = vadd.f32 %v1108, %v1111
        %vm1113 = vweird.f32 %v924
        %vm1114 = vweird.f32 %v1108
        %vm1115 = vmor %vm1113, %vm1114
        %v1116 = vsel %vm1115, %v1108, %v1112
        %v1117 = vand.u32 2147483647, %v924
        %vm1118 = vcmp.eq.f32.partialorder %v1117, 8.507059e+37
        %v1119 = vand.u32 %v924, 2147483648
        %v1120 = vor.u32 1.1754944e-38, %v1119
        %v1121 = vsel %vm1118, %v1120, %v1116
        %v1122 = vmul.f32 1.0, %v1121
        %v1123 = vrcp.pop %v925
        %v1124 = vmul.f32 %v925, %v1123
        %v1125 = vsub.f32 1.0, %v1124
        %v1126 = vmul.f32 %v1123, %v1125
        %v1127 = vadd.f32 %v1123, %v1126
        %vm1128 = vweird.f32 %v925
        %vm1129 = vweird.f32 %v1123
        %vm1130 = vmor %vm1128, %vm1129
        %v1131 = vsel %vm1130, %v1123, %v1127
        %v1132 = vand.u32 2147483647, %v925
        %vm1133 = vcmp.eq.f32.partialorder %v1132, 8.507059e+37
        %v1134 = vand.u32 %v925, 2147483648
        %v1135 = vor.u32 1.1754944e-38, %v1134
        %v1136 = vsel %vm1133, %v1135, %v1131
        %v1137 = vmul.f32 1.0, %v1136
        %v1138 = vrcp.pop %v926
        %v1139 = vmul.f32 %v926, %v1138
        %v1140 = vsub.f32 1.0, %v1139
        %v1141 = vmul.f32 %v1138, %v1140
        %v1142 = vadd.f32 %v1138, %v1141
        %vm1143 = vweird.f32 %v926
        %vm1144 = vweird.f32 %v1138
        %vm1145 = vmor %vm1143, %vm1144
        %v1146 = vsel %vm1145, %v1138, %v1142
        %v1147 = vand.u32 2147483647, %v926
        %vm1148 = vcmp.eq.f32.partialorder %v1147, 8.507059e+37
        %v1149 = vand.u32 %v926, 2147483648
        %v1150 = vor.u32 1.1754944e-38, %v1149
        %v1151 = vsel %vm1148, %v1150, %v1146
        %v1152 = vmul.f32 1.0, %v1151
        %v1153 = vrcp.pop %v927
        %v1154 = vmul.f32 %v927, %v1153
        %v1155 = vsub.f32 1.0, %v1154
        %v1156 = vmul.f32 %v1153, %v1155
        %v1157 = vadd.f32 %v1153, %v1156
        %vm1158 = vweird.f32 %v927
        %vm1159 = vweird.f32 %v1153
        %vm1160 = vmor %vm1158, %vm1159
        %v1161 = vsel %vm1160, %v1153, %v1157
        %v1162 = vand.u32 2147483647, %v927
        %vm1163 = vcmp.eq.f32.partialorder %v1162, 8.507059e+37
        %v1164 = vand.u32 %v927, 2147483648
        %v1165 = vor.u32 1.1754944e-38, %v1164
        %v1166 = vsel %vm1163, %v1165, %v1161
        %v1167 = vmul.f32 1.0, %v1166
        %v1168 = vlaneseq
        %v1169 = vand.u32 %v1168, 127
        %1170 = vset.pattern.permute.xlu0 0
        %1171 = vperm.xlu0 %1170, %v831
        %v1172 = vpop.permute.xlu0 %1171
        %1173 = vset.pattern.permute.xlu0 0
        %1174 = vperm.xlu0 %1173, %v832
        %v1175 = vpop.permute.xlu0 %1174
        %1176 = vset.pattern.permute.xlu0 0
        %1177 = vperm.xlu0 %1176, %v833
        %v1178 = vpop.permute.xlu0 %1177
        %1179 = vset.pattern.permute.xlu0 0
        %1180 = vperm.xlu0 %1179, %v834
        %v1181 = vpop.permute.xlu0 %1180
        %1182 = vset.pattern.permute.xlu0 0
        %1183 = vperm.xlu0 %1182, %v835
        %v1184 = vpop.permute.xlu0 %1183
        %1185 = vset.pattern.permute.xlu0 0
        %1186 = vperm.xlu0 %1185, %v836
        %v1187 = vpop.permute.xlu0 %1186
        %1188 = vset.pattern.permute.xlu0 0
        %1189 = vperm.xlu0 %1188, %v837
        %v1190 = vpop.permute.xlu0 %1189
        %1191 = vset.pattern.permute.xlu0 0
        %1192 = vperm.xlu0 %1191, %v838
        %v1193 = vpop.permute.xlu0 %1192
        %1194 = vset.pattern.permute.xlu0 0
        %1195 = vperm.xlu0 %1194, %v839
        %v1196 = vpop.permute.xlu0 %1195
        %1197 = vset.pattern.permute.xlu0 0
        %1198 = vperm.xlu0 %1197, %v840
        %v1199 = vpop.permute.xlu0 %1198
        %1200 = vset.pattern.permute.xlu0 0
        %1201 = vperm.xlu0 %1200, %v841
        %v1202 = vpop.permute.xlu0 %1201
        %1203 = vset.pattern.permute.xlu0 0
        %1204 = vperm.xlu0 %1203, %v842
        %v1205 = vpop.permute.xlu0 %1204
        %1206 = vset.pattern.permute.xlu0 0
        %1207 = vperm.xlu0 %1206, %v843
        %v1208 = vpop.permute.xlu0 %1207
        %1209 = vset.pattern.permute.xlu0 0
        %1210 = vperm.xlu0 %1209, %v844
        %v1211 = vpop.permute.xlu0 %1210
        %1212 = vset.pattern.permute.xlu0 0
        %1213 = vperm.xlu0 %1212, %v845
        %v1214 = vpop.permute.xlu0 %1213
        %1215 = vset.pattern.permute.xlu0 0
        %1216 = vperm.xlu0 %1215, %v846
        %v1217 = vpop.permute.xlu0 %1216
        %vm1218 = vcmp.eq.s32.totalorder %v1169, %v1172
        %vm1219 = vcmp.eq.s32.totalorder %v1169, %v1175
        %vm1220 = vcmp.eq.s32.totalorder %v1169, %v1178
        %vm1221 = vcmp.eq.s32.totalorder %v1169, %v1181
        %vm1222 = vcmp.eq.s32.totalorder %v1169, %v1184
        %vm1223 = vcmp.eq.s32.totalorder %v1169, %v1187
        %vm1224 = vcmp.eq.s32.totalorder %v1169, %v1190
        %vm1225 = vcmp.eq.s32.totalorder %v1169, %v1193
        %vm1226 = vcmp.eq.s32.totalorder %v1169, %v1196
        %vm1227 = vcmp.eq.s32.totalorder %v1169, %v1199
        %vm1228 = vcmp.eq.s32.totalorder %v1169, %v1202
        %vm1229 = vcmp.eq.s32.totalorder %v1169, %v1205
        %vm1230 = vcmp.eq.s32.totalorder %v1169, %v1208
        %vm1231 = vcmp.eq.s32.totalorder %v1169, %v1211
        %vm1232 = vcmp.eq.s32.totalorder %v1169, %v1214
        %vm1233 = vcmp.eq.s32.totalorder %v1169, %v1217
        %p1234 = scmp.eq.s32.totalorder %s41, 0
        %p1235 = scmp.eq.s32.totalorder %s42, 0
        %p1236 = pnand %p1234, %p1235
        %p1237 = pneg %p1236
        // Predicated region
        $region125: #{tpu_custom_call.1} parent=111 // pred_check
          _
        $region126: #{tpu_custom_call.1} parent=111 // pred_check_branch
          %1239 = sbr.rel (%p1236) target = $region128
        $region127: #{tpu_custom_call.1} parent=111 // pred_region
          %1240 = vst [vmem:[#allocation2] sm:$0x1] -1e+30
          %vm1241 = vcmask 7168
          %1242 = vst.msk [vmem:[#allocation3] sm:$0xff] %vm1241, 0.0
          %1243 = vst.msk [vmem:[#allocation3 + $0x8] sm:$0xff] %vm1241, 0.0
          %1244 = vst.msk [vmem:[#allocation3 + $0x10] sm:$0xff] %vm1241, 0.0
          %1245 = vst.msk [vmem:[#allocation3 + $0x18] sm:$0xff] %vm1241, 0.0
          %1246 = vst.msk [vmem:[#allocation3 + $0x20] sm:$0xff] %vm1241, 0.0
          %1247 = vst.msk [vmem:[#allocation3 + $0x28] sm:$0xff] %vm1241, 0.0
          %1248 = vst.msk [vmem:[#allocation3 + $0x30] sm:$0xff] %vm1241, 0.0
          %1249 = vst.msk [vmem:[#allocation3 + $0x38] sm:$0xff] %vm1241, 0.0
          %1250 = vst.msk [vmem:[#allocation3 + $0x40] sm:$0xff] %vm1241, 0.0
          %1251 = vst.msk [vmem:[#allocation3 + $0x48] sm:$0xff] %vm1241, 0.0
          %1252 = vst.msk [vmem:[#allocation3 + $0x50] sm:$0xff] %vm1241, 0.0
          %1253 = vst.msk [vmem:[#allocation3 + $0x58] sm:$0xff] %vm1241, 0.0
          %1254 = vst.msk [vmem:[#allocation3 + $0x60] sm:$0xff] %vm1241, 0.0
          %1255 = vst.msk [vmem:[#allocation3 + $0x68] sm:$0xff] %vm1241, 0.0
          %1256 = vst.msk [vmem:[#allocation3 + $0x70] sm:$0xff] %vm1241, 0.0
          %1257 = vst.msk [vmem:[#allocation3 + $0x78] sm:$0xff] %vm1241, 0.0
          %1258 = vst [vmem:[#allocation4] sm:$0xff] 0.0
          %1259 = vst [vmem:[#allocation4 + $0x8] sm:$0xff] 0.0
          %1260 = vst [vmem:[#allocation4 + $0x10] sm:$0xff] 0.0
          %1261 = vst [vmem:[#allocation4 + $0x18] sm:$0xff] 0.0
          %1262 = vst [vmem:[#allocation4 + $0x20] sm:$0xff] 0.0
          %1263 = vst [vmem:[#allocation4 + $0x28] sm:$0xff] 0.0
          %1264 = vst [vmem:[#allocation4 + $0x30] sm:$0xff] 0.0
          %1265 = vst [vmem:[#allocation4 + $0x38] sm:$0xff] 0.0
          %1266 = vst [vmem:[#allocation4 + $0x40] sm:$0xff] 0.0
          %1267 = vst [vmem:[#allocation4 + $0x48] sm:$0xff] 0.0
          %1268 = vst [vmem:[#allocation4 + $0x50] sm:$0xff] 0.0
          %1269 = vst [vmem:[#allocation4 + $0x58] sm:$0xff] 0.0
          %1270 = vst [vmem:[#allocation4 + $0x60] sm:$0xff] 0.0
          %1271 = vst [vmem:[#allocation4 + $0x68] sm:$0xff] 0.0
          %1272 = vst [vmem:[#allocation4 + $0x70] sm:$0xff] 0.0
          %1273 = vst [vmem:[#allocation4 + $0x78] sm:$0xff] 0.0
        $region128: #{tpu_custom_call.1} parent=111 // pred_fallthru
          _
        // Predicated region
        $region129: #{tpu_custom_call.1} parent=111 // pred_check
          %p1274 = pneg %p1234
        $region130: #{tpu_custom_call.1} parent=111 // pred_check_branch
          %1276 = sbr.rel (%p1274) target = $region132
        $region131: #{tpu_custom_call.1} parent=111 // pred_region
          %v1277 = vsel %vm1218, %v942, -1e+30
          %v1278 = vsel %vm1219, %v957, -1e+30
          %v1279 = vsel %vm1220, %v972, -1e+30
          %v1280 = vsel %vm1221, %v987, -1e+30
          %v1281 = vsel %vm1222, %v1002, -1e+30
          %v1282 = vsel %vm1223, %v1017, -1e+30
          %v1283 = vsel %vm1224, %v1032, -1e+30
          %v1284 = vsel %vm1225, %v1047, -1e+30
          %v1285 = vsel %vm1226, %v1062, -1e+30
          %v1286 = vsel %vm1227, %v1077, -1e+30
          %v1287 = vsel %vm1228, %v1092, -1e+30
          %v1288 = vsel %vm1229, %v1107, -1e+30
          %v1289 = vsel %vm1230, %v1122, -1e+30
          %v1290 = vsel %vm1231, %v1137, -1e+30
          %v1291 = vsel %vm1232, %v1152, -1e+30
          %v1292 = vsel %vm1233, %v1167, -1e+30
          %v1293 = vmax.f32 %v1277, %v1281
          %v1294 = vmax.f32 %v1278, %v1282
          %v1295 = vmax.f32 %v1279, %v1283
          %v1296 = vmax.f32 %v1280, %v1284
          %v1297 = vmax.f32 %v1293, %v1285
          %v1298 = vmax.f32 %v1294, %v1286
          %v1299 = vmax.f32 %v1295, %v1287
          %v1300 = vmax.f32 %v1296, %v1288
          %v1301 = vmax.f32 %v1297, %v1289
          %v1302 = vmax.f32 %v1298, %v1290
          %v1303 = vmax.f32 %v1299, %v1291
          %v1304 = vmax.f32 %v1300, %v1292
          %v1305 = vmax.f32 %v1301, %v1302
          %v1306 = vmax.f32 %v1303, %v1304
          %v1307 = vmax.f32 %v1305, %v1306
          %v1308 = vrot.slane %v1307, 4
          %v1309 = vmax.f32 %v1307, %v1308
          %v1310 = vrot.slane %v1309, 2
          %v1311 = vmax.f32 %v1309, %v1310
          %v1312 = vrot.slane %v1311, 1
          %v1313 = vmax.f32 %v1311, %v1312
          %v1314 = vld [vmem:[#allocation2] sm:$0x1]
          %v1315 = vmax.f32 %v1314, %v1313
          %1316 = vst [vmem:[#allocation2] sm:$0x1] %v1315
        $region132: #{tpu_custom_call.1} parent=111 // pred_fallthru
          _
        %p1317 = scmp.eq.s32.totalorder %s41, 1
        // Predicated region
        $region133: #{tpu_custom_call.1} parent=111 // pred_check
          %p1318 = pneg %p1317
        $region134: #{tpu_custom_call.1} parent=111 // pred_check_branch
          %1320 = sbr.rel (%p1318) target = $region136
        $region135: #{tpu_custom_call.1} parent=111 // pred_region
          %vm1321 = vcmp.ge.s32.totalorder %v831, 0
          %vm1322 = vcmp.ge.s32.totalorder %v832, 0
          %vm1323 = vcmp.ge.s32.totalorder %v833, 0
          %vm1324 = vcmp.ge.s32.totalorder %v834, 0
          %vm1325 = vcmp.ge.s32.totalorder %v835, 0
          %vm1326 = vcmp.ge.s32.totalorder %v836, 0
          %vm1327 = vcmp.ge.s32.totalorder %v837, 0
          %vm1328 = vcmp.ge.s32.totalorder %v838, 0
          %vm1329 = vcmp.ge.s32.totalorder %v839, 0
          %vm1330 = vcmp.ge.s32.totalorder %v840, 0
          %vm1331 = vcmp.ge.s32.totalorder %v841, 0
          %vm1332 = vcmp.ge.s32.totalorder %v842, 0
          %vm1333 = vcmp.ge.s32.totalorder %v843, 0
          %vm1334 = vcmp.ge.s32.totalorder %v844, 0
          %vm1335 = vcmp.ge.s32.totalorder %v845, 0
          %vm1336 = vcmp.ge.s32.totalorder %v846, 0
          %v1337 = vsel %vm1321, 1, 0
          %v1338 = vsel %vm1322, 1, 0
          %v1339 = vsel %vm1323, 1, 0
          %v1340 = vsel %vm1324, 1, 0
          %v1341 = vsel %vm1325, 1, 0
          %v1342 = vsel %vm1326, 1, 0
          %v1343 = vsel %vm1327, 1, 0
          %v1344 = vsel %vm1328, 1, 0
          %v1345 = vsel %vm1329, 1, 0
          %v1346 = vsel %vm1330, 1, 0
          %v1347 = vsel %vm1331, 1, 0
          %v1348 = vsel %vm1332, 1, 0
          %v1349 = vsel %vm1333, 1, 0
          %v1350 = vsel %vm1334, 1, 0
          %v1351 = vsel %vm1335, 1, 0
          %v1352 = vsel %vm1336, 1, 0
          %v1353 = vcvt.s32.f32 %v1337
          %v1354 = vcvt.s32.f32 %v1338
          %v1355 = vcvt.s32.f32 %v1339
          %v1356 = vcvt.s32.f32 %v1340
          %v1357 = vcvt.s32.f32 %v1341
          %v1358 = vcvt.s32.f32 %v1342
          %v1359 = vcvt.s32.f32 %v1343
          %v1360 = vcvt.s32.f32 %v1344
          %v1361 = vcvt.s32.f32 %v1345
          %v1362 = vcvt.s32.f32 %v1346
          %v1363 = vcvt.s32.f32 %v1347
          %v1364 = vcvt.s32.f32 %v1348
          %v1365 = vcvt.s32.f32 %v1349
          %v1366 = vcvt.s32.f32 %v1350
          %v1367 = vcvt.s32.f32 %v1351
          %v1368 = vcvt.s32.f32 %v1352
          %v1369 = vsel %vm1218, 1, 0
          %v1370 = vsel %vm1219, 1, 0
          %v1371 = vsel %vm1220, 1, 0
          %v1372 = vsel %vm1221, 1, 0
          %v1373 = vsel %vm1222, 1, 0
          %v1374 = vsel %vm1223, 1, 0
          %v1375 = vsel %vm1224, 1, 0
          %v1376 = vsel %vm1225, 1, 0
          %v1377 = vsel %vm1226, 1, 0
          %v1378 = vsel %vm1227, 1, 0
          %v1379 = vsel %vm1228, 1, 0
          %v1380 = vsel %vm1229, 1, 0
          %v1381 = vsel %vm1230, 1, 0
          %v1382 = vsel %vm1231, 1, 0
          %v1383 = vsel %vm1232, 1, 0
          %v1384 = vsel %vm1233, 1, 0
          %v1385 = vcvt.s32.f32 %v1369
          %v1386 = vcvt.s32.f32 %v1370
          %v1387 = vcvt.s32.f32 %v1371
          %v1388 = vcvt.s32.f32 %v1372
          %v1389 = vcvt.s32.f32 %v1373
          %v1390 = vcvt.s32.f32 %v1374
          %v1391 = vcvt.s32.f32 %v1375
          %v1392 = vcvt.s32.f32 %v1376
          %v1393 = vcvt.s32.f32 %v1377
          %v1394 = vcvt.s32.f32 %v1378
          %v1395 = vcvt.s32.f32 %v1379
          %v1396 = vcvt.s32.f32 %v1380
          %v1397 = vcvt.s32.f32 %v1381
          %v1398 = vcvt.s32.f32 %v1382
          %v1399 = vcvt.s32.f32 %v1383
          %v1400 = vcvt.s32.f32 %v1384
          %v1401 = vld [vmem:[#allocation2] sm:$0x1]
          %v1403 = vperm.slane %v1401, 0
          %v1405 = vmul.f32 %v1385, %v1403
          %v1406 = vmul.f32 %v1386, %v1403
          %v1407 = vmul.f32 %v1387, %v1403
          %v1408 = vmul.f32 %v1388, %v1403
          %v1409 = vmul.f32 %v1389, %v1403
          %v1410 = vmul.f32 %v1390, %v1403
          %v1411 = vmul.f32 %v1391, %v1403
          %v1412 = vmul.f32 %v1392, %v1403
          %v1413 = vmul.f32 %v1393, %v1403
          %v1414 = vmul.f32 %v1394, %v1403
          %v1415 = vmul.f32 %v1395, %v1403
          %v1416 = vmul.f32 %v1396, %v1403
          %v1417 = vmul.f32 %v1397, %v1403
          %v1418 = vmul.f32 %v1398, %v1403
          %v1419 = vmul.f32 %v1399, %v1403
          %v1420 = vmul.f32 %v1400, %v1403
          %1421 = vadd.xlane.f32.xlu0 %v1405
          %v1422 = vpop.xlane.xlu0 %1421
          %1423 = vadd.xlane.f32.xlu0 %v1406
          %v1424 = vpop.xlane.xlu0 %1423
          %1425 = vadd.xlane.f32.xlu0 %v1407
          %v1426 = vpop.xlane.xlu0 %1425
          %1427 = vadd.xlane.f32.xlu0 %v1408
          %v1428 = vpop.xlane.xlu0 %1427
          %1429 = vadd.xlane.f32.xlu0 %v1409
          %v1430 = vpop.xlane.xlu0 %1429
          %1431 = vadd.xlane.f32.xlu0 %v1410
          %v1432 = vpop.xlane.xlu0 %1431
          %1433 = vadd.xlane.f32.xlu0 %v1411
          %v1434 = vpop.xlane.xlu0 %1433
          %1435 = vadd.xlane.f32.xlu0 %v1412
          %v1436 = vpop.xlane.xlu0 %1435
          %1437 = vadd.xlane.f32.xlu0 %v1413
          %v1438 = vpop.xlane.xlu0 %1437
          %1439 = vadd.xlane.f32.xlu0 %v1414
          %v1440 = vpop.xlane.xlu0 %1439
          %1441 = vadd.xlane.f32.xlu0 %v1415
          %v1442 = vpop.xlane.xlu0 %1441
          %1443 = vadd.xlane.f32.xlu0 %v1416
          %v1444 = vpop.xlane.xlu0 %1443
          %1445 = vadd.xlane.f32.xlu0 %v1417
          %v1446 = vpop.xlane.xlu0 %1445
          %1447 = vadd.xlane.f32.xlu0 %v1418
          %v1448 = vpop.xlane.xlu0 %1447
          %1449 = vadd.xlane.f32.xlu0 %v1419
          %v1450 = vpop.xlane.xlu0 %1449
          %1451 = vadd.xlane.f32.xlu0 %v1420
          %v1452 = vpop.xlane.xlu0 %1451
          %v1453 = vsub.f32 %v942, %v1422
          %v1454 = vsub.f32 %v957, %v1424
          %v1455 = vsub.f32 %v972, %v1426
          %v1456 = vsub.f32 %v987, %v1428
          %v1457 = vsub.f32 %v1002, %v1430
          %v1458 = vsub.f32 %v1017, %v1432
          %v1459 = vsub.f32 %v1032, %v1434
          %v1460 = vsub.f32 %v1047, %v1436
          %v1461 = vsub.f32 %v1062, %v1438
          %v1462 = vsub.f32 %v1077, %v1440
          %v1463 = vsub.f32 %v1092, %v1442
          %v1464 = vsub.f32 %v1107, %v1444
          %v1465 = vsub.f32 %v1122, %v1446
          %v1466 = vsub.f32 %v1137, %v1448
          %v1467 = vsub.f32 %v1152, %v1450
          %v1468 = vsub.f32 %v1167, %v1452
          %v1469 = vmin.f32 %v1453, 0.0
          %v1470 = vmin.f32 %v1454, 0.0
          %v1471 = vmin.f32 %v1455, 0.0
          %v1472 = vmin.f32 %v1456, 0.0
          %v1473 = vmin.f32 %v1457, 0.0
          %v1474 = vmin.f32 %v1458, 0.0
          %v1475 = vmin.f32 %v1459, 0.0
          %v1476 = vmin.f32 %v1460, 0.0
          %v1477 = vmin.f32 %v1461, 0.0
          %v1478 = vmin.f32 %v1462, 0.0
          %v1479 = vmin.f32 %v1463, 0.0
          %v1480 = vmin.f32 %v1464, 0.0
          %v1481 = vmin.f32 %v1465, 0.0
          %v1482 = vmin.f32 %v1466, 0.0
          %v1483 = vmin.f32 %v1467, 0.0
          %v1484 = vmin.f32 %v1468, 0.0
          %v1485 = vmul.f32 %v1469, 1.442695
          %v1486 = vpow.pop %v1485
          %v1487 = vmul.f32 %v1470, 1.442695
          %v1488 = vpow.pop %v1487
          %v1489 = vmul.f32 %v1471, 1.442695
          %v1490 = vpow.pop %v1489
          %v1491 = vmul.f32 %v1472, 1.442695
          %v1492 = vpow.pop %v1491
          %v1493 = vmul.f32 %v1473, 1.442695
          %v1494 = vpow.pop %v1493
          %v1495 = vmul.f32 %v1474, 1.442695
          %v1496 = vpow.pop %v1495
          %v1497 = vmul.f32 %v1475, 1.442695
          %v1498 = vpow.pop %v1497
          %v1499 = vmul.f32 %v1476, 1.442695
          %v1500 = vpow.pop %v1499
          %v1501 = vmul.f32 %v1477, 1.442695
          %v1502 = vpow.pop %v1501
          %v1503 = vmul.f32 %v1478, 1.442695
          %v1504 = vpow.pop %v1503
          %v1505 = vmul.f32 %v1479, 1.442695
          %v1506 = vpow.pop %v1505
          %v1507 = vmul.f32 %v1480, 1.442695
          %v1508 = vpow.pop %v1507
          %v1509 = vmul.f32 %v1481, 1.442695
          %v1510 = vpow.pop %v1509
          %v1511 = vmul.f32 %v1482, 1.442695
          %v1512 = vpow.pop %v1511
          %v1513 = vmul.f32 %v1483, 1.442695
          %v1514 = vpow.pop %v1513
          %v1515 = vmul.f32 %v1484, 1.442695
          %v1516 = vpow.pop %v1515
          %v1517 = vmul.f32 %v1486, %v1353
          %v1518 = vmul.f32 %v1488, %v1354
          %v1519 = vmul.f32 %v1490, %v1355
          %v1520 = vmul.f32 %v1492, %v1356
          %v1521 = vmul.f32 %v1494, %v1357
          %v1522 = vmul.f32 %v1496, %v1358
          %v1523 = vmul.f32 %v1498, %v1359
          %v1524 = vmul.f32 %v1500, %v1360
          %v1525 = vmul.f32 %v1502, %v1361
          %v1526 = vmul.f32 %v1504, %v1362
          %v1527 = vmul.f32 %v1506, %v1363
          %v1528 = vmul.f32 %v1508, %v1364
          %v1529 = vmul.f32 %v1510, %v1365
          %v1530 = vmul.f32 %v1512, %v1366
          %v1531 = vmul.f32 %v1514, %v1367
          %v1532 = vmul.f32 %v1516, %v1368
          %v1533 = vlaneseq
          %v1534 = vshrl.u32 %v1533, 7
          %v1535 = vadd.s32 %v1534, 8
          %v1536 = vadd.s32 %v1534, 16
          %v1537 = vadd.s32 %v1534, 24
          %v1538 = vadd.s32 %v1534, 32
          %v1539 = vadd.s32 %v1534, 40
          %v1540 = vadd.s32 %v1534, 48
          %v1541 = vadd.s32 %v1534, 56
          %v1542 = vadd.s32 %v1534, 64
          %v1543 = vadd.s32 %v1534, 72
          %v1544 = vadd.s32 %v1534, 80
          %v1545 = vadd.s32 %v1534, 88
          %v1546 = vadd.s32 %v1534, 96
          %v1547 = vadd.s32 %v1534, 104
          %v1548 = vadd.s32 %v1534, 112
          %v1549 = vadd.s32 %v1534, 120
          %v1550 = vld [vmem:[%s814] sm:$0x1]
          %v1551 = vperm.slane %v1550, 0
          %vm1552 = vcmp.eq.s32.totalorder %v1534, %v1551
          %vm1553 = vcmp.eq.s32.totalorder %v1535, %v1551
          %vm1554 = vcmp.eq.s32.totalorder %v1536, %v1551
          %vm1555 = vcmp.eq.s32.totalorder %v1537, %v1551
          %vm1556 = vcmp.eq.s32.totalorder %v1538, %v1551
          %vm1557 = vcmp.eq.s32.totalorder %v1539, %v1551
          %vm1558 = vcmp.eq.s32.totalorder %v1540, %v1551
          %vm1559 = vcmp.eq.s32.totalorder %v1541, %v1551
          %vm1560 = vcmp.eq.s32.totalorder %v1542, %v1551
          %vm1561 = vcmp.eq.s32.totalorder %v1543, %v1551
          %vm1562 = vcmp.eq.s32.totalorder %v1544, %v1551
          %vm1563 = vcmp.eq.s32.totalorder %v1545, %v1551
          %vm1564 = vcmp.eq.s32.totalorder %v1546, %v1551
          %vm1565 = vcmp.eq.s32.totalorder %v1547, %v1551
          %vm1566 = vcmp.eq.s32.totalorder %v1548, %v1551
          %vm1567 = vcmp.eq.s32.totalorder %v1549, %v1551
          %v1568 = vsel %vm1552, 1, 0
          %v1569 = vsel %vm1553, 1, 0
          %v1570 = vsel %vm1554, 1, 0
          %v1571 = vsel %vm1555, 1, 0
          %v1572 = vsel %vm1556, 1, 0
          %v1573 = vsel %vm1557, 1, 0
          %v1574 = vsel %vm1558, 1, 0
          %v1575 = vsel %vm1559, 1, 0
          %v1576 = vsel %vm1560, 1, 0
          %v1577 = vsel %vm1561, 1, 0
          %v1578 = vsel %vm1562, 1, 0
          %v1579 = vsel %vm1563, 1, 0
          %v1580 = vsel %vm1564, 1, 0
          %v1581 = vsel %vm1565, 1, 0
          %v1582 = vsel %vm1566, 1, 0
          %v1583 = vsel %vm1567, 1, 0
          %v1584 = vcvt.s32.f32 %v1568
          %v1585 = vcvt.s32.f32 %v1569
          %v1586 = vcvt.s32.f32 %v1570
          %v1587 = vcvt.s32.f32 %v1571
          %v1588 = vcvt.s32.f32 %v1572
          %v1589 = vcvt.s32.f32 %v1573
          %v1590 = vcvt.s32.f32 %v1574
          %v1591 = vcvt.s32.f32 %v1575
          %v1592 = vcvt.s32.f32 %v1576
          %v1593 = vcvt.s32.f32 %v1577
          %v1594 = vcvt.s32.f32 %v1578
          %v1595 = vcvt.s32.f32 %v1579
          %v1596 = vcvt.s32.f32 %v1580
          %v1597 = vcvt.s32.f32 %v1581
          %v1598 = vcvt.s32.f32 %v1582
          %v1599 = vcvt.s32.f32 %v1583
          %v1600 = vld [vmem:[#allocation3] sm:$0xff]
          %v1601 = vld [vmem:[#allocation3 + $0x8] sm:$0xff]
          %v1602 = vld [vmem:[#allocation3 + $0x10] sm:$0xff]
          %v1603 = vld [vmem:[#allocation3 + $0x18] sm:$0xff]
          %v1604 = vld [vmem:[#allocation3 + $0x20] sm:$0xff]
          %v1605 = vld [vmem:[#allocation3 + $0x28] sm:$0xff]
          %v1606 = vld [vmem:[#allocation3 + $0x30] sm:$0xff]
          %v1607 = vld [vmem:[#allocation3 + $0x38] sm:$0xff]
          %v1608 = vld [vmem:[#allocation3 + $0x40] sm:$0xff]
          %v1609 = vld [vmem:[#allocation3 + $0x48] sm:$0xff]
          %v1610 = vld [vmem:[#allocation3 + $0x50] sm:$0xff]
          %v1611 = vld [vmem:[#allocation3 + $0x58] sm:$0xff]
          %v1612 = vld [vmem:[#allocation3 + $0x60] sm:$0xff]
          %v1613 = vld [vmem:[#allocation3 + $0x68] sm:$0xff]
          %v1614 = vld [vmem:[#allocation3 + $0x70] sm:$0xff]
          %v1615 = vld [vmem:[#allocation3 + $0x78] sm:$0xff]
          %1616 = vmatpush.msra.mxu0 %v1532
          %1617 = vmatpush.msra.mxu0 %v1531
          %1618 = vmatpush.msra.mxu0 %v1530
          %1619 = vmatpush.msra.mxu0 %v1529
          %1620 = vmatpush.msra.mxu0 %v1528
          %1621 = vmatpush.msra.mxu0 %v1527
          %1622 = vmatpush.msra.mxu0 %v1526
          %1623 = vmatpush.msra.mxu0 %v1525
          %1624 = vmatpush.msra.mxu0 %v1524
          %1625 = vmatpush.msra.mxu0 %v1523
          %1626 = vmatpush.msra.mxu0 %v1522
          %1627 = vmatpush.msra.mxu0 %v1521
          %1628 = vmatpush.msra.mxu0 %v1520
          %1629 = vmatpush.msra.mxu0 %v1519
          %1630 = vmatpush.msra.mxu0 %v1518
          %1631 = vmatpush.msra.mxu0 %v1517
          %1632 = vmatmul.f32.gmra.mxu0 %v1584
          %v1633 = vpop.f32.mrf.mxu0
          %v1634 = vadd.f32 0.0, %v1633
          %1635 = vmatmul.f32.gmra.mxu0 %v1585
          %v1636 = vpop.f32.mrf.mxu0
          %v1637 = vadd.f32 0.0, %v1636
          %1638 = vmatmul.f32.gmra.mxu0 %v1586
          %v1639 = vpop.f32.mrf.mxu0
          %v1640 = vadd.f32 0.0, %v1639
          %1641 = vmatmul.f32.gmra.mxu0 %v1587
          %v1642 = vpop.f32.mrf.mxu0
          %v1643 = vadd.f32 0.0, %v1642
          %1644 = vmatmul.f32.gmra.mxu0 %v1588
          %v1645 = vpop.f32.mrf.mxu0
          %v1646 = vadd.f32 0.0, %v1645
          %1647 = vmatmul.f32.gmra.mxu0 %v1589
          %v1648 = vpop.f32.mrf.mxu0
          %v1649 = vadd.f32 0.0, %v1648
          %1650 = vmatmul.f32.gmra.mxu0 %v1590
          %v1651 = vpop.f32.mrf.mxu0
          %v1652 = vadd.f32 0.0, %v1651
          %1653 = vmatmul.f32.gmra.mxu0 %v1591
          %v1654 = vpop.f32.mrf.mxu0
          %v1655 = vadd.f32 0.0, %v1654
          %1656 = vmatmul.f32.gmra.mxu0 %v1592
          %v1657 = vpop.f32.mrf.mxu0
          %v1658 = vadd.f32 0.0, %v1657
          %1659 = vmatmul.f32.gmra.mxu0 %v1593
          %v1660 = vpop.f32.mrf.mxu0
          %v1661 = vadd.f32 0.0, %v1660
          %1662 = vmatmul.f32.gmra.mxu0 %v1594
          %v1663 = vpop.f32.mrf.mxu0
          %v1664 = vadd.f32 0.0, %v1663
          %1665 = vmatmul.f32.gmra.mxu0 %v1595
          %v1666 = vpop.f32.mrf.mxu0
          %v1667 = vadd.f32 0.0, %v1666
          %1668 = vmatmul.f32.gmra.mxu0 %v1596
          %v1669 = vpop.f32.mrf.mxu0
          %v1670 = vadd.f32 0.0, %v1669
          %1671 = vmatmul.f32.gmra.mxu0 %v1597
          %v1672 = vpop.f32.mrf.mxu0
          %v1673 = vadd.f32 0.0, %v1672
          %1674 = vmatmul.f32.gmra.mxu0 %v1598
          %v1675 = vpop.f32.mrf.mxu0
          %v1676 = vadd.f32 0.0, %v1675
          %1677 = vmatmul.f32.gmra.mxu0 %v1599
          %v1678 = vpop.f32.mrf.mxu0
          %v1679 = vadd.f32 0.0, %v1678
          %1680 = vdwg.mxu0
          %v1681 = vadd.f32 %v1600, %v1634
          %v1682 = vadd.f32 %v1601, %v1637
          %v1683 = vadd.f32 %v1602, %v1640
          %v1684 = vadd.f32 %v1603, %v1643
          %v1685 = vadd.f32 %v1604, %v1646
          %v1686 = vadd.f32 %v1605, %v1649
          %v1687 = vadd.f32 %v1606, %v1652
          %v1688 = vadd.f32 %v1607, %v1655
          %v1689 = vadd.f32 %v1608, %v1658
          %v1690 = vadd.f32 %v1609, %v1661
          %v1691 = vadd.f32 %v1610, %v1664
          %v1692 = vadd.f32 %v1611, %v1667
          %v1693 = vadd.f32 %v1612, %v1670
          %v1694 = vadd.f32 %v1613, %v1673
          %v1695 = vadd.f32 %v1614, %v1676
          %v1696 = vadd.f32 %v1615, %v1679
          %vm1697 = vcmask 7168
          %1698 = vst.msk [vmem:[#allocation3] sm:$0xff] %vm1697, %v1681
          %1699 = vst.msk [vmem:[#allocation3 + $0x8] sm:$0xff] %vm1697, %v1682
          %1700 = vst.msk [vmem:[#allocation3 + $0x10] sm:$0xff] %vm1697, %v1683
          %1701 = vst.msk [vmem:[#allocation3 + $0x18] sm:$0xff] %vm1697, %v1684
          %1702 = vst.msk [vmem:[#allocation3 + $0x20] sm:$0xff] %vm1697, %v1685
          %1703 = vst.msk [vmem:[#allocation3 + $0x28] sm:$0xff] %vm1697, %v1686
          %1704 = vst.msk [vmem:[#allocation3 + $0x30] sm:$0xff] %vm1697, %v1687
          %1705 = vst.msk [vmem:[#allocation3 + $0x38] sm:$0xff] %vm1697, %v1688
          %1706 = vst.msk [vmem:[#allocation3 + $0x40] sm:$0xff] %vm1697, %v1689
          %1707 = vst.msk [vmem:[#allocation3 + $0x48] sm:$0xff] %vm1697, %v1690
          %1708 = vst.msk [vmem:[#allocation3 + $0x50] sm:$0xff] %vm1697, %v1691
          %1709 = vst.msk [vmem:[#allocation3 + $0x58] sm:$0xff] %vm1697, %v1692
          %1710 = vst.msk [vmem:[#allocation3 + $0x60] sm:$0xff] %vm1697, %v1693
          %1711 = vst.msk [vmem:[#allocation3 + $0x68] sm:$0xff] %vm1697, %v1694
          %1712 = vst.msk [vmem:[#allocation3 + $0x70] sm:$0xff] %vm1697, %v1695
          %1713 = vst.msk [vmem:[#allocation3 + $0x78] sm:$0xff] %vm1697, %v1696
          %v1714 = vld [vmem:[%s6] sm:$0x3]
          %v1715 = vld [vmem:[%s7] sm:$0x1]
          %v1717 = vperm.slane %v1715, 0
          %v1720 = vsel %vm863, %v815, 0
          %v1723 = vsel %vm863, %v816, 0
          %v1726 = vsel %vm863, %v817, 0
          %v1729 = vsel %vm863, %v818, 0
          %v1732 = vsel %vm863, %v819, 0
          %v1735 = vsel %vm863, %v820, 0
          %v1738 = vsel %vm863, %v821, 0
          %v1741 = vsel %vm863, %v822, 0
          %v1744 = vsel %vm863, %v823, 0
          %v1747 = vsel %vm863, %v824, 0
          %v1750 = vsel %vm863, %v825, 0
          %v1753 = vsel %vm863, %v826, 0
          %v1756 = vsel %vm863, %v827, 0
          %v1759 = vsel %vm863, %v828, 0
          %v1762 = vsel %vm863, %v829, 0
          %v1765 = vsel %vm863, %v830, 0
          %vm1767 = vcmask 1041408
          %v1769 = vsel %vm1767, %v1714, 0
          %1771 = vmatpush.msra.mxu0 0.0
          %1772 = vmatpush.msra.mxu0 0.0
          %1773 = vmatpush.msra.mxu0 0.0
          %1774 = vmatpush.msra.mxu0 0.0
          %1775 = vmatpush.msra.mxu0 0.0
          %1776 = vmatpush.msra.mxu0 0.0
          %1777 = vmatpush.msra.mxu0 0.0
          %1778 = vmatpush.msra.mxu0 0.0
          %1779 = vmatpush.msra.mxu0 0.0
          %1780 = vmatpush.msra.mxu0 0.0
          %1781 = vmatpush.msra.mxu0 0.0
          %1782 = vmatpush.msra.mxu0 0.0
          %1783 = vmatpush.msra.mxu0 0.0
          %1784 = vmatpush.msra.mxu0 0.0
          %1785 = vmatpush.msra.mxu0 0.0
          %1786 = vmatpush.msra.mxu0 %v1769
          %1787 = vmatmul.f32.gmra.mxu0 %v1720
          %v1788 = vpop.f32.mrf.mxu0
          %v1789 = vadd.f32 %v1717, %v1788
          %1790 = vmatmul.f32.gmra.mxu0 %v1723
          %v1791 = vpop.f32.mrf.mxu0
          %v1792 = vadd.f32 %v1717, %v1791
          %1793 = vmatmul.f32.gmra.mxu0 %v1726
          %v1794 = vpop.f32.mrf.mxu0
          %v1795 = vadd.f32 %v1717, %v1794
          %1796 = vmatmul.f32.gmra.mxu0 %v1729
          %v1797 = vpop.f32.mrf.mxu0
          %v1798 = vadd.f32 %v1717, %v1797
          %1799 = vmatmul.f32.gmra.mxu0 %v1732
          %v1800 = vpop.f32.mrf.mxu0
          %v1801 = vadd.f32 %v1717, %v1800
          %1802 = vmatmul.f32.gmra.mxu0 %v1735
          %v1803 = vpop.f32.mrf.mxu0
          %v1804 = vadd.f32 %v1717, %v1803
          %1805 = vmatmul.f32.gmra.mxu0 %v1738
          %v1806 = vpop.f32.mrf.mxu0
          %v1807 = vadd.f32 %v1717, %v1806
          %1808 = vmatmul.f32.gmra.mxu0 %v1741
          %v1809 = vpop.f32.mrf.mxu0
          %v1810 = vadd.f32 %v1717, %v1809
          %1811 = vmatmul.f32.gmra.mxu0 %v1744
          %v1812 = vpop.f32.mrf.mxu0
          %v1813 = vadd.f32 %v1717, %v1812
          %1814 = vmatmul.f32.gmra.mxu0 %v1747
          %v1815 = vpop.f32.mrf.mxu0
          %v1816 = vadd.f32 %v1717, %v1815
          %1817 = vmatmul.f32.gmra.mxu0 %v1750
          %v1818 = vpop.f32.mrf.mxu0
          %v1819 = vadd.f32 %v1717, %v1818
          %1820 = vmatmul.f32.gmra.mxu0 %v1753
          %v1821 = vpop.f32.mrf.mxu0
          %v1822 = vadd.f32 %v1717, %v1821
          %1823 = vmatmul.f32.gmra.mxu0 %v1756
          %v1824 = vpop.f32.mrf.mxu0
          %v1825 = vadd.f32 %v1717, %v1824
          %1826 = vmatmul.f32.gmra.mxu0 %v1759
          %v1827 = vpop.f32.mrf.mxu0
          %v1828 = vadd.f32 %v1717, %v1827
          %1829 = vmatmul.f32.gmra.mxu0 %v1762
          %v1830 = vpop.f32.mrf.mxu0
          %v1831 = vadd.f32 %v1717, %v1830
          %1832 = vmatmul.f32.gmra.mxu0 %v1765
          %v1833 = vpop.f32.mrf.mxu0
          %v1834 = vadd.f32 %v1717, %v1833
          %1835 = vdwg.mxu0
          %vm1836 = vcmp.gt.f32.partialorder %v1789, 0.0
          %vm1837 = vcmp.gt.f32.partialorder %v1792, 0.0
          %vm1838 = vcmp.gt.f32.partialorder %v1795, 0.0
          %vm1839 = vcmp.gt.f32.partialorder %v1798, 0.0
          %vm1840 = vcmp.gt.f32.partialorder %v1801, 0.0
          %vm1841 = vcmp.gt.f32.partialorder %v1804, 0.0
          %vm1842 = vcmp.gt.f32.partialorder %v1807, 0.0
          %vm1843 = vcmp.gt.f32.partialorder %v1810, 0.0
          %vm1844 = vcmp.gt.f32.partialorder %v1813, 0.0
          %vm1845 = vcmp.gt.f32.partialorder %v1816, 0.0
          %vm1846 = vcmp.gt.f32.partialorder %v1819, 0.0
          %vm1847 = vcmp.gt.f32.partialorder %v1822, 0.0
          %vm1848 = vcmp.gt.f32.partialorder %v1825, 0.0
          %vm1849 = vcmp.gt.f32.partialorder %v1828, 0.0
          %vm1850 = vcmp.gt.f32.partialorder %v1831, 0.0
          %vm1851 = vcmp.gt.f32.partialorder %v1834, 0.0
          %v1852 = vmin.f32 %v1789, 0.0
          %v1853 = vmin.f32 %v1792, 0.0
          %v1854 = vmin.f32 %v1795, 0.0
          %v1855 = vmin.f32 %v1798, 0.0
          %v1856 = vmin.f32 %v1801, 0.0
          %v1857 = vmin.f32 %v1804, 0.0
          %v1858 = vmin.f32 %v1807, 0.0
          %v1859 = vmin.f32 %v1810, 0.0
          %v1860 = vmin.f32 %v1813, 0.0
          %v1861 = vmin.f32 %v1816, 0.0
          %v1862 = vmin.f32 %v1819, 0.0
          %v1863 = vmin.f32 %v1822, 0.0
          %v1864 = vmin.f32 %v1825, 0.0
          %v1865 = vmin.f32 %v1828, 0.0
          %v1866 = vmin.f32 %v1831, 0.0
          %v1867 = vmin.f32 %v1834, 0.0
          %v1868 = vmul.f32 %v1852, 1.442695
          %v1869 = vpow.pop %v1868
          %v1870 = vmul.f32 %v1853, 1.442695
          %v1871 = vpow.pop %v1870
          %v1872 = vmul.f32 %v1854, 1.442695
          %v1873 = vpow.pop %v1872
          %v1874 = vmul.f32 %v1855, 1.442695
          %v1875 = vpow.pop %v1874
          %v1876 = vmul.f32 %v1856, 1.442695
          %v1877 = vpow.pop %v1876
          %v1878 = vmul.f32 %v1857, 1.442695
          %v1879 = vpow.pop %v1878
          %v1880 = vmul.f32 %v1858, 1.442695
          %v1881 = vpow.pop %v1880
          %v1882 = vmul.f32 %v1859, 1.442695
          %v1883 = vpow.pop %v1882
          %v1884 = vmul.f32 %v1860, 1.442695
          %v1885 = vpow.pop %v1884
          %v1886 = vmul.f32 %v1861, 1.442695
          %v1887 = vpow.pop %v1886
          %v1888 = vmul.f32 %v1862, 1.442695
          %v1889 = vpow.pop %v1888
          %v1890 = vmul.f32 %v1863, 1.442695
          %v1891 = vpow.pop %v1890
          %v1892 = vmul.f32 %v1864, 1.442695
          %v1893 = vpow.pop %v1892
          %v1894 = vmul.f32 %v1865, 1.442695
          %v1895 = vpow.pop %v1894
          %v1896 = vmul.f32 %v1866, 1.442695
          %v1897 = vpow.pop %v1896
          %v1898 = vmul.f32 %v1867, 1.442695
          %v1899 = vpow.pop %v1898
          %v1900 = vsub.f32 %v1869, 1.0
          %v1901 = vsub.f32 %v1871, 1.0
          %v1902 = vsub.f32 %v1873, 1.0
          %v1903 = vsub.f32 %v1875, 1.0
          %v1904 = vsub.f32 %v1877, 1.0
          %v1905 = vsub.f32 %v1879, 1.0
          %v1906 = vsub.f32 %v1881, 1.0
          %v1907 = vsub.f32 %v1883, 1.0
          %v1908 = vsub.f32 %v1885, 1.0
          %v1909 = vsub.f32 %v1887, 1.0
          %v1910 = vsub.f32 %v1889, 1.0
          %v1911 = vsub.f32 %v1891, 1.0
          %v1912 = vsub.f32 %v1893, 1.0
          %v1913 = vsub.f32 %v1895, 1.0
          %v1914 = vsub.f32 %v1897, 1.0
          %v1915 = vsub.f32 %v1899, 1.0
          %v1916 = vsel %vm1836, %v1789, %v1900
          %v1917 = vsel %vm1837, %v1792, %v1901
          %v1918 = vsel %vm1838, %v1795, %v1902
          %v1919 = vsel %vm1839, %v1798, %v1903
          %v1920 = vsel %vm1840, %v1801, %v1904
          %v1921 = vsel %vm1841, %v1804, %v1905
          %v1922 = vsel %vm1842, %v1807, %v1906
          %v1923 = vsel %vm1843, %v1810, %v1907
          %v1924 = vsel %vm1844, %v1813, %v1908
          %v1925 = vsel %vm1845, %v1816, %v1909
          %v1926 = vsel %vm1846, %v1819, %v1910
          %v1927 = vsel %vm1847, %v1822, %v1911
          %v1928 = vsel %vm1848, %v1825, %v1912
          %v1929 = vsel %vm1849, %v1828, %v1913
          %v1930 = vsel %vm1850, %v1831, %v1914
          %v1931 = vsel %vm1851, %v1834, %v1915
          %v1932 = vld [vmem:[%s8] sm:$0xff]
          %v1933 = vld [vmem:[%s8 + $0x8] sm:$0xff]
          %v1934 = vld [vmem:[%s8 + $0x10] sm:$0xff]
          %v1935 = vld [vmem:[%s8 + $0x18] sm:$0xff]
          %v1936 = vld [vmem:[%s8 + $0x20] sm:$0xff]
          %v1937 = vld [vmem:[%s8 + $0x28] sm:$0xff]
          %v1938 = vld [vmem:[%s8 + $0x30] sm:$0xff]
          %v1939 = vld [vmem:[%s8 + $0x38] sm:$0xff]
          %v1940 = vld [vmem:[%s8 + $0x40] sm:$0xff]
          %v1941 = vld [vmem:[%s8 + $0x48] sm:$0xff]
          %v1942 = vld [vmem:[%s8 + $0x50] sm:$0xff]
          %v1943 = vld [vmem:[%s8 + $0x58] sm:$0xff]
          %v1944 = vld [vmem:[%s8 + $0x60] sm:$0xff]
          %v1945 = vld [vmem:[%s8 + $0x68] sm:$0xff]
          %v1946 = vld [vmem:[%s8 + $0x70] sm:$0xff]
          %v1947 = vld [vmem:[%s8 + $0x78] sm:$0xff]
          %v1948 = vld [vmem:[#allocation5] sm:$0x1]
          %v1950 = vperm.slane %v1948, 0
          %1952 = vmatpush.msra.mxu0 %v1947
          %1953 = vmatpush.msra.mxu0 %v1946
          %1954 = vmatpush.msra.mxu0 %v1945
          %1955 = vmatpush.msra.mxu0 %v1944
          %1956 = vmatpush.msra.mxu0 %v1943
          %1957 = vmatpush.msra.mxu0 %v1942
          %1958 = vmatpush.msra.mxu0 %v1941
          %1959 = vmatpush.msra.mxu0 %v1940
          %1960 = vmatpush.msra.mxu0 %v1939
          %1961 = vmatpush.msra.mxu0 %v1938
          %1962 = vmatpush.msra.mxu0 %v1937
          %1963 = vmatpush.msra.mxu0 %v1936
          %1964 = vmatpush.msra.mxu0 %v1935
          %1965 = vmatpush.msra.mxu0 %v1934
          %1966 = vmatpush.msra.mxu0 %v1933
          %1967 = vmatpush.msra.mxu0 %v1932
          %1968 = vmatmul.f32.gmra.mxu0 %v1916
          %v1969 = vpop.f32.mrf.mxu0
          %v1970 = vadd.f32 %v1950, %v1969
          %1971 = vmatmul.f32.gmra.mxu0 %v1917
          %v1972 = vpop.f32.mrf.mxu0
          %v1973 = vadd.f32 %v1950, %v1972
          %1974 = vmatmul.f32.gmra.mxu0 %v1918
          %v1975 = vpop.f32.mrf.mxu0
          %v1976 = vadd.f32 %v1950, %v1975
          %1977 = vmatmul.f32.gmra.mxu0 %v1919
          %v1978 = vpop.f32.mrf.mxu0
          %v1979 = vadd.f32 %v1950, %v1978
          %1980 = vmatmul.f32.gmra.mxu0 %v1920
          %v1981 = vpop.f32.mrf.mxu0
          %v1982 = vadd.f32 %v1950, %v1981
          %1983 = vmatmul.f32.gmra.mxu0 %v1921
          %v1984 = vpop.f32.mrf.mxu0
          %v1985 = vadd.f32 %v1950, %v1984
          %1986 = vmatmul.f32.gmra.mxu0 %v1922
          %v1987 = vpop.f32.mrf.mxu0
          %v1988 = vadd.f32 %v1950, %v1987
          %1989 = vmatmul.f32.gmra.mxu0 %v1923
          %v1990 = vpop.f32.mrf.mxu0
          %v1991 = vadd.f32 %v1950, %v1990
          %1992 = vmatmul.f32.gmra.mxu0 %v1924
          %v1993 = vpop.f32.mrf.mxu0
          %v1994 = vadd.f32 %v1950, %v1993
          %1995 = vmatmul.f32.gmra.mxu0 %v1925
          %v1996 = vpop.f32.mrf.mxu0
          %v1997 = vadd.f32 %v1950, %v1996
          %1998 = vmatmul.f32.gmra.mxu0 %v1926
          %v1999 = vpop.f32.mrf.mxu0
          %v2000 = vadd.f32 %v1950, %v1999
          %2001 = vmatmul.f32.gmra.mxu0 %v1927
          %v2002 = vpop.f32.mrf.mxu0
          %v2003 = vadd.f32 %v1950, %v2002
          %2004 = vmatmul.f32.gmra.mxu0 %v1928
          %v2005 = vpop.f32.mrf.mxu0
          %v2006 = vadd.f32 %v1950, %v2005
          %2007 = vmatmul.f32.gmra.mxu0 %v1929
          %v2008 = vpop.f32.mrf.mxu0
          %v2009 = vadd.f32 %v1950, %v2008
          %2010 = vmatmul.f32.gmra.mxu0 %v1930
          %v2011 = vpop.f32.mrf.mxu0
          %v2012 = vadd.f32 %v1950, %v2011
          %2013 = vmatmul.f32.gmra.mxu0 %v1931
          %v2014 = vpop.f32.mrf.mxu0
          %v2015 = vadd.f32 %v1950, %v2014
          %2016 = vdwg.mxu0
          %v2017 = vld [vmem:[%s804] sm:$0xff]
          %v2018 = vld [vmem:[%s804 + $0x8] sm:$0xff]
          %v2019 = vld [vmem:[%s804 + $0x10] sm:$0xff]
          %v2020 = vld [vmem:[%s804 + $0x18] sm:$0xff]
          %v2021 = vld [vmem:[%s804 + $0x20] sm:$0xff]
          %v2022 = vld [vmem:[%s804 + $0x28] sm:$0xff]
          %v2023 = vld [vmem:[%s804 + $0x30] sm:$0xff]
          %v2024 = vld [vmem:[%s804 + $0x38] sm:$0xff]
          %v2025 = vld [vmem:[%s804 + $0x40] sm:$0xff]
          %v2026 = vld [vmem:[%s804 + $0x48] sm:$0xff]
          %v2027 = vld [vmem:[%s804 + $0x50] sm:$0xff]
          %v2028 = vld [vmem:[%s804 + $0x58] sm:$0xff]
          %v2029 = vld [vmem:[%s804 + $0x60] sm:$0xff]
          %v2030 = vld [vmem:[%s804 + $0x68] sm:$0xff]
          %v2031 = vld [vmem:[%s804 + $0x70] sm:$0xff]
          %v2032 = vld [vmem:[%s804 + $0x78] sm:$0xff]
          %2033 = vset.pattern.permute.xlu0 0
          %2034 = vperm.xlu0 %2033, %v2017
          %v2035 = vpop.permute.xlu0 %2034
          %2036 = vset.pattern.permute.xlu0 0
          %2037 = vperm.xlu0 %2036, %v2018
          %v2038 = vpop.permute.xlu0 %2037
          %2039 = vset.pattern.permute.xlu0 0
          %2040 = vperm.xlu0 %2039, %v2019
          %v2041 = vpop.permute.xlu0 %2040
          %2042 = vset.pattern.permute.xlu0 0
          %2043 = vperm.xlu0 %2042, %v2020
          %v2044 = vpop.permute.xlu0 %2043
          %2045 = vset.pattern.permute.xlu0 0
          %2046 = vperm.xlu0 %2045, %v2021
          %v2047 = vpop.permute.xlu0 %2046
          %2048 = vset.pattern.permute.xlu0 0
          %2049 = vperm.xlu0 %2048, %v2022
          %v2050 = vpop.permute.xlu0 %2049
          %2051 = vset.pattern.permute.xlu0 0
          %2052 = vperm.xlu0 %2051, %v2023
          %v2053 = vpop.permute.xlu0 %2052
          %2054 = vset.pattern.permute.xlu0 0
          %2055 = vperm.xlu0 %2054, %v2024
          %v2056 = vpop.permute.xlu0 %2055
          %2057 = vset.pattern.permute.xlu0 0
          %2058 = vperm.xlu0 %2057, %v2025
          %v2059 = vpop.permute.xlu0 %2058
          %2060 = vset.pattern.permute.xlu0 0
          %2061 = vperm.xlu0 %2060, %v2026
          %v2062 = vpop.permute.xlu0 %2061
          %2063 = vset.pattern.permute.xlu0 0
          %2064 = vperm.xlu0 %2063, %v2027
          %v2065 = vpop.permute.xlu0 %2064
          %2066 = vset.pattern.permute.xlu0 0
          %2067 = vperm.xlu0 %2066, %v2028
          %v2068 = vpop.permute.xlu0 %2067
          %2069 = vset.pattern.permute.xlu0 0
          %2070 = vperm.xlu0 %2069, %v2029
          %v2071 = vpop.permute.xlu0 %2070
          %2072 = vset.pattern.permute.xlu0 0
          %2073 = vperm.xlu0 %2072, %v2030
          %v2074 = vpop.permute.xlu0 %2073
          %2075 = vset.pattern.permute.xlu0 0
          %2076 = vperm.xlu0 %2075, %v2031
          %v2077 = vpop.permute.xlu0 %2076
          %2078 = vset.pattern.permute.xlu0 0
          %2079 = vperm.xlu0 %2078, %v2032
          %v2080 = vpop.permute.xlu0 %2079
          %vm2081 = vcmp.eq.s32.totalorder %v1169, %v2035
          %vm2082 = vcmp.eq.s32.totalorder %v1169, %v2038
          %vm2083 = vcmp.eq.s32.totalorder %v1169, %v2041
          %vm2084 = vcmp.eq.s32.totalorder %v1169, %v2044
          %vm2085 = vcmp.eq.s32.totalorder %v1169, %v2047
          %vm2086 = vcmp.eq.s32.totalorder %v1169, %v2050
          %vm2087 = vcmp.eq.s32.totalorder %v1169, %v2053
          %vm2088 = vcmp.eq.s32.totalorder %v1169, %v2056
          %vm2089 = vcmp.eq.s32.totalorder %v1169, %v2059
          %vm2090 = vcmp.eq.s32.totalorder %v1169, %v2062
          %vm2091 = vcmp.eq.s32.totalorder %v1169, %v2065
          %vm2092 = vcmp.eq.s32.totalorder %v1169, %v2068
          %vm2093 = vcmp.eq.s32.totalorder %v1169, %v2071
          %vm2094 = vcmp.eq.s32.totalorder %v1169, %v2074
          %vm2095 = vcmp.eq.s32.totalorder %v1169, %v2077
          %vm2096 = vcmp.eq.s32.totalorder %v1169, %v2080
          %v2097 = vsel %vm2081, 1, 0
          %v2098 = vsel %vm2082, 1, 0
          %v2099 = vsel %vm2083, 1, 0
          %v2100 = vsel %vm2084, 1, 0
          %v2101 = vsel %vm2085, 1, 0
          %v2102 = vsel %vm2086, 1, 0
          %v2103 = vsel %vm2087, 1, 0
          %v2104 = vsel %vm2088, 1, 0
          %v2105 = vsel %vm2089, 1, 0
          %v2106 = vsel %vm2090, 1, 0
          %v2107 = vsel %vm2091, 1, 0
          %v2108 = vsel %vm2092, 1, 0
          %v2109 = vsel %vm2093, 1, 0
          %v2110 = vsel %vm2094, 1, 0
          %v2111 = vsel %vm2095, 1, 0
          %v2112 = vsel %vm2096, 1, 0
          %v2113 = vcvt.s32.f32 %v2097
          %v2114 = vcvt.s32.f32 %v2098
          %v2115 = vcvt.s32.f32 %v2099
          %v2116 = vcvt.s32.f32 %v2100
          %v2117 = vcvt.s32.f32 %v2101
          %v2118 = vcvt.s32.f32 %v2102
          %v2119 = vcvt.s32.f32 %v2103
          %v2120 = vcvt.s32.f32 %v2104
          %v2121 = vcvt.s32.f32 %v2105
          %v2122 = vcvt.s32.f32 %v2106
          %v2123 = vcvt.s32.f32 %v2107
          %v2124 = vcvt.s32.f32 %v2108
          %v2125 = vcvt.s32.f32 %v2109
          %v2126 = vcvt.s32.f32 %v2110
          %v2127 = vcvt.s32.f32 %v2111
          %v2128 = vcvt.s32.f32 %v2112
          %v2129 = vld [vmem:[%s4] sm:$0xff]
          %v2130 = vld [vmem:[%s4 + $0x8] sm:$0xff]
          %v2131 = vld [vmem:[%s4 + $0x10] sm:$0xff]
          %v2132 = vld [vmem:[%s4 + $0x18] sm:$0xff]
          %v2133 = vld [vmem:[%s4 + $0x20] sm:$0xff]
          %v2134 = vld [vmem:[%s4 + $0x28] sm:$0xff]
          %v2135 = vld [vmem:[%s4 + $0x30] sm:$0xff]
          %v2136 = vld [vmem:[%s4 + $0x38] sm:$0xff]
          %v2137 = vld [vmem:[%s4 + $0x40] sm:$0xff]
          %v2138 = vld [vmem:[%s4 + $0x48] sm:$0xff]
          %v2139 = vld [vmem:[%s4 + $0x50] sm:$0xff]
          %v2140 = vld [vmem:[%s4 + $0x58] sm:$0xff]
          %v2141 = vld [vmem:[%s4 + $0x60] sm:$0xff]
          %v2142 = vld [vmem:[%s4 + $0x68] sm:$0xff]
          %v2143 = vld [vmem:[%s4 + $0x70] sm:$0xff]
          %v2144 = vld [vmem:[%s4 + $0x78] sm:$0xff]
          %2145 = vmatpush.msra.mxu0 %v2144
          %2146 = vmatpush.msra.mxu0 %v2143
          %2147 = vmatpush.msra.mxu0 %v2142
          %2148 = vmatpush.msra.mxu0 %v2141
          %2149 = vmatpush.msra.mxu0 %v2140
          %2150 = vmatpush.msra.mxu0 %v2139
          %2151 = vmatpush.msra.mxu0 %v2138
          %2152 = vmatpush.msra.mxu0 %v2137
          %2153 = vmatpush.msra.mxu0 %v2136
          %2154 = vmatpush.msra.mxu0 %v2135
          %2155 = vmatpush.msra.mxu0 %v2134
          %2156 = vmatpush.msra.mxu0 %v2133
          %2157 = vmatpush.msra.mxu0 %v2132
          %2158 = vmatpush.msra.mxu0 %v2131
          %2159 = vmatpush.msra.mxu0 %v2130
          %2160 = vmatpush.msra.mxu0 %v2129
          %2161 = vmatmul.f32.gmra.mxu0 %v2113
          %v2162 = vpop.f32.mrf.mxu0
          %v2163 = vadd.f32 0.0, %v2162
          %2164 = vmatmul.f32.gmra.mxu0 %v2114
          %v2165 = vpop.f32.mrf.mxu0
          %v2166 = vadd.f32 0.0, %v2165
          %2167 = vmatmul.f32.gmra.mxu0 %v2115
          %v2168 = vpop.f32.mrf.mxu0
          %v2169 = vadd.f32 0.0, %v2168
          %2170 = vmatmul.f32.gmra.mxu0 %v2116
          %v2171 = vpop.f32.mrf.mxu0
          %v2172 = vadd.f32 0.0, %v2171
          %2173 = vmatmul.f32.gmra.mxu0 %v2117
          %v2174 = vpop.f32.mrf.mxu0
          %v2175 = vadd.f32 0.0, %v2174
          %2176 = vmatmul.f32.gmra.mxu0 %v2118
          %v2177 = vpop.f32.mrf.mxu0
          %v2178 = vadd.f32 0.0, %v2177
          %2179 = vmatmul.f32.gmra.mxu0 %v2119
          %v2180 = vpop.f32.mrf.mxu0
          %v2181 = vadd.f32 0.0, %v2180
          %2182 = vmatmul.f32.gmra.mxu0 %v2120
          %v2183 = vpop.f32.mrf.mxu0
          %v2184 = vadd.f32 0.0, %v2183
          %2185 = vmatmul.f32.gmra.mxu0 %v2121
          %v2186 = vpop.f32.mrf.mxu0
          %v2187 = vadd.f32 0.0, %v2186
          %2188 = vmatmul.f32.gmra.mxu0 %v2122
          %v2189 = vpop.f32.mrf.mxu0
          %v2190 = vadd.f32 0.0, %v2189
          %2191 = vmatmul.f32.gmra.mxu0 %v2123
          %v2192 = vpop.f32.mrf.mxu0
          %v2193 = vadd.f32 0.0, %v2192
          %2194 = vmatmul.f32.gmra.mxu0 %v2124
          %v2195 = vpop.f32.mrf.mxu0
          %v2196 = vadd.f32 0.0, %v2195
          %2197 = vmatmul.f32.gmra.mxu0 %v2125
          %v2198 = vpop.f32.mrf.mxu0
          %v2199 = vadd.f32 0.0, %v2198
          %2200 = vmatmul.f32.gmra.mxu0 %v2126
          %v2201 = vpop.f32.mrf.mxu0
          %v2202 = vadd.f32 0.0, %v2201
          %2203 = vmatmul.f32.gmra.mxu0 %v2127
          %v2204 = vpop.f32.mrf.mxu0
          %v2205 = vadd.f32 0.0, %v2204
          %2206 = vmatmul.f32.gmra.mxu0 %v2128
          %v2207 = vpop.f32.mrf.mxu0
          %v2208 = vadd.f32 0.0, %v2207
          %2209 = vdwg.mxu0
          %2211 = vset.pattern.permute.xlu0 0
          %2212 = vperm.xlu0 %2211, %v1517
          %v2213 = vpop.permute.xlu0 %2212
          %2216 = vset.pattern.permute.xlu0 0
          %2217 = vperm.xlu0 %2216, %v1518
          %v2218 = vpop.permute.xlu0 %2217
          %2221 = vset.pattern.permute.xlu0 0
          %2222 = vperm.xlu0 %2221, %v1519
          %v2223 = vpop.permute.xlu0 %2222
          %2226 = vset.pattern.permute.xlu0 0
          %2227 = vperm.xlu0 %2226, %v1520
          %v2228 = vpop.permute.xlu0 %2227
          %2231 = vset.pattern.permute.xlu0 0
          %2232 = vperm.xlu0 %2231, %v1521
          %v2233 = vpop.permute.xlu0 %2232
          %2236 = vset.pattern.permute.xlu0 0
          %2237 = vperm.xlu0 %2236, %v1522
          %v2238 = vpop.permute.xlu0 %2237
          %2241 = vset.pattern.permute.xlu0 0
          %2242 = vperm.xlu0 %2241, %v1523
          %v2243 = vpop.permute.xlu0 %2242
          %2246 = vset.pattern.permute.xlu0 0
          %2247 = vperm.xlu0 %2246, %v1524
          %v2248 = vpop.permute.xlu0 %2247
          %2251 = vset.pattern.permute.xlu0 0
          %2252 = vperm.xlu0 %2251, %v1525
          %v2253 = vpop.permute.xlu0 %2252
          %2256 = vset.pattern.permute.xlu0 0
          %2257 = vperm.xlu0 %2256, %v1526
          %v2258 = vpop.permute.xlu0 %2257
          %2261 = vset.pattern.permute.xlu0 0
          %2262 = vperm.xlu0 %2261, %v1527
          %v2263 = vpop.permute.xlu0 %2262
          %2266 = vset.pattern.permute.xlu0 0
          %2267 = vperm.xlu0 %2266, %v1528
          %v2268 = vpop.permute.xlu0 %2267
          %2271 = vset.pattern.permute.xlu0 0
          %2272 = vperm.xlu0 %2271, %v1529
          %v2273 = vpop.permute.xlu0 %2272
          %2276 = vset.pattern.permute.xlu0 0
          %2277 = vperm.xlu0 %2276, %v1530
          %v2278 = vpop.permute.xlu0 %2277
          %2281 = vset.pattern.permute.xlu0 0
          %2282 = vperm.xlu0 %2281, %v1531
          %v2283 = vpop.permute.xlu0 %2282
          %2286 = vset.pattern.permute.xlu0 0
          %2287 = vperm.xlu0 %2286, %v1532
          %v2288 = vpop.permute.xlu0 %2287
          %v2290 = vmul.f32 %v2213, %v1970
          %v2291 = vmul.f32 %v2218, %v1973
          %v2292 = vmul.f32 %v2223, %v1976
          %v2293 = vmul.f32 %v2228, %v1979
          %v2294 = vmul.f32 %v2233, %v1982
          %v2295 = vmul.f32 %v2238, %v1985
          %v2296 = vmul.f32 %v2243, %v1988
          %v2297 = vmul.f32 %v2248, %v1991
          %v2298 = vmul.f32 %v2253, %v1994
          %v2299 = vmul.f32 %v2258, %v1997
          %v2300 = vmul.f32 %v2263, %v2000
          %v2301 = vmul.f32 %v2268, %v2003
          %v2302 = vmul.f32 %v2273, %v2006
          %v2303 = vmul.f32 %v2278, %v2009
          %v2304 = vmul.f32 %v2283, %v2012
          %v2305 = vmul.f32 %v2288, %v2015
          %v2306 = vmul.f32 %v2290, %v2163
          %v2307 = vmul.f32 %v2291, %v2166
          %v2308 = vmul.f32 %v2292, %v2169
          %v2309 = vmul.f32 %v2293, %v2172
          %v2310 = vmul.f32 %v2294, %v2175
          %v2311 = vmul.f32 %v2295, %v2178
          %v2312 = vmul.f32 %v2296, %v2181
          %v2313 = vmul.f32 %v2297, %v2184
          %v2314 = vmul.f32 %v2298, %v2187
          %v2315 = vmul.f32 %v2299, %v2190
          %v2316 = vmul.f32 %v2300, %v2193
          %v2317 = vmul.f32 %v2301, %v2196
          %v2318 = vmul.f32 %v2302, %v2199
          %v2319 = vmul.f32 %v2303, %v2202
          %v2320 = vmul.f32 %v2304, %v2205
          %v2321 = vmul.f32 %v2305, %v2208
          %v2322 = vld [vmem:[#allocation4] sm:$0xff]
          %v2323 = vld [vmem:[#allocation4 + $0x8] sm:$0xff]
          %v2324 = vld [vmem:[#allocation4 + $0x10] sm:$0xff]
          %v2325 = vld [vmem:[#allocation4 + $0x18] sm:$0xff]
          %v2326 = vld [vmem:[#allocation4 + $0x20] sm:$0xff]
          %v2327 = vld [vmem:[#allocation4 + $0x28] sm:$0xff]
          %v2328 = vld [vmem:[#allocation4 + $0x30] sm:$0xff]
          %v2329 = vld [vmem:[#allocation4 + $0x38] sm:$0xff]
          %v2330 = vld [vmem:[#allocation4 + $0x40] sm:$0xff]
          %v2331 = vld [vmem:[#allocation4 + $0x48] sm:$0xff]
          %v2332 = vld [vmem:[#allocation4 + $0x50] sm:$0xff]
          %v2333 = vld [vmem:[#allocation4 + $0x58] sm:$0xff]
          %v2334 = vld [vmem:[#allocation4 + $0x60] sm:$0xff]
          %v2335 = vld [vmem:[#allocation4 + $0x68] sm:$0xff]
          %v2336 = vld [vmem:[#allocation4 + $0x70] sm:$0xff]
          %v2337 = vld [vmem:[#allocation4 + $0x78] sm:$0xff]
          %2338 = vmatpush.msra.mxu0 %v2321
          %2339 = vmatpush.msra.mxu0 %v2320
          %2340 = vmatpush.msra.mxu0 %v2319
          %2341 = vmatpush.msra.mxu0 %v2318
          %2342 = vmatpush.msra.mxu0 %v2317
          %2343 = vmatpush.msra.mxu0 %v2316
          %2344 = vmatpush.msra.mxu0 %v2315
          %2345 = vmatpush.msra.mxu0 %v2314
          %2346 = vmatpush.msra.mxu0 %v2313
          %2347 = vmatpush.msra.mxu0 %v2312
          %2348 = vmatpush.msra.mxu0 %v2311
          %2349 = vmatpush.msra.mxu0 %v2310
          %2350 = vmatpush.msra.mxu0 %v2309
          %2351 = vmatpush.msra.mxu0 %v2308
          %2352 = vmatpush.msra.mxu0 %v2307
          %2353 = vmatpush.msra.mxu0 %v2306
          %2354 = vmatmul.f32.gmra.mxu0 %v1584
          %v2355 = vpop.f32.mrf.mxu0
          %v2356 = vadd.f32 0.0, %v2355
          %2357 = vmatmul.f32.gmra.mxu0 %v1585
          %v2358 = vpop.f32.mrf.mxu0
          %v2359 = vadd.f32 0.0, %v2358
          %2360 = vmatmul.f32.gmra.mxu0 %v1586
          %v2361 = vpop.f32.mrf.mxu0
          %v2362 = vadd.f32 0.0, %v2361
          %2363 = vmatmul.f32.gmra.mxu0 %v1587
          %v2364 = vpop.f32.mrf.mxu0
          %v2365 = vadd.f32 0.0, %v2364
          %2366 = vmatmul.f32.gmra.mxu0 %v1588
          %v2367 = vpop.f32.mrf.mxu0
          %v2368 = vadd.f32 0.0, %v2367
          %2369 = vmatmul.f32.gmra.mxu0 %v1589
          %v2370 = vpop.f32.mrf.mxu0
          %v2371 = vadd.f32 0.0, %v2370
          %2372 = vmatmul.f32.gmra.mxu0 %v1590
          %v2373 = vpop.f32.mrf.mxu0
          %v2374 = vadd.f32 0.0, %v2373
          %2375 = vmatmul.f32.gmra.mxu0 %v1591
          %v2376 = vpop.f32.mrf.mxu0
          %v2377 = vadd.f32 0.0, %v2376
          %2378 = vmatmul.f32.gmra.mxu0 %v1592
          %v2379 = vpop.f32.mrf.mxu0
          %v2380 = vadd.f32 0.0, %v2379
          %2381 = vmatmul.f32.gmra.mxu0 %v1593
          %v2382 = vpop.f32.mrf.mxu0
          %v2383 = vadd.f32 0.0, %v2382
          %2384 = vmatmul.f32.gmra.mxu0 %v1594
          %v2385 = vpop.f32.mrf.mxu0
          %v2386 = vadd.f32 0.0, %v2385
          %2387 = vmatmul.f32.gmra.mxu0 %v1595
          %v2388 = vpop.f32.mrf.mxu0
          %v2389 = vadd.f32 0.0, %v2388
          %2390 = vmatmul.f32.gmra.mxu0 %v1596
          %v2391 = vpop.f32.mrf.mxu0
          %v2392 = vadd.f32 0.0, %v2391
          %2393 = vmatmul.f32.gmra.mxu0 %v1597
          %v2394 = vpop.f32.mrf.mxu0
          %v2395 = vadd.f32 0.0, %v2394
          %2396 = vmatmul.f32.gmra.mxu0 %v1598
          %v2397 = vpop.f32.mrf.mxu0
          %v2398 = vadd.f32 0.0, %v2397
          %2399 = vmatmul.f32.gmra.mxu0 %v1599
          %v2400 = vpop.f32.mrf.mxu0
          %v2401 = vadd.f32 0.0, %v2400
          %2402 = vdwg.mxu0
          %v2403 = vadd.f32 %v2322, %v2356
          %v2404 = vadd.f32 %v2323, %v2359
          %v2405 = vadd.f32 %v2324, %v2362
          %v2406 = vadd.f32 %v2325, %v2365
          %v2407 = vadd.f32 %v2326, %v2368
          %v2408 = vadd.f32 %v2327, %v2371
          %v2409 = vadd.f32 %v2328, %v2374
          %v2410 = vadd.f32 %v2329, %v2377
          %v2411 = vadd.f32 %v2330, %v2380
          %v2412 = vadd.f32 %v2331, %v2383
          %v2413 = vadd.f32 %v2332, %v2386
          %v2414 = vadd.f32 %v2333, %v2389
          %v2415 = vadd.f32 %v2334, %v2392
          %v2416 = vadd.f32 %v2335, %v2395
          %v2417 = vadd.f32 %v2336, %v2398
          %v2418 = vadd.f32 %v2337, %v2401
          %2419 = vst [vmem:[#allocation4] sm:$0xff] %v2403
          %2420 = vst [vmem:[#allocation4 + $0x8] sm:$0xff] %v2404
          %2421 = vst [vmem:[#allocation4 + $0x10] sm:$0xff] %v2405
          %2422 = vst [vmem:[#allocation4 + $0x18] sm:$0xff] %v2406
          %2423 = vst [vmem:[#allocation4 + $0x20] sm:$0xff] %v2407
          %2424 = vst [vmem:[#allocation4 + $0x28] sm:$0xff] %v2408
          %2425 = vst [vmem:[#allocation4 + $0x30] sm:$0xff] %v2409
          %2426 = vst [vmem:[#allocation4 + $0x38] sm:$0xff] %v2410
          %2427 = vst [vmem:[#allocation4 + $0x40] sm:$0xff] %v2411
          %2428 = vst [vmem:[#allocation4 + $0x48] sm:$0xff] %v2412
          %2429 = vst [vmem:[#allocation4 + $0x50] sm:$0xff] %v2413
          %2430 = vst [vmem:[#allocation4 + $0x58] sm:$0xff] %v2414
          %2431 = vst [vmem:[#allocation4 + $0x60] sm:$0xff] %v2415
          %2432 = vst [vmem:[#allocation4 + $0x68] sm:$0xff] %v2416
          %2433 = vst [vmem:[#allocation4 + $0x70] sm:$0xff] %v2417
          %2434 = vst [vmem:[#allocation4 + $0x78] sm:$0xff] %v2418
        $region136: #{tpu_custom_call.1} parent=111 // pred_fallthru
          _
        %p2435 = scmp.eq.s32.totalorder %s42, 2
        %p2436 = pnand %p1317, %p2435
        %p2437 = pneg %p2436
        // Predicated region
        $region137: #{tpu_custom_call.1} parent=111 // pred_check
          _
        $region138: #{tpu_custom_call.1} parent=111 // pred_check_branch
          %2439 = sbr.rel (%p2436) target = $region140
        $region139: #{tpu_custom_call.1} parent=111 // pred_region
          %v2440 = vld [vmem:[#allocation3] sm:$0xff]
          %v2441 = vld [vmem:[#allocation3 + $0x8] sm:$0xff]
          %v2442 = vld [vmem:[#allocation3 + $0x10] sm:$0xff]
          %v2443 = vld [vmem:[#allocation3 + $0x18] sm:$0xff]
          %v2444 = vld [vmem:[#allocation3 + $0x20] sm:$0xff]
          %v2445 = vld [vmem:[#allocation3 + $0x28] sm:$0xff]
          %v2446 = vld [vmem:[#allocation3 + $0x30] sm:$0xff]
          %v2447 = vld [vmem:[#allocation3 + $0x38] sm:$0xff]
          %v2448 = vld [vmem:[#allocation3 + $0x40] sm:$0xff]
          %v2449 = vld [vmem:[#allocation3 + $0x48] sm:$0xff]
          %v2450 = vld [vmem:[#allocation3 + $0x50] sm:$0xff]
          %v2451 = vld [vmem:[#allocation3 + $0x58] sm:$0xff]
          %v2452 = vld [vmem:[#allocation3 + $0x60] sm:$0xff]
          %v2453 = vld [vmem:[#allocation3 + $0x68] sm:$0xff]
          %v2454 = vld [vmem:[#allocation3 + $0x70] sm:$0xff]
          %v2455 = vld [vmem:[#allocation3 + $0x78] sm:$0xff]
          %v2456 = vld [vmem:[#allocation4] sm:$0xff]
          %v2457 = vld [vmem:[#allocation4 + $0x8] sm:$0xff]
          %v2458 = vld [vmem:[#allocation4 + $0x10] sm:$0xff]
          %v2459 = vld [vmem:[#allocation4 + $0x18] sm:$0xff]
          %v2460 = vld [vmem:[#allocation4 + $0x20] sm:$0xff]
          %v2461 = vld [vmem:[#allocation4 + $0x28] sm:$0xff]
          %v2462 = vld [vmem:[#allocation4 + $0x30] sm:$0xff]
          %v2463 = vld [vmem:[#allocation4 + $0x38] sm:$0xff]
          %v2464 = vld [vmem:[#allocation4 + $0x40] sm:$0xff]
          %v2465 = vld [vmem:[#allocation4 + $0x48] sm:$0xff]
          %v2466 = vld [vmem:[#allocation4 + $0x50] sm:$0xff]
          %v2467 = vld [vmem:[#allocation4 + $0x58] sm:$0xff]
          %v2468 = vld [vmem:[#allocation4 + $0x60] sm:$0xff]
          %v2469 = vld [vmem:[#allocation4 + $0x68] sm:$0xff]
          %v2470 = vld [vmem:[#allocation4 + $0x70] sm:$0xff]
          %v2471 = vld [vmem:[#allocation4 + $0x78] sm:$0xff]
          %vm2472 = vcmp.gt.f32.partialorder %v2440, 0.0
          %vm2473 = vcmp.gt.f32.partialorder %v2441, 0.0
          %vm2474 = vcmp.gt.f32.partialorder %v2442, 0.0
          %vm2475 = vcmp.gt.f32.partialorder %v2443, 0.0
          %vm2476 = vcmp.gt.f32.partialorder %v2444, 0.0
          %vm2477 = vcmp.gt.f32.partialorder %v2445, 0.0
          %vm2478 = vcmp.gt.f32.partialorder %v2446, 0.0
          %vm2479 = vcmp.gt.f32.partialorder %v2447, 0.0
          %vm2480 = vcmp.gt.f32.partialorder %v2448, 0.0
          %vm2481 = vcmp.gt.f32.partialorder %v2449, 0.0
          %vm2482 = vcmp.gt.f32.partialorder %v2450, 0.0
          %vm2483 = vcmp.gt.f32.partialorder %v2451, 0.0
          %vm2484 = vcmp.gt.f32.partialorder %v2452, 0.0
          %vm2485 = vcmp.gt.f32.partialorder %v2453, 0.0
          %vm2486 = vcmp.gt.f32.partialorder %v2454, 0.0
          %vm2487 = vcmp.gt.f32.partialorder %v2455, 0.0
          %v2488 = vsel %vm2472, %v2440, 1.0
          %v2489 = vsel %vm2473, %v2441, 1.0
          %v2490 = vsel %vm2474, %v2442, 1.0
          %v2491 = vsel %vm2475, %v2443, 1.0
          %v2492 = vsel %vm2476, %v2444, 1.0
          %v2493 = vsel %vm2477, %v2445, 1.0
          %v2494 = vsel %vm2478, %v2446, 1.0
          %v2495 = vsel %vm2479, %v2447, 1.0
          %v2496 = vsel %vm2480, %v2448, 1.0
          %v2497 = vsel %vm2481, %v2449, 1.0
          %v2498 = vsel %vm2482, %v2450, 1.0
          %v2499 = vsel %vm2483, %v2451, 1.0
          %v2500 = vsel %vm2484, %v2452, 1.0
          %v2501 = vsel %vm2485, %v2453, 1.0
          %v2502 = vsel %vm2486, %v2454, 1.0
          %v2503 = vsel %vm2487, %v2455, 1.0
          %2505 = vset.pattern.permute.xlu0 0
          %2506 = vperm.xlu0 %2505, %v2488
          %v2507 = vpop.permute.xlu0 %2506
          %2510 = vset.pattern.permute.xlu0 0
          %2511 = vperm.xlu0 %2510, %v2489
          %v2512 = vpop.permute.xlu0 %2511
          %2515 = vset.pattern.permute.xlu0 0
          %2516 = vperm.xlu0 %2515, %v2490
          %v2517 = vpop.permute.xlu0 %2516
          %2520 = vset.pattern.permute.xlu0 0
          %2521 = vperm.xlu0 %2520, %v2491
          %v2522 = vpop.permute.xlu0 %2521
          %2525 = vset.pattern.permute.xlu0 0
          %2526 = vperm.xlu0 %2525, %v2492
          %v2527 = vpop.permute.xlu0 %2526
          %2530 = vset.pattern.permute.xlu0 0
          %2531 = vperm.xlu0 %2530, %v2493
          %v2532 = vpop.permute.xlu0 %2531
          %2535 = vset.pattern.permute.xlu0 0
          %2536 = vperm.xlu0 %2535, %v2494
          %v2537 = vpop.permute.xlu0 %2536
          %2540 = vset.pattern.permute.xlu0 0
          %2541 = vperm.xlu0 %2540, %v2495
          %v2542 = vpop.permute.xlu0 %2541
          %2545 = vset.pattern.permute.xlu0 0
          %2546 = vperm.xlu0 %2545, %v2496
          %v2547 = vpop.permute.xlu0 %2546
          %2550 = vset.pattern.permute.xlu0 0
          %2551 = vperm.xlu0 %2550, %v2497
          %v2552 = vpop.permute.xlu0 %2551
          %2555 = vset.pattern.permute.xlu0 0
          %2556 = vperm.xlu0 %2555, %v2498
          %v2557 = vpop.permute.xlu0 %2556
          %2560 = vset.pattern.permute.xlu0 0
          %2561 = vperm.xlu0 %2560, %v2499
          %v2562 = vpop.permute.xlu0 %2561
          %2565 = vset.pattern.permute.xlu0 0
          %2566 = vperm.xlu0 %2565, %v2500
          %v2567 = vpop.permute.xlu0 %2566
          %2570 = vset.pattern.permute.xlu0 0
          %2571 = vperm.xlu0 %2570, %v2501
          %v2572 = vpop.permute.xlu0 %2571
          %2575 = vset.pattern.permute.xlu0 0
          %2576 = vperm.xlu0 %2575, %v2502
          %v2577 = vpop.permute.xlu0 %2576
          %2580 = vset.pattern.permute.xlu0 0
          %2581 = vperm.xlu0 %2580, %v2503
          %v2582 = vpop.permute.xlu0 %2581
          %v2584 = vrcp.pop %v2507
          %v2585 = vmul.f32 %v2507, %v2584
          %v2586 = vsub.f32 1.0, %v2585
          %v2587 = vmul.f32 %v2584, %v2586
          %v2588 = vadd.f32 %v2584, %v2587
          %vm2589 = vweird.f32 %v2507
          %vm2590 = vweird.f32 %v2584
          %vm2591 = vmor %vm2589, %vm2590
          %v2592 = vsel %vm2591, %v2584, %v2588
          %v2593 = vand.u32 2147483647, %v2507
          %vm2594 = vcmp.eq.f32.partialorder %v2593, 8.507059e+37
          %v2595 = vand.u32 %v2507, 2147483648
          %v2596 = vor.u32 1.1754944e-38, %v2595
          %v2597 = vsel %vm2594, %v2596, %v2592
          %v2598 = vmul.f32 %v2456, %v2597
          %v2599 = vrcp.pop %v2512
          %v2600 = vmul.f32 %v2512, %v2599
          %v2601 = vsub.f32 1.0, %v2600
          %v2602 = vmul.f32 %v2599, %v2601
          %v2603 = vadd.f32 %v2599, %v2602
          %vm2604 = vweird.f32 %v2512
          %vm2605 = vweird.f32 %v2599
          %vm2606 = vmor %vm2604, %vm2605
          %v2607 = vsel %vm2606, %v2599, %v2603
          %v2608 = vand.u32 2147483647, %v2512
          %vm2609 = vcmp.eq.f32.partialorder %v2608, 8.507059e+37
          %v2610 = vand.u32 %v2512, 2147483648
          %v2611 = vor.u32 1.1754944e-38, %v2610
          %v2612 = vsel %vm2609, %v2611, %v2607
          %v2613 = vmul.f32 %v2457, %v2612
          %v2614 = vrcp.pop %v2517
          %v2615 = vmul.f32 %v2517, %v2614
          %v2616 = vsub.f32 1.0, %v2615
          %v2617 = vmul.f32 %v2614, %v2616
          %v2618 = vadd.f32 %v2614, %v2617
          %vm2619 = vweird.f32 %v2517
          %vm2620 = vweird.f32 %v2614
          %vm2621 = vmor %vm2619, %vm2620
          %v2622 = vsel %vm2621, %v2614, %v2618
          %v2623 = vand.u32 2147483647, %v2517
          %vm2624 = vcmp.eq.f32.partialorder %v2623, 8.507059e+37
          %v2625 = vand.u32 %v2517, 2147483648
          %v2626 = vor.u32 1.1754944e-38, %v2625
          %v2627 = vsel %vm2624, %v2626, %v2622
          %v2628 = vmul.f32 %v2458, %v2627
          %v2629 = vrcp.pop %v2522
          %v2630 = vmul.f32 %v2522, %v2629
          %v2631 = vsub.f32 1.0, %v2630
          %v2632 = vmul.f32 %v2629, %v2631
          %v2633 = vadd.f32 %v2629, %v2632
          %vm2634 = vweird.f32 %v2522
          %vm2635 = vweird.f32 %v2629
          %vm2636 = vmor %vm2634, %vm2635
          %v2637 = vsel %vm2636, %v2629, %v2633
          %v2638 = vand.u32 2147483647, %v2522
          %vm2639 = vcmp.eq.f32.partialorder %v2638, 8.507059e+37
          %v2640 = vand.u32 %v2522, 2147483648
          %v2641 = vor.u32 1.1754944e-38, %v2640
          %v2642 = vsel %vm2639, %v2641, %v2637
          %v2643 = vmul.f32 %v2459, %v2642
          %v2644 = vrcp.pop %v2527
          %v2645 = vmul.f32 %v2527, %v2644
          %v2646 = vsub.f32 1.0, %v2645
          %v2647 = vmul.f32 %v2644, %v2646
          %v2648 = vadd.f32 %v2644, %v2647
          %vm2649 = vweird.f32 %v2527
          %vm2650 = vweird.f32 %v2644
          %vm2651 = vmor %vm2649, %vm2650
          %v2652 = vsel %vm2651, %v2644, %v2648
          %v2653 = vand.u32 2147483647, %v2527
          %vm2654 = vcmp.eq.f32.partialorder %v2653, 8.507059e+37
          %v2655 = vand.u32 %v2527, 2147483648
          %v2656 = vor.u32 1.1754944e-38, %v2655
          %v2657 = vsel %vm2654, %v2656, %v2652
          %v2658 = vmul.f32 %v2460, %v2657
          %v2659 = vrcp.pop %v2532
          %v2660 = vmul.f32 %v2532, %v2659
          %v2661 = vsub.f32 1.0, %v2660
          %v2662 = vmul.f32 %v2659, %v2661
          %v2663 = vadd.f32 %v2659, %v2662
          %vm2664 = vweird.f32 %v2532
          %vm2665 = vweird.f32 %v2659
          %vm2666 = vmor %vm2664, %vm2665
          %v2667 = vsel %vm2666, %v2659, %v2663
          %v2668 = vand.u32 2147483647, %v2532
          %vm2669 = vcmp.eq.f32.partialorder %v2668, 8.507059e+37
          %v2670 = vand.u32 %v2532, 2147483648
          %v2671 = vor.u32 1.1754944e-38, %v2670
          %v2672 = vsel %vm2669, %v2671, %v2667
          %v2673 = vmul.f32 %v2461, %v2672
          %v2674 = vrcp.pop %v2537
          %v2675 = vmul.f32 %v2537, %v2674
          %v2676 = vsub.f32 1.0, %v2675
          %v2677 = vmul.f32 %v2674, %v2676
          %v2678 = vadd.f32 %v2674, %v2677
          %vm2679 = vweird.f32 %v2537
          %vm2680 = vweird.f32 %v2674
          %vm2681 = vmor %vm2679, %vm2680
          %v2682 = vsel %vm2681, %v2674, %v2678
          %v2683 = vand.u32 2147483647, %v2537
          %vm2684 = vcmp.eq.f32.partialorder %v2683, 8.507059e+37
          %v2685 = vand.u32 %v2537, 2147483648
          %v2686 = vor.u32 1.1754944e-38, %v2685
          %v2687 = vsel %vm2684, %v2686, %v2682
          %v2688 = vmul.f32 %v2462, %v2687
          %v2689 = vrcp.pop %v2542
          %v2690 = vmul.f32 %v2542, %v2689
          %v2691 = vsub.f32 1.0, %v2690
          %v2692 = vmul.f32 %v2689, %v2691
          %v2693 = vadd.f32 %v2689, %v2692
          %vm2694 = vweird.f32 %v2542
          %vm2695 = vweird.f32 %v2689
          %vm2696 = vmor %vm2694, %vm2695
          %v2697 = vsel %vm2696, %v2689, %v2693
          %v2698 = vand.u32 2147483647, %v2542
          %vm2699 = vcmp.eq.f32.partialorder %v2698, 8.507059e+37
          %v2700 = vand.u32 %v2542, 2147483648
          %v2701 = vor.u32 1.1754944e-38, %v2700
          %v2702 = vsel %vm2699, %v2701, %v2697
          %v2703 = vmul.f32 %v2463, %v2702
          %v2704 = vrcp.pop %v2547
          %v2705 = vmul.f32 %v2547, %v2704
          %v2706 = vsub.f32 1.0, %v2705
          %v2707 = vmul.f32 %v2704, %v2706
          %v2708 = vadd.f32 %v2704, %v2707
          %vm2709 = vweird.f32 %v2547
          %vm2710 = vweird.f32 %v2704
          %vm2711 = vmor %vm2709, %vm2710
          %v2712 = vsel %vm2711, %v2704, %v2708
          %v2713 = vand.u32 2147483647, %v2547
          %vm2714 = vcmp.eq.f32.partialorder %v2713, 8.507059e+37
          %v2715 = vand.u32 %v2547, 2147483648
          %v2716 = vor.u32 1.1754944e-38, %v2715
          %v2717 = vsel %vm2714, %v2716, %v2712
          %v2718 = vmul.f32 %v2464, %v2717
          %v2719 = vrcp.pop %v2552
          %v2720 = vmul.f32 %v2552, %v2719
          %v2721 = vsub.f32 1.0, %v2720
          %v2722 = vmul.f32 %v2719, %v2721
          %v2723 = vadd.f32 %v2719, %v2722
          %vm2724 = vweird.f32 %v2552
          %vm2725 = vweird.f32 %v2719
          %vm2726 = vmor %vm2724, %vm2725
          %v2727 = vsel %vm2726, %v2719, %v2723
          %v2728 = vand.u32 2147483647, %v2552
          %vm2729 = vcmp.eq.f32.partialorder %v2728, 8.507059e+37
          %v2730 = vand.u32 %v2552, 2147483648
          %v2731 = vor.u32 1.1754944e-38, %v2730
          %v2732 = vsel %vm2729, %v2731, %v2727
          %v2733 = vmul.f32 %v2465, %v2732
          %v2734 = vrcp.pop %v2557
          %v2735 = vmul.f32 %v2557, %v2734
          %v2736 = vsub.f32 1.0, %v2735
          %v2737 = vmul.f32 %v2734, %v2736
          %v2738 = vadd.f32 %v2734, %v2737
          %vm2739 = vweird.f32 %v2557
          %vm2740 = vweird.f32 %v2734
          %vm2741 = vmor %vm2739, %vm2740
          %v2742 = vsel %vm2741, %v2734, %v2738
          %v2743 = vand.u32 2147483647, %v2557
          %vm2744 = vcmp.eq.f32.partialorder %v2743, 8.507059e+37
          %v2745 = vand.u32 %v2557, 2147483648
          %v2746 = vor.u32 1.1754944e-38, %v2745
          %v2747 = vsel %vm2744, %v2746, %v2742
          %v2748 = vmul.f32 %v2466, %v2747
          %v2749 = vrcp.pop %v2562
          %v2750 = vmul.f32 %v2562, %v2749
          %v2751 = vsub.f32 1.0, %v2750
          %v2752 = vmul.f32 %v2749, %v2751
          %v2753 = vadd.f32 %v2749, %v2752
          %vm2754 = vweird.f32 %v2562
          %vm2755 = vweird.f32 %v2749
          %vm2756 = vmor %vm2754, %vm2755
          %v2757 = vsel %vm2756, %v2749, %v2753
          %v2758 = vand.u32 2147483647, %v2562
          %vm2759 = vcmp.eq.f32.partialorder %v2758, 8.507059e+37
          %v2760 = vand.u32 %v2562, 2147483648
          %v2761 = vor.u32 1.1754944e-38, %v2760
          %v2762 = vsel %vm2759, %v2761, %v2757
          %v2763 = vmul.f32 %v2467, %v2762
          %v2764 = vrcp.pop %v2567
          %v2765 = vmul.f32 %v2567, %v2764
          %v2766 = vsub.f32 1.0, %v2765
          %v2767 = vmul.f32 %v2764, %v2766
          %v2768 = vadd.f32 %v2764, %v2767
          %vm2769 = vweird.f32 %v2567
          %vm2770 = vweird.f32 %v2764
          %vm2771 = vmor %vm2769, %vm2770
          %v2772 = vsel %vm2771, %v2764, %v2768
          %v2773 = vand.u32 2147483647, %v2567
          %vm2774 = vcmp.eq.f32.partialorder %v2773, 8.507059e+37
          %v2775 = vand.u32 %v2567, 2147483648
          %v2776 = vor.u32 1.1754944e-38, %v2775
          %v2777 = vsel %vm2774, %v2776, %v2772
          %v2778 = vmul.f32 %v2468, %v2777
          %v2779 = vrcp.pop %v2572
          %v2780 = vmul.f32 %v2572, %v2779
          %v2781 = vsub.f32 1.0, %v2780
          %v2782 = vmul.f32 %v2779, %v2781
          %v2783 = vadd.f32 %v2779, %v2782
          %vm2784 = vweird.f32 %v2572
          %vm2785 = vweird.f32 %v2779
          %vm2786 = vmor %vm2784, %vm2785
          %v2787 = vsel %vm2786, %v2779, %v2783
          %v2788 = vand.u32 2147483647, %v2572
          %vm2789 = vcmp.eq.f32.partialorder %v2788, 8.507059e+37
          %v2790 = vand.u32 %v2572, 2147483648
          %v2791 = vor.u32 1.1754944e-38, %v2790
          %v2792 = vsel %vm2789, %v2791, %v2787
          %v2793 = vmul.f32 %v2469, %v2792
          %v2794 = vrcp.pop %v2577
          %v2795 = vmul.f32 %v2577, %v2794
          %v2796 = vsub.f32 1.0, %v2795
          %v2797 = vmul.f32 %v2794, %v2796
          %v2798 = vadd.f32 %v2794, %v2797
          %vm2799 = vweird.f32 %v2577
          %vm2800 = vweird.f32 %v2794
          %vm2801 = vmor %vm2799, %vm2800
          %v2802 = vsel %vm2801, %v2794, %v2798
          %v2803 = vand.u32 2147483647, %v2577
          %vm2804 = vcmp.eq.f32.partialorder %v2803, 8.507059e+37
          %v2805 = vand.u32 %v2577, 2147483648
          %v2806 = vor.u32 1.1754944e-38, %v2805
          %v2807 = vsel %vm2804, %v2806, %v2802
          %v2808 = vmul.f32 %v2470, %v2807
          %v2809 = vrcp.pop %v2582
          %v2810 = vmul.f32 %v2582, %v2809
          %v2811 = vsub.f32 1.0, %v2810
          %v2812 = vmul.f32 %v2809, %v2811
          %v2813 = vadd.f32 %v2809, %v2812
          %vm2814 = vweird.f32 %v2582
          %vm2815 = vweird.f32 %v2809
          %vm2816 = vmor %vm2814, %vm2815
          %v2817 = vsel %vm2816, %v2809, %v2813
          %v2818 = vand.u32 2147483647, %v2582
          %vm2819 = vcmp.eq.f32.partialorder %v2818, 8.507059e+37
          %v2820 = vand.u32 %v2582, 2147483648
          %v2821 = vor.u32 1.1754944e-38, %v2820
          %v2822 = vsel %vm2819, %v2821, %v2817
          %v2823 = vmul.f32 %v2471, %v2822
          %v2824 = vld [vmem:[%s5] sm:$0xff]
          %v2825 = vld [vmem:[%s5 + $0x8] sm:$0xff]
          %v2826 = vld [vmem:[%s5 + $0x10] sm:$0xff]
          %v2827 = vld [vmem:[%s5 + $0x18] sm:$0xff]
          %v2828 = vld [vmem:[%s5 + $0x20] sm:$0xff]
          %v2829 = vld [vmem:[%s5 + $0x28] sm:$0xff]
          %v2830 = vld [vmem:[%s5 + $0x30] sm:$0xff]
          %v2831 = vld [vmem:[%s5 + $0x38] sm:$0xff]
          %v2832 = vld [vmem:[%s5 + $0x40] sm:$0xff]
          %v2833 = vld [vmem:[%s5 + $0x48] sm:$0xff]
          %v2834 = vld [vmem:[%s5 + $0x50] sm:$0xff]
          %v2835 = vld [vmem:[%s5 + $0x58] sm:$0xff]
          %v2836 = vld [vmem:[%s5 + $0x60] sm:$0xff]
          %v2837 = vld [vmem:[%s5 + $0x68] sm:$0xff]
          %v2838 = vld [vmem:[%s5 + $0x70] sm:$0xff]
          %v2839 = vld [vmem:[%s5 + $0x78] sm:$0xff]
          %v2840 = vld [vmem:[%s10] sm:$0xff]
          %v2841 = vld [vmem:[%s10 + $0x8] sm:$0xff]
          %v2842 = vld [vmem:[%s10 + $0x10] sm:$0xff]
          %v2843 = vld [vmem:[%s10 + $0x18] sm:$0xff]
          %v2844 = vld [vmem:[%s10 + $0x20] sm:$0xff]
          %v2845 = vld [vmem:[%s10 + $0x28] sm:$0xff]
          %v2846 = vld [vmem:[%s10 + $0x30] sm:$0xff]
          %v2847 = vld [vmem:[%s10 + $0x38] sm:$0xff]
          %v2848 = vld [vmem:[%s10 + $0x40] sm:$0xff]
          %v2849 = vld [vmem:[%s10 + $0x48] sm:$0xff]
          %v2850 = vld [vmem:[%s10 + $0x50] sm:$0xff]
          %v2851 = vld [vmem:[%s10 + $0x58] sm:$0xff]
          %v2852 = vld [vmem:[%s10 + $0x60] sm:$0xff]
          %v2853 = vld [vmem:[%s10 + $0x68] sm:$0xff]
          %v2854 = vld [vmem:[%s10 + $0x70] sm:$0xff]
          %v2855 = vld [vmem:[%s10 + $0x78] sm:$0xff]
          %v2856 = vld [vmem:[#allocation8] sm:$0x1]
          %v2858 = vperm.slane %v2856, 0
          %2860 = vmatpush.msra.mxu0 %v2855
          %2861 = vmatpush.msra.mxu0 %v2854
          %2862 = vmatpush.msra.mxu0 %v2853
          %2863 = vmatpush.msra.mxu0 %v2852
          %2864 = vmatpush.msra.mxu0 %v2851
          %2865 = vmatpush.msra.mxu0 %v2850
          %2866 = vmatpush.msra.mxu0 %v2849
          %2867 = vmatpush.msra.mxu0 %v2848
          %2868 = vmatpush.msra.mxu0 %v2847
          %2869 = vmatpush.msra.mxu0 %v2846
          %2870 = vmatpush.msra.mxu0 %v2845
          %2871 = vmatpush.msra.mxu0 %v2844
          %2872 = vmatpush.msra.mxu0 %v2843
          %2873 = vmatpush.msra.mxu0 %v2842
          %2874 = vmatpush.msra.mxu0 %v2841
          %2875 = vmatpush.msra.mxu0 %v2840
          %2876 = vmatmul.f32.gmra.mxu0 %v2824
          %v2877 = vpop.f32.mrf.mxu0
          %v2878 = vadd.f32 %v2858, %v2877
          %2879 = vmatmul.f32.gmra.mxu0 %v2825
          %v2880 = vpop.f32.mrf.mxu0
          %v2881 = vadd.f32 %v2858, %v2880
          %2882 = vmatmul.f32.gmra.mxu0 %v2826
          %v2883 = vpop.f32.mrf.mxu0
          %v2884 = vadd.f32 %v2858, %v2883
          %2885 = vmatmul.f32.gmra.mxu0 %v2827
          %v2886 = vpop.f32.mrf.mxu0
          %v2887 = vadd.f32 %v2858, %v2886
          %2888 = vmatmul.f32.gmra.mxu0 %v2828
          %v2889 = vpop.f32.mrf.mxu0
          %v2890 = vadd.f32 %v2858, %v2889
          %2891 = vmatmul.f32.gmra.mxu0 %v2829
          %v2892 = vpop.f32.mrf.mxu0
          %v2893 = vadd.f32 %v2858, %v2892
          %2894 = vmatmul.f32.gmra.mxu0 %v2830
          %v2895 = vpop.f32.mrf.mxu0
          %v2896 = vadd.f32 %v2858, %v2895
          %2897 = vmatmul.f32.gmra.mxu0 %v2831
          %v2898 = vpop.f32.mrf.mxu0
          %v2899 = vadd.f32 %v2858, %v2898
          %2900 = vmatmul.f32.gmra.mxu0 %v2832
          %v2901 = vpop.f32.mrf.mxu0
          %v2902 = vadd.f32 %v2858, %v2901
          %2903 = vmatmul.f32.gmra.mxu0 %v2833
          %v2904 = vpop.f32.mrf.mxu0
          %v2905 = vadd.f32 %v2858, %v2904
          %2906 = vmatmul.f32.gmra.mxu0 %v2834
          %v2907 = vpop.f32.mrf.mxu0
          %v2908 = vadd.f32 %v2858, %v2907
          %2909 = vmatmul.f32.gmra.mxu0 %v2835
          %v2910 = vpop.f32.mrf.mxu0
          %v2911 = vadd.f32 %v2858, %v2910
          %2912 = vmatmul.f32.gmra.mxu0 %v2836
          %v2913 = vpop.f32.mrf.mxu0
          %v2914 = vadd.f32 %v2858, %v2913
          %2915 = vmatmul.f32.gmra.mxu0 %v2837
          %v2916 = vpop.f32.mrf.mxu0
          %v2917 = vadd.f32 %v2858, %v2916
          %2918 = vmatmul.f32.gmra.mxu0 %v2838
          %v2919 = vpop.f32.mrf.mxu0
          %v2920 = vadd.f32 %v2858, %v2919
          %2921 = vmatmul.f32.gmra.mxu0 %v2839
          %v2922 = vpop.f32.mrf.mxu0
          %v2923 = vadd.f32 %v2858, %v2922
          %2924 = vdwg.mxu0
          %vm2925 = vcmp.gt.f32.partialorder %v2878, 0.0
          %vm2926 = vcmp.gt.f32.partialorder %v2881, 0.0
          %vm2927 = vcmp.gt.f32.partialorder %v2884, 0.0
          %vm2928 = vcmp.gt.f32.partialorder %v2887, 0.0
          %vm2929 = vcmp.gt.f32.partialorder %v2890, 0.0
          %vm2930 = vcmp.gt.f32.partialorder %v2893, 0.0
          %vm2931 = vcmp.gt.f32.partialorder %v2896, 0.0
          %vm2932 = vcmp.gt.f32.partialorder %v2899, 0.0
          %vm2933 = vcmp.gt.f32.partialorder %v2902, 0.0
          %vm2934 = vcmp.gt.f32.partialorder %v2905, 0.0
          %vm2935 = vcmp.gt.f32.partialorder %v2908, 0.0
          %vm2936 = vcmp.gt.f32.partialorder %v2911, 0.0
          %vm2937 = vcmp.gt.f32.partialorder %v2914, 0.0
          %vm2938 = vcmp.gt.f32.partialorder %v2917, 0.0
          %vm2939 = vcmp.gt.f32.partialorder %v2920, 0.0
          %vm2940 = vcmp.gt.f32.partialorder %v2923, 0.0
          %v2941 = vmin.f32 %v2878, 0.0
          %v2942 = vmin.f32 %v2881, 0.0
          %v2943 = vmin.f32 %v2884, 0.0
          %v2944 = vmin.f32 %v2887, 0.0
          %v2945 = vmin.f32 %v2890, 0.0
          %v2946 = vmin.f32 %v2893, 0.0
          %v2947 = vmin.f32 %v2896, 0.0
          %v2948 = vmin.f32 %v2899, 0.0
          %v2949 = vmin.f32 %v2902, 0.0
          %v2950 = vmin.f32 %v2905, 0.0
          %v2951 = vmin.f32 %v2908, 0.0
          %v2952 = vmin.f32 %v2911, 0.0
          %v2953 = vmin.f32 %v2914, 0.0
          %v2954 = vmin.f32 %v2917, 0.0
          %v2955 = vmin.f32 %v2920, 0.0
          %v2956 = vmin.f32 %v2923, 0.0
          %v2957 = vmul.f32 %v2941, 1.442695
          %v2958 = vpow.pop %v2957
          %v2959 = vmul.f32 %v2942, 1.442695
          %v2960 = vpow.pop %v2959
          %v2961 = vmul.f32 %v2943, 1.442695
          %v2962 = vpow.pop %v2961
          %v2963 = vmul.f32 %v2944, 1.442695
          %v2964 = vpow.pop %v2963
          %v2965 = vmul.f32 %v2945, 1.442695
          %v2966 = vpow.pop %v2965
          %v2967 = vmul.f32 %v2946, 1.442695
          %v2968 = vpow.pop %v2967
          %v2969 = vmul.f32 %v2947, 1.442695
          %v2970 = vpow.pop %v2969
          %v2971 = vmul.f32 %v2948, 1.442695
          %v2972 = vpow.pop %v2971
          %v2973 = vmul.f32 %v2949, 1.442695
          %v2974 = vpow.pop %v2973
          %v2975 = vmul.f32 %v2950, 1.442695
          %v2976 = vpow.pop %v2975
          %v2977 = vmul.f32 %v2951, 1.442695
          %v2978 = vpow.pop %v2977
          %v2979 = vmul.f32 %v2952, 1.442695
          %v2980 = vpow.pop %v2979
          %v2981 = vmul.f32 %v2953, 1.442695
          %v2982 = vpow.pop %v2981
          %v2983 = vmul.f32 %v2954, 1.442695
          %v2984 = vpow.pop %v2983
          %v2985 = vmul.f32 %v2955, 1.442695
          %v2986 = vpow.pop %v2985
          %v2987 = vmul.f32 %v2956, 1.442695
          %v2988 = vpow.pop %v2987
          %v2989 = vsub.f32 %v2958, 1.0
          %v2990 = vsub.f32 %v2960, 1.0
          %v2991 = vsub.f32 %v2962, 1.0
          %v2992 = vsub.f32 %v2964, 1.0
          %v2993 = vsub.f32 %v2966, 1.0
          %v2994 = vsub.f32 %v2968, 1.0
          %v2995 = vsub.f32 %v2970, 1.0
          %v2996 = vsub.f32 %v2972, 1.0
          %v2997 = vsub.f32 %v2974, 1.0
          %v2998 = vsub.f32 %v2976, 1.0
          %v2999 = vsub.f32 %v2978, 1.0
          %v3000 = vsub.f32 %v2980, 1.0
          %v3001 = vsub.f32 %v2982, 1.0
          %v3002 = vsub.f32 %v2984, 1.0
          %v3003 = vsub.f32 %v2986, 1.0
          %v3004 = vsub.f32 %v2988, 1.0
          %v3005 = vsel %vm2925, %v2878, %v2989
          %v3006 = vsel %vm2926, %v2881, %v2990
          %v3007 = vsel %vm2927, %v2884, %v2991
          %v3008 = vsel %vm2928, %v2887, %v2992
          %v3009 = vsel %vm2929, %v2890, %v2993
          %v3010 = vsel %vm2930, %v2893, %v2994
          %v3011 = vsel %vm2931, %v2896, %v2995
          %v3012 = vsel %vm2932, %v2899, %v2996
          %v3013 = vsel %vm2933, %v2902, %v2997
          %v3014 = vsel %vm2934, %v2905, %v2998
          %v3015 = vsel %vm2935, %v2908, %v2999
          %v3016 = vsel %vm2936, %v2911, %v3000
          %v3017 = vsel %vm2937, %v2914, %v3001
          %v3018 = vsel %vm2938, %v2917, %v3002
          %v3019 = vsel %vm2939, %v2920, %v3003
          %v3020 = vsel %vm2940, %v2923, %v3004
          %v3021 = vld [vmem:[%s12] sm:$0xff]
          %v3022 = vld [vmem:[%s12 + $0x8] sm:$0xff]
          %v3023 = vld [vmem:[%s12 + $0x10] sm:$0xff]
          %v3024 = vld [vmem:[%s12 + $0x18] sm:$0xff]
          %v3025 = vld [vmem:[%s12 + $0x20] sm:$0xff]
          %v3026 = vld [vmem:[%s12 + $0x28] sm:$0xff]
          %v3027 = vld [vmem:[%s12 + $0x30] sm:$0xff]
          %v3028 = vld [vmem:[%s12 + $0x38] sm:$0xff]
          %v3029 = vld [vmem:[%s12 + $0x40] sm:$0xff]
          %v3030 = vld [vmem:[%s12 + $0x48] sm:$0xff]
          %v3031 = vld [vmem:[%s12 + $0x50] sm:$0xff]
          %v3032 = vld [vmem:[%s12 + $0x58] sm:$0xff]
          %v3033 = vld [vmem:[%s12 + $0x60] sm:$0xff]
          %v3034 = vld [vmem:[%s12 + $0x68] sm:$0xff]
          %v3035 = vld [vmem:[%s12 + $0x70] sm:$0xff]
          %v3036 = vld [vmem:[%s12 + $0x78] sm:$0xff]
          %v3037 = vld [vmem:[%s13] sm:$0x1]
          %v3039 = vperm.slane %v3037, 0
          %3041 = vmatpush.msra.mxu0 %v3036
          %3042 = vmatpush.msra.mxu0 %v3035
          %3043 = vmatpush.msra.mxu0 %v3034
          %3044 = vmatpush.msra.mxu0 %v3033
          %3045 = vmatpush.msra.mxu0 %v3032
          %3046 = vmatpush.msra.mxu0 %v3031
          %3047 = vmatpush.msra.mxu0 %v3030
          %3048 = vmatpush.msra.mxu0 %v3029
          %3049 = vmatpush.msra.mxu0 %v3028
          %3050 = vmatpush.msra.mxu0 %v3027
          %3051 = vmatpush.msra.mxu0 %v3026
          %3052 = vmatpush.msra.mxu0 %v3025
          %3053 = vmatpush.msra.mxu0 %v3024
          %3054 = vmatpush.msra.mxu0 %v3023
          %3055 = vmatpush.msra.mxu0 %v3022
          %3056 = vmatpush.msra.mxu0 %v3021
          %3057 = vmatmul.f32.gmra.mxu0 %v3005
          %v3058 = vpop.f32.mrf.mxu0
          %v3059 = vadd.f32 %v3039, %v3058
          %3060 = vmatmul.f32.gmra.mxu0 %v3006
          %v3061 = vpop.f32.mrf.mxu0
          %v3062 = vadd.f32 %v3039, %v3061
          %3063 = vmatmul.f32.gmra.mxu0 %v3007
          %v3064 = vpop.f32.mrf.mxu0
          %v3065 = vadd.f32 %v3039, %v3064
          %3066 = vmatmul.f32.gmra.mxu0 %v3008
          %v3067 = vpop.f32.mrf.mxu0
          %v3068 = vadd.f32 %v3039, %v3067
          %3069 = vmatmul.f32.gmra.mxu0 %v3009
          %v3070 = vpop.f32.mrf.mxu0
          %v3071 = vadd.f32 %v3039, %v3070
          %3072 = vmatmul.f32.gmra.mxu0 %v3010
          %v3073 = vpop.f32.mrf.mxu0
          %v3074 = vadd.f32 %v3039, %v3073
          %3075 = vmatmul.f32.gmra.mxu0 %v3011
          %v3076 = vpop.f32.mrf.mxu0
          %v3077 = vadd.f32 %v3039, %v3076
          %3078 = vmatmul.f32.gmra.mxu0 %v3012
          %v3079 = vpop.f32.mrf.mxu0
          %v3080 = vadd.f32 %v3039, %v3079
          %3081 = vmatmul.f32.gmra.mxu0 %v3013
          %v3082 = vpop.f32.mrf.mxu0
          %v3083 = vadd.f32 %v3039, %v3082
          %3084 = vmatmul.f32.gmra.mxu0 %v3014
          %v3085 = vpop.f32.mrf.mxu0
          %v3086 = vadd.f32 %v3039, %v3085
          %3087 = vmatmul.f32.gmra.mxu0 %v3015
          %v3088 = vpop.f32.mrf.mxu0
          %v3089 = vadd.f32 %v3039, %v3088
          %3090 = vmatmul.f32.gmra.mxu0 %v3016
          %v3091 = vpop.f32.mrf.mxu0
          %v3092 = vadd.f32 %v3039, %v3091
          %3093 = vmatmul.f32.gmra.mxu0 %v3017
          %v3094 = vpop.f32.mrf.mxu0
          %v3095 = vadd.f32 %v3039, %v3094
          %3096 = vmatmul.f32.gmra.mxu0 %v3018
          %v3097 = vpop.f32.mrf.mxu0
          %v3098 = vadd.f32 %v3039, %v3097
          %3099 = vmatmul.f32.gmra.mxu0 %v3019
          %v3100 = vpop.f32.mrf.mxu0
          %v3101 = vadd.f32 %v3039, %v3100
          %3102 = vmatmul.f32.gmra.mxu0 %v3020
          %v3103 = vpop.f32.mrf.mxu0
          %v3104 = vadd.f32 %v3039, %v3103
          %3105 = vdwg.mxu0
          %v3106 = vld [vmem:[%s14] sm:$0xff]
          %v3107 = vld [vmem:[%s14 + $0x8] sm:$0xff]
          %v3108 = vld [vmem:[%s14 + $0x10] sm:$0xff]
          %v3109 = vld [vmem:[%s14 + $0x18] sm:$0xff]
          %v3110 = vld [vmem:[%s14 + $0x20] sm:$0xff]
          %v3111 = vld [vmem:[%s14 + $0x28] sm:$0xff]
          %v3112 = vld [vmem:[%s14 + $0x30] sm:$0xff]
          %v3113 = vld [vmem:[%s14 + $0x38] sm:$0xff]
          %v3114 = vld [vmem:[%s14 + $0x40] sm:$0xff]
          %v3115 = vld [vmem:[%s14 + $0x48] sm:$0xff]
          %v3116 = vld [vmem:[%s14 + $0x50] sm:$0xff]
          %v3117 = vld [vmem:[%s14 + $0x58] sm:$0xff]
          %v3118 = vld [vmem:[%s14 + $0x60] sm:$0xff]
          %v3119 = vld [vmem:[%s14 + $0x68] sm:$0xff]
          %v3120 = vld [vmem:[%s14 + $0x70] sm:$0xff]
          %v3121 = vld [vmem:[%s14 + $0x78] sm:$0xff]
          %v3122 = vld [vmem:[%s15] sm:$0xff]
          %v3123 = vld [vmem:[%s15 + $0x8] sm:$0xff]
          %v3124 = vld [vmem:[%s15 + $0x10] sm:$0xff]
          %v3125 = vld [vmem:[%s15 + $0x18] sm:$0xff]
          %v3126 = vld [vmem:[%s15 + $0x20] sm:$0xff]
          %v3127 = vld [vmem:[%s15 + $0x28] sm:$0xff]
          %v3128 = vld [vmem:[%s15 + $0x30] sm:$0xff]
          %v3129 = vld [vmem:[%s15 + $0x38] sm:$0xff]
          %v3130 = vld [vmem:[%s15 + $0x40] sm:$0xff]
          %v3131 = vld [vmem:[%s15 + $0x48] sm:$0xff]
          %v3132 = vld [vmem:[%s15 + $0x50] sm:$0xff]
          %v3133 = vld [vmem:[%s15 + $0x58] sm:$0xff]
          %v3134 = vld [vmem:[%s15 + $0x60] sm:$0xff]
          %v3135 = vld [vmem:[%s15 + $0x68] sm:$0xff]
          %v3136 = vld [vmem:[%s15 + $0x70] sm:$0xff]
          %v3137 = vld [vmem:[%s15 + $0x78] sm:$0xff]
          %3138 = vmatpush.msra.mxu0 %v3137
          %3139 = vmatpush.msra.mxu0 %v3136
          %3140 = vmatpush.msra.mxu0 %v3135
          %3141 = vmatpush.msra.mxu0 %v3134
          %3142 = vmatpush.msra.mxu0 %v3133
          %3143 = vmatpush.msra.mxu0 %v3132
          %3144 = vmatpush.msra.mxu0 %v3131
          %3145 = vmatpush.msra.mxu0 %v3130
          %3146 = vmatpush.msra.mxu0 %v3129
          %3147 = vmatpush.msra.mxu0 %v3128
          %3148 = vmatpush.msra.mxu0 %v3127
          %3149 = vmatpush.msra.mxu0 %v3126
          %3150 = vmatpush.msra.mxu0 %v3125
          %3151 = vmatpush.msra.mxu0 %v3124
          %3152 = vmatpush.msra.mxu0 %v3123
          %3153 = vmatpush.msra.mxu0 %v3122
          %3154 = vmatmul.f32.gmra.mxu0 %v3059
          %v3155 = vpop.f32.mrf.mxu0
          %v3156 = vadd.f32 0.0, %v3155
          %3157 = vmatmul.f32.gmra.mxu0 %v3062
          %v3158 = vpop.f32.mrf.mxu0
          %v3159 = vadd.f32 0.0, %v3158
          %3160 = vmatmul.f32.gmra.mxu0 %v3065
          %v3161 = vpop.f32.mrf.mxu0
          %v3162 = vadd.f32 0.0, %v3161
          %3163 = vmatmul.f32.gmra.mxu0 %v3068
          %v3164 = vpop.f32.mrf.mxu0
          %v3165 = vadd.f32 0.0, %v3164
          %3166 = vmatmul.f32.gmra.mxu0 %v3071
          %v3167 = vpop.f32.mrf.mxu0
          %v3168 = vadd.f32 0.0, %v3167
          %3169 = vmatmul.f32.gmra.mxu0 %v3074
          %v3170 = vpop.f32.mrf.mxu0
          %v3171 = vadd.f32 0.0, %v3170
          %3172 = vmatmul.f32.gmra.mxu0 %v3077
          %v3173 = vpop.f32.mrf.mxu0
          %v3174 = vadd.f32 0.0, %v3173
          %3175 = vmatmul.f32.gmra.mxu0 %v3080
          %v3176 = vpop.f32.mrf.mxu0
          %v3177 = vadd.f32 0.0, %v3176
          %3178 = vmatmul.f32.gmra.mxu0 %v3083
          %v3179 = vpop.f32.mrf.mxu0
          %v3180 = vadd.f32 0.0, %v3179
          %3181 = vmatmul.f32.gmra.mxu0 %v3086
          %v3182 = vpop.f32.mrf.mxu0
          %v3183 = vadd.f32 0.0, %v3182
          %3184 = vmatmul.f32.gmra.mxu0 %v3089
          %v3185 = vpop.f32.mrf.mxu0
          %v3186 = vadd.f32 0.0, %v3185
          %3187 = vmatmul.f32.gmra.mxu0 %v3092
          %v3188 = vpop.f32.mrf.mxu0
          %v3189 = vadd.f32 0.0, %v3188
          %3190 = vmatmul.f32.gmra.mxu0 %v3095
          %v3191 = vpop.f32.mrf.mxu0
          %v3192 = vadd.f32 0.0, %v3191
          %3193 = vmatmul.f32.gmra.mxu0 %v3098
          %v3194 = vpop.f32.mrf.mxu0
          %v3195 = vadd.f32 0.0, %v3194
          %3196 = vmatmul.f32.gmra.mxu0 %v3101
          %v3197 = vpop.f32.mrf.mxu0
          %v3198 = vadd.f32 0.0, %v3197
          %3199 = vmatmul.f32.gmra.mxu0 %v3104
          %v3200 = vpop.f32.mrf.mxu0
          %v3201 = vadd.f32 0.0, %v3200
          %3202 = vdwg.mxu0
          %3203 = vmatpush.msra.mxu0 %v3121
          %3204 = vmatpush.msra.mxu0 %v3120
          %3205 = vmatpush.msra.mxu0 %v3119
          %3206 = vmatpush.msra.mxu0 %v3118
          %3207 = vmatpush.msra.mxu0 %v3117
          %3208 = vmatpush.msra.mxu0 %v3116
          %3209 = vmatpush.msra.mxu0 %v3115
          %3210 = vmatpush.msra.mxu0 %v3114
          %3211 = vmatpush.msra.mxu0 %v3113
          %3212 = vmatpush.msra.mxu0 %v3112
          %3213 = vmatpush.msra.mxu0 %v3111
          %3214 = vmatpush.msra.mxu0 %v3110
          %3215 = vmatpush.msra.mxu0 %v3109
          %3216 = vmatpush.msra.mxu0 %v3108
          %3217 = vmatpush.msra.mxu0 %v3107
          %3218 = vmatpush.msra.mxu0 %v3106
          %3219 = vmatmul.f32.gmra.mxu0 %v2598
          %v3220 = vpop.f32.mrf.mxu0
          %v3221 = vadd.f32 %v3156, %v3220
          %3222 = vmatmul.f32.gmra.mxu0 %v2613
          %v3223 = vpop.f32.mrf.mxu0
          %v3224 = vadd.f32 %v3159, %v3223
          %3225 = vmatmul.f32.gmra.mxu0 %v2628
          %v3226 = vpop.f32.mrf.mxu0
          %v3227 = vadd.f32 %v3162, %v3226
          %3228 = vmatmul.f32.gmra.mxu0 %v2643
          %v3229 = vpop.f32.mrf.mxu0
          %v3230 = vadd.f32 %v3165, %v3229
          %3231 = vmatmul.f32.gmra.mxu0 %v2658
          %v3232 = vpop.f32.mrf.mxu0
          %v3233 = vadd.f32 %v3168, %v3232
          %3234 = vmatmul.f32.gmra.mxu0 %v2673
          %v3235 = vpop.f32.mrf.mxu0
          %v3236 = vadd.f32 %v3171, %v3235
          %3237 = vmatmul.f32.gmra.mxu0 %v2688
          %v3238 = vpop.f32.mrf.mxu0
          %v3239 = vadd.f32 %v3174, %v3238
          %3240 = vmatmul.f32.gmra.mxu0 %v2703
          %v3241 = vpop.f32.mrf.mxu0
          %v3242 = vadd.f32 %v3177, %v3241
          %3243 = vmatmul.f32.gmra.mxu0 %v2718
          %v3244 = vpop.f32.mrf.mxu0
          %v3245 = vadd.f32 %v3180, %v3244
          %3246 = vmatmul.f32.gmra.mxu0 %v2733
          %v3247 = vpop.f32.mrf.mxu0
          %v3248 = vadd.f32 %v3183, %v3247
          %3249 = vmatmul.f32.gmra.mxu0 %v2748
          %v3250 = vpop.f32.mrf.mxu0
          %v3251 = vadd.f32 %v3186, %v3250
          %3252 = vmatmul.f32.gmra.mxu0 %v2763
          %v3253 = vpop.f32.mrf.mxu0
          %v3254 = vadd.f32 %v3189, %v3253
          %3255 = vmatmul.f32.gmra.mxu0 %v2778
          %v3256 = vpop.f32.mrf.mxu0
          %v3257 = vadd.f32 %v3192, %v3256
          %3258 = vmatmul.f32.gmra.mxu0 %v2793
          %v3259 = vpop.f32.mrf.mxu0
          %v3260 = vadd.f32 %v3195, %v3259
          %3261 = vmatmul.f32.gmra.mxu0 %v2808
          %v3262 = vpop.f32.mrf.mxu0
          %v3263 = vadd.f32 %v3198, %v3262
          %3264 = vmatmul.f32.gmra.mxu0 %v2823
          %v3265 = vpop.f32.mrf.mxu0
          %v3266 = vadd.f32 %v3201, %v3265
          %3267 = vdwg.mxu0
          %v3268 = vld [vmem:[%s16] sm:$0x1]
          %v3270 = vperm.slane %v3268, 0
          %v3272 = vadd.f32 %v3221, %v3270
          %v3273 = vadd.f32 %v3224, %v3270
          %v3274 = vadd.f32 %v3227, %v3270
          %v3275 = vadd.f32 %v3230, %v3270
          %v3276 = vadd.f32 %v3233, %v3270
          %v3277 = vadd.f32 %v3236, %v3270
          %v3278 = vadd.f32 %v3239, %v3270
          %v3279 = vadd.f32 %v3242, %v3270
          %v3280 = vadd.f32 %v3245, %v3270
          %v3281 = vadd.f32 %v3248, %v3270
          %v3282 = vadd.f32 %v3251, %v3270
          %v3283 = vadd.f32 %v3254, %v3270
          %v3284 = vadd.f32 %v3257, %v3270
          %v3285 = vadd.f32 %v3260, %v3270
          %v3286 = vadd.f32 %v3263, %v3270
          %v3287 = vadd.f32 %v3266, %v3270
          %vm3288 = vcmp.gt.f32.partialorder %v3272, 0.0
          %vm3289 = vcmp.gt.f32.partialorder %v3273, 0.0
          %vm3290 = vcmp.gt.f32.partialorder %v3274, 0.0
          %vm3291 = vcmp.gt.f32.partialorder %v3275, 0.0
          %vm3292 = vcmp.gt.f32.partialorder %v3276, 0.0
          %vm3293 = vcmp.gt.f32.partialorder %v3277, 0.0
          %vm3294 = vcmp.gt.f32.partialorder %v3278, 0.0
          %vm3295 = vcmp.gt.f32.partialorder %v3279, 0.0
          %vm3296 = vcmp.gt.f32.partialorder %v3280, 0.0
          %vm3297 = vcmp.gt.f32.partialorder %v3281, 0.0
          %vm3298 = vcmp.gt.f32.partialorder %v3282, 0.0
          %vm3299 = vcmp.gt.f32.partialorder %v3283, 0.0
          %vm3300 = vcmp.gt.f32.partialorder %v3284, 0.0
          %vm3301 = vcmp.gt.f32.partialorder %v3285, 0.0
          %vm3302 = vcmp.gt.f32.partialorder %v3286, 0.0
          %vm3303 = vcmp.gt.f32.partialorder %v3287, 0.0
          %v3304 = vmin.f32 %v3272, 0.0
          %v3305 = vmin.f32 %v3273, 0.0
          %v3306 = vmin.f32 %v3274, 0.0
          %v3307 = vmin.f32 %v3275, 0.0
          %v3308 = vmin.f32 %v3276, 0.0
          %v3309 = vmin.f32 %v3277, 0.0
          %v3310 = vmin.f32 %v3278, 0.0
          %v3311 = vmin.f32 %v3279, 0.0
          %v3312 = vmin.f32 %v3280, 0.0
          %v3313 = vmin.f32 %v3281, 0.0
          %v3314 = vmin.f32 %v3282, 0.0
          %v3315 = vmin.f32 %v3283, 0.0
          %v3316 = vmin.f32 %v3284, 0.0
          %v3317 = vmin.f32 %v3285, 0.0
          %v3318 = vmin.f32 %v3286, 0.0
          %v3319 = vmin.f32 %v3287, 0.0
          %v3320 = vmul.f32 %v3304, 1.442695
          %v3321 = vpow.pop %v3320
          %v3322 = vmul.f32 %v3305, 1.442695
          %v3323 = vpow.pop %v3322
          %v3324 = vmul.f32 %v3306, 1.442695
          %v3325 = vpow.pop %v3324
          %v3326 = vmul.f32 %v3307, 1.442695
          %v3327 = vpow.pop %v3326
          %v3328 = vmul.f32 %v3308, 1.442695
          %v3329 = vpow.pop %v3328
          %v3330 = vmul.f32 %v3309, 1.442695
          %v3331 = vpow.pop %v3330
          %v3332 = vmul.f32 %v3310, 1.442695
          %v3333 = vpow.pop %v3332
          %v3334 = vmul.f32 %v3311, 1.442695
          %v3335 = vpow.pop %v3334
          %v3336 = vmul.f32 %v3312, 1.442695
          %v3337 = vpow.pop %v3336
          %v3338 = vmul.f32 %v3313, 1.442695
          %v3339 = vpow.pop %v3338
          %v3340 = vmul.f32 %v3314, 1.442695
          %v3341 = vpow.pop %v3340
          %v3342 = vmul.f32 %v3315, 1.442695
          %v3343 = vpow.pop %v3342
          %v3344 = vmul.f32 %v3316, 1.442695
          %v3345 = vpow.pop %v3344
          %v3346 = vmul.f32 %v3317, 1.442695
          %v3347 = vpow.pop %v3346
          %v3348 = vmul.f32 %v3318, 1.442695
          %v3349 = vpow.pop %v3348
          %v3350 = vmul.f32 %v3319, 1.442695
          %v3351 = vpow.pop %v3350
          %v3352 = vsub.f32 %v3321, 1.0
          %v3353 = vsub.f32 %v3323, 1.0
          %v3354 = vsub.f32 %v3325, 1.0
          %v3355 = vsub.f32 %v3327, 1.0
          %v3356 = vsub.f32 %v3329, 1.0
          %v3357 = vsub.f32 %v3331, 1.0
          %v3358 = vsub.f32 %v3333, 1.0
          %v3359 = vsub.f32 %v3335, 1.0
          %v3360 = vsub.f32 %v3337, 1.0
          %v3361 = vsub.f32 %v3339, 1.0
          %v3362 = vsub.f32 %v3341, 1.0
          %v3363 = vsub.f32 %v3343, 1.0
          %v3364 = vsub.f32 %v3345, 1.0
          %v3365 = vsub.f32 %v3347, 1.0
          %v3366 = vsub.f32 %v3349, 1.0
          %v3367 = vsub.f32 %v3351, 1.0
          %v3368 = vsel %vm3288, %v3272, %v3352
          %v3369 = vsel %vm3289, %v3273, %v3353
          %v3370 = vsel %vm3290, %v3274, %v3354
          %v3371 = vsel %vm3291, %v3275, %v3355
          %v3372 = vsel %vm3292, %v3276, %v3356
          %v3373 = vsel %vm3293, %v3277, %v3357
          %v3374 = vsel %vm3294, %v3278, %v3358
          %v3375 = vsel %vm3295, %v3279, %v3359
          %v3376 = vsel %vm3296, %v3280, %v3360
          %v3377 = vsel %vm3297, %v3281, %v3361
          %v3378 = vsel %vm3298, %v3282, %v3362
          %v3379 = vsel %vm3299, %v3283, %v3363
          %v3380 = vsel %vm3300, %v3284, %v3364
          %v3381 = vsel %vm3301, %v3285, %v3365
          %v3382 = vsel %vm3302, %v3286, %v3366
          %v3383 = vsel %vm3303, %v3287, %v3367
          %v3384 = vld [vmem:[%s17] sm:$0xff]
          %v3385 = vld [vmem:[%s17 + $0x8] sm:$0xff]
          %v3386 = vld [vmem:[%s17 + $0x10] sm:$0xff]
          %v3387 = vld [vmem:[%s17 + $0x18] sm:$0xff]
          %v3388 = vld [vmem:[%s17 + $0x20] sm:$0xff]
          %v3389 = vld [vmem:[%s17 + $0x28] sm:$0xff]
          %v3390 = vld [vmem:[%s17 + $0x30] sm:$0xff]
          %v3391 = vld [vmem:[%s17 + $0x38] sm:$0xff]
          %v3392 = vld [vmem:[%s17 + $0x40] sm:$0xff]
          %v3393 = vld [vmem:[%s17 + $0x48] sm:$0xff]
          %v3394 = vld [vmem:[%s17 + $0x50] sm:$0xff]
          %v3395 = vld [vmem:[%s17 + $0x58] sm:$0xff]
          %v3396 = vld [vmem:[%s17 + $0x60] sm:$0xff]
          %v3397 = vld [vmem:[%s17 + $0x68] sm:$0xff]
          %v3398 = vld [vmem:[%s17 + $0x70] sm:$0xff]
          %v3399 = vld [vmem:[%s17 + $0x78] sm:$0xff]
          %v3400 = vld [vmem:[%s18] sm:$0x1]
          %v3402 = vperm.slane %v3400, 0
          %3404 = vmatpush.msra.mxu0 %v3399
          %3405 = vmatpush.msra.mxu0 %v3398
          %3406 = vmatpush.msra.mxu0 %v3397
          %3407 = vmatpush.msra.mxu0 %v3396
          %3408 = vmatpush.msra.mxu0 %v3395
          %3409 = vmatpush.msra.mxu0 %v3394
          %3410 = vmatpush.msra.mxu0 %v3393
          %3411 = vmatpush.msra.mxu0 %v3392
          %3412 = vmatpush.msra.mxu0 %v3391
          %3413 = vmatpush.msra.mxu0 %v3390
          %3414 = vmatpush.msra.mxu0 %v3389
          %3415 = vmatpush.msra.mxu0 %v3388
          %3416 = vmatpush.msra.mxu0 %v3387
          %3417 = vmatpush.msra.mxu0 %v3386
          %3418 = vmatpush.msra.mxu0 %v3385
          %3419 = vmatpush.msra.mxu0 %v3384
          %3420 = vmatmul.f32.gmra.mxu0 %v3368
          %v3421 = vpop.f32.mrf.mxu0
          %v3422 = vadd.f32 %v3402, %v3421
          %3423 = vmatmul.f32.gmra.mxu0 %v3369
          %v3424 = vpop.f32.mrf.mxu0
          %v3425 = vadd.f32 %v3402, %v3424
          %3426 = vmatmul.f32.gmra.mxu0 %v3370
          %v3427 = vpop.f32.mrf.mxu0
          %v3428 = vadd.f32 %v3402, %v3427
          %3429 = vmatmul.f32.gmra.mxu0 %v3371
          %v3430 = vpop.f32.mrf.mxu0
          %v3431 = vadd.f32 %v3402, %v3430
          %3432 = vmatmul.f32.gmra.mxu0 %v3372
          %v3433 = vpop.f32.mrf.mxu0
          %v3434 = vadd.f32 %v3402, %v3433
          %3435 = vmatmul.f32.gmra.mxu0 %v3373
          %v3436 = vpop.f32.mrf.mxu0
          %v3437 = vadd.f32 %v3402, %v3436
          %3438 = vmatmul.f32.gmra.mxu0 %v3374
          %v3439 = vpop.f32.mrf.mxu0
          %v3440 = vadd.f32 %v3402, %v3439
          %3441 = vmatmul.f32.gmra.mxu0 %v3375
          %v3442 = vpop.f32.mrf.mxu0
          %v3443 = vadd.f32 %v3402, %v3442
          %3444 = vmatmul.f32.gmra.mxu0 %v3376
          %v3445 = vpop.f32.mrf.mxu0
          %v3446 = vadd.f32 %v3402, %v3445
          %3447 = vmatmul.f32.gmra.mxu0 %v3377
          %v3448 = vpop.f32.mrf.mxu0
          %v3449 = vadd.f32 %v3402, %v3448
          %3450 = vmatmul.f32.gmra.mxu0 %v3378
          %v3451 = vpop.f32.mrf.mxu0
          %v3452 = vadd.f32 %v3402, %v3451
          %3453 = vmatmul.f32.gmra.mxu0 %v3379
          %v3454 = vpop.f32.mrf.mxu0
          %v3455 = vadd.f32 %v3402, %v3454
          %3456 = vmatmul.f32.gmra.mxu0 %v3380
          %v3457 = vpop.f32.mrf.mxu0
          %v3458 = vadd.f32 %v3402, %v3457
          %3459 = vmatmul.f32.gmra.mxu0 %v3381
          %v3460 = vpop.f32.mrf.mxu0
          %v3461 = vadd.f32 %v3402, %v3460
          %3462 = vmatmul.f32.gmra.mxu0 %v3382
          %v3463 = vpop.f32.mrf.mxu0
          %v3464 = vadd.f32 %v3402, %v3463
          %3465 = vmatmul.f32.gmra.mxu0 %v3383
          %v3466 = vpop.f32.mrf.mxu0
          %v3467 = vadd.f32 %v3402, %v3466
          %3468 = vdwg.mxu0
          %vm3469 = vcmp.gt.f32.partialorder %v3422, 0.0
          %vm3470 = vcmp.gt.f32.partialorder %v3425, 0.0
          %vm3471 = vcmp.gt.f32.partialorder %v3428, 0.0
          %vm3472 = vcmp.gt.f32.partialorder %v3431, 0.0
          %vm3473 = vcmp.gt.f32.partialorder %v3434, 0.0
          %vm3474 = vcmp.gt.f32.partialorder %v3437, 0.0
          %vm3475 = vcmp.gt.f32.partialorder %v3440, 0.0
          %vm3476 = vcmp.gt.f32.partialorder %v3443, 0.0
          %vm3477 = vcmp.gt.f32.partialorder %v3446, 0.0
          %vm3478 = vcmp.gt.f32.partialorder %v3449, 0.0
          %vm3479 = vcmp.gt.f32.partialorder %v3452, 0.0
          %vm3480 = vcmp.gt.f32.partialorder %v3455, 0.0
          %vm3481 = vcmp.gt.f32.partialorder %v3458, 0.0
          %vm3482 = vcmp.gt.f32.partialorder %v3461, 0.0
          %vm3483 = vcmp.gt.f32.partialorder %v3464, 0.0
          %vm3484 = vcmp.gt.f32.partialorder %v3467, 0.0
          %v3485 = vmin.f32 %v3422, 0.0
          %v3486 = vmin.f32 %v3425, 0.0
          %v3487 = vmin.f32 %v3428, 0.0
          %v3488 = vmin.f32 %v3431, 0.0
          %v3489 = vmin.f32 %v3434, 0.0
          %v3490 = vmin.f32 %v3437, 0.0
          %v3491 = vmin.f32 %v3440, 0.0
          %v3492 = vmin.f32 %v3443, 0.0
          %v3493 = vmin.f32 %v3446, 0.0
          %v3494 = vmin.f32 %v3449, 0.0
          %v3495 = vmin.f32 %v3452, 0.0
          %v3496 = vmin.f32 %v3455, 0.0
          %v3497 = vmin.f32 %v3458, 0.0
          %v3498 = vmin.f32 %v3461, 0.0
          %v3499 = vmin.f32 %v3464, 0.0
          %v3500 = vmin.f32 %v3467, 0.0
          %v3501 = vmul.f32 %v3485, 1.442695
          %v3502 = vpow.pop %v3501
          %v3503 = vmul.f32 %v3486, 1.442695
          %v3504 = vpow.pop %v3503
          %v3505 = vmul.f32 %v3487, 1.442695
          %v3506 = vpow.pop %v3505
          %v3507 = vmul.f32 %v3488, 1.442695
          %v3508 = vpow.pop %v3507
          %v3509 = vmul.f32 %v3489, 1.442695
          %v3510 = vpow.pop %v3509
          %v3511 = vmul.f32 %v3490, 1.442695
          %v3512 = vpow.pop %v3511
          %v3513 = vmul.f32 %v3491, 1.442695
          %v3514 = vpow.pop %v3513
          %v3515 = vmul.f32 %v3492, 1.442695
          %v3516 = vpow.pop %v3515
          %v3517 = vmul.f32 %v3493, 1.442695
          %v3518 = vpow.pop %v3517
          %v3519 = vmul.f32 %v3494, 1.442695
          %v3520 = vpow.pop %v3519
          %v3521 = vmul.f32 %v3495, 1.442695
          %v3522 = vpow.pop %v3521
          %v3523 = vmul.f32 %v3496, 1.442695
          %v3524 = vpow.pop %v3523
          %v3525 = vmul.f32 %v3497, 1.442695
          %v3526 = vpow.pop %v3525
          %v3527 = vmul.f32 %v3498, 1.442695
          %v3528 = vpow.pop %v3527
          %v3529 = vmul.f32 %v3499, 1.442695
          %v3530 = vpow.pop %v3529
          %v3531 = vmul.f32 %v3500, 1.442695
          %v3532 = vpow.pop %v3531
          %v3533 = vsub.f32 %v3502, 1.0
          %v3534 = vsub.f32 %v3504, 1.0
          %v3535 = vsub.f32 %v3506, 1.0
          %v3536 = vsub.f32 %v3508, 1.0
          %v3537 = vsub.f32 %v3510, 1.0
          %v3538 = vsub.f32 %v3512, 1.0
          %v3539 = vsub.f32 %v3514, 1.0
          %v3540 = vsub.f32 %v3516, 1.0
          %v3541 = vsub.f32 %v3518, 1.0
          %v3542 = vsub.f32 %v3520, 1.0
          %v3543 = vsub.f32 %v3522, 1.0
          %v3544 = vsub.f32 %v3524, 1.0
          %v3545 = vsub.f32 %v3526, 1.0
          %v3546 = vsub.f32 %v3528, 1.0
          %v3547 = vsub.f32 %v3530, 1.0
          %v3548 = vsub.f32 %v3532, 1.0
          %v3549 = vsel %vm3469, %v3422, %v3533
          %v3550 = vsel %vm3470, %v3425, %v3534
          %v3551 = vsel %vm3471, %v3428, %v3535
          %v3552 = vsel %vm3472, %v3431, %v3536
          %v3553 = vsel %vm3473, %v3434, %v3537
          %v3554 = vsel %vm3474, %v3437, %v3538
          %v3555 = vsel %vm3475, %v3440, %v3539
          %v3556 = vsel %vm3476, %v3443, %v3540
          %v3557 = vsel %vm3477, %v3446, %v3541
          %v3558 = vsel %vm3478, %v3449, %v3542
          %v3559 = vsel %vm3479, %v3452, %v3543
          %v3560 = vsel %vm3480, %v3455, %v3544
          %v3561 = vsel %vm3481, %v3458, %v3545
          %v3562 = vsel %vm3482, %v3461, %v3546
          %v3563 = vsel %vm3483, %v3464, %v3547
          %v3564 = vsel %vm3484, %v3467, %v3548
          %v3565 = vld [vmem:[%s19] sm:$0xff]
          %v3566 = vld [vmem:[%s19 + $0x8] sm:$0xff]
          %v3567 = vld [vmem:[%s19 + $0x10] sm:$0xff]
          %v3568 = vld [vmem:[%s19 + $0x18] sm:$0xff]
          %v3569 = vld [vmem:[%s19 + $0x20] sm:$0xff]
          %v3570 = vld [vmem:[%s19 + $0x28] sm:$0xff]
          %v3571 = vld [vmem:[%s19 + $0x30] sm:$0xff]
          %v3572 = vld [vmem:[%s19 + $0x38] sm:$0xff]
          %v3573 = vld [vmem:[%s19 + $0x40] sm:$0xff]
          %v3574 = vld [vmem:[%s19 + $0x48] sm:$0xff]
          %v3575 = vld [vmem:[%s19 + $0x50] sm:$0xff]
          %v3576 = vld [vmem:[%s19 + $0x58] sm:$0xff]
          %v3577 = vld [vmem:[%s19 + $0x60] sm:$0xff]
          %v3578 = vld [vmem:[%s19 + $0x68] sm:$0xff]
          %v3579 = vld [vmem:[%s19 + $0x70] sm:$0xff]
          %v3580 = vld [vmem:[%s19 + $0x78] sm:$0xff]
          %v3581 = vld [vmem:[%s20] sm:$0x1]
          %v3583 = vperm.slane %v3581, 0
          %3585 = vmatpush.msra.mxu0 %v3580
          %3586 = vmatpush.msra.mxu0 %v3579
          %3587 = vmatpush.msra.mxu0 %v3578
          %3588 = vmatpush.msra.mxu0 %v3577
          %3589 = vmatpush.msra.mxu0 %v3576
          %3590 = vmatpush.msra.mxu0 %v3575
          %3591 = vmatpush.msra.mxu0 %v3574
          %3592 = vmatpush.msra.mxu0 %v3573
          %3593 = vmatpush.msra.mxu0 %v3572
          %3594 = vmatpush.msra.mxu0 %v3571
          %3595 = vmatpush.msra.mxu0 %v3570
          %3596 = vmatpush.msra.mxu0 %v3569
          %3597 = vmatpush.msra.mxu0 %v3568
          %3598 = vmatpush.msra.mxu0 %v3567
          %3599 = vmatpush.msra.mxu0 %v3566
          %3600 = vmatpush.msra.mxu0 %v3565
          %3601 = vmatmul.f32.gmra.mxu0 %v3549
          %v3602 = vpop.f32.mrf.mxu0
          %v3603 = vadd.f32 %v3583, %v3602
          %3604 = vmatmul.f32.gmra.mxu0 %v3550
          %v3605 = vpop.f32.mrf.mxu0
          %v3606 = vadd.f32 %v3583, %v3605
          %3607 = vmatmul.f32.gmra.mxu0 %v3551
          %v3608 = vpop.f32.mrf.mxu0
          %v3609 = vadd.f32 %v3583, %v3608
          %3610 = vmatmul.f32.gmra.mxu0 %v3552
          %v3611 = vpop.f32.mrf.mxu0
          %v3612 = vadd.f32 %v3583, %v3611
          %3613 = vmatmul.f32.gmra.mxu0 %v3553
          %v3614 = vpop.f32.mrf.mxu0
          %v3615 = vadd.f32 %v3583, %v3614
          %3616 = vmatmul.f32.gmra.mxu0 %v3554
          %v3617 = vpop.f32.mrf.mxu0
          %v3618 = vadd.f32 %v3583, %v3617
          %3619 = vmatmul.f32.gmra.mxu0 %v3555
          %v3620 = vpop.f32.mrf.mxu0
          %v3621 = vadd.f32 %v3583, %v3620
          %3622 = vmatmul.f32.gmra.mxu0 %v3556
          %v3623 = vpop.f32.mrf.mxu0
          %v3624 = vadd.f32 %v3583, %v3623
          %3625 = vmatmul.f32.gmra.mxu0 %v3557
          %v3626 = vpop.f32.mrf.mxu0
          %v3627 = vadd.f32 %v3583, %v3626
          %3628 = vmatmul.f32.gmra.mxu0 %v3558
          %v3629 = vpop.f32.mrf.mxu0
          %v3630 = vadd.f32 %v3583, %v3629
          %3631 = vmatmul.f32.gmra.mxu0 %v3559
          %v3632 = vpop.f32.mrf.mxu0
          %v3633 = vadd.f32 %v3583, %v3632
          %3634 = vmatmul.f32.gmra.mxu0 %v3560
          %v3635 = vpop.f32.mrf.mxu0
          %v3636 = vadd.f32 %v3583, %v3635
          %3637 = vmatmul.f32.gmra.mxu0 %v3561
          %v3638 = vpop.f32.mrf.mxu0
          %v3639 = vadd.f32 %v3583, %v3638
          %3640 = vmatmul.f32.gmra.mxu0 %v3562
          %v3641 = vpop.f32.mrf.mxu0
          %v3642 = vadd.f32 %v3583, %v3641
          %3643 = vmatmul.f32.gmra.mxu0 %v3563
          %v3644 = vpop.f32.mrf.mxu0
          %v3645 = vadd.f32 %v3583, %v3644
          %3646 = vmatmul.f32.gmra.mxu0 %v3564
          %v3647 = vpop.f32.mrf.mxu0
          %v3648 = vadd.f32 %v3583, %v3647
          %3649 = vdwg.mxu0
          %vm3650 = vcmp.gt.f32.partialorder %v3603, 0.0
          %vm3651 = vcmp.gt.f32.partialorder %v3606, 0.0
          %vm3652 = vcmp.gt.f32.partialorder %v3609, 0.0
          %vm3653 = vcmp.gt.f32.partialorder %v3612, 0.0
          %vm3654 = vcmp.gt.f32.partialorder %v3615, 0.0
          %vm3655 = vcmp.gt.f32.partialorder %v3618, 0.0
          %vm3656 = vcmp.gt.f32.partialorder %v3621, 0.0
          %vm3657 = vcmp.gt.f32.partialorder %v3624, 0.0
          %vm3658 = vcmp.gt.f32.partialorder %v3627, 0.0
          %vm3659 = vcmp.gt.f32.partialorder %v3630, 0.0
          %vm3660 = vcmp.gt.f32.partialorder %v3633, 0.0
          %vm3661 = vcmp.gt.f32.partialorder %v3636, 0.0
          %vm3662 = vcmp.gt.f32.partialorder %v3639, 0.0
          %vm3663 = vcmp.gt.f32.partialorder %v3642, 0.0
          %vm3664 = vcmp.gt.f32.partialorder %v3645, 0.0
          %vm3665 = vcmp.gt.f32.partialorder %v3648, 0.0
          %v3666 = vmin.f32 %v3603, 0.0
          %v3667 = vmin.f32 %v3606, 0.0
          %v3668 = vmin.f32 %v3609, 0.0
          %v3669 = vmin.f32 %v3612, 0.0
          %v3670 = vmin.f32 %v3615, 0.0
          %v3671 = vmin.f32 %v3618, 0.0
          %v3672 = vmin.f32 %v3621, 0.0
          %v3673 = vmin.f32 %v3624, 0.0
          %v3674 = vmin.f32 %v3627, 0.0
          %v3675 = vmin.f32 %v3630, 0.0
          %v3676 = vmin.f32 %v3633, 0.0
          %v3677 = vmin.f32 %v3636, 0.0
          %v3678 = vmin.f32 %v3639, 0.0
          %v3679 = vmin.f32 %v3642, 0.0
          %v3680 = vmin.f32 %v3645, 0.0
          %v3681 = vmin.f32 %v3648, 0.0
          %v3682 = vmul.f32 %v3666, 1.442695
          %v3683 = vpow.pop %v3682
          %v3684 = vmul.f32 %v3667, 1.442695
          %v3685 = vpow.pop %v3684
          %v3686 = vmul.f32 %v3668, 1.442695
          %v3687 = vpow.pop %v3686
          %v3688 = vmul.f32 %v3669, 1.442695
          %v3689 = vpow.pop %v3688
          %v3690 = vmul.f32 %v3670, 1.442695
          %v3691 = vpow.pop %v3690
          %v3692 = vmul.f32 %v3671, 1.442695
          %v3693 = vpow.pop %v3692
          %v3694 = vmul.f32 %v3672, 1.442695
          %v3695 = vpow.pop %v3694
          %v3696 = vmul.f32 %v3673, 1.442695
          %v3697 = vpow.pop %v3696
          %v3698 = vmul.f32 %v3674, 1.442695
          %v3699 = vpow.pop %v3698
          %v3700 = vmul.f32 %v3675, 1.442695
          %v3701 = vpow.pop %v3700
          %v3702 = vmul.f32 %v3676, 1.442695
          %v3703 = vpow.pop %v3702
          %v3704 = vmul.f32 %v3677, 1.442695
          %v3705 = vpow.pop %v3704
          %v3706 = vmul.f32 %v3678, 1.442695
          %v3707 = vpow.pop %v3706
          %v3708 = vmul.f32 %v3679, 1.442695
          %v3709 = vpow.pop %v3708
          %v3710 = vmul.f32 %v3680, 1.442695
          %v3711 = vpow.pop %v3710
          %v3712 = vmul.f32 %v3681, 1.442695
          %v3713 = vpow.pop %v3712
          %v3714 = vsub.f32 %v3683, 1.0
          %v3715 = vsub.f32 %v3685, 1.0
          %v3716 = vsub.f32 %v3687, 1.0
          %v3717 = vsub.f32 %v3689, 1.0
          %v3718 = vsub.f32 %v3691, 1.0
          %v3719 = vsub.f32 %v3693, 1.0
          %v3720 = vsub.f32 %v3695, 1.0
          %v3721 = vsub.f32 %v3697, 1.0
          %v3722 = vsub.f32 %v3699, 1.0
          %v3723 = vsub.f32 %v3701, 1.0
          %v3724 = vsub.f32 %v3703, 1.0
          %v3725 = vsub.f32 %v3705, 1.0
          %v3726 = vsub.f32 %v3707, 1.0
          %v3727 = vsub.f32 %v3709, 1.0
          %v3728 = vsub.f32 %v3711, 1.0
          %v3729 = vsub.f32 %v3713, 1.0
          %v3730 = vsel %vm3650, %v3603, %v3714
          %v3731 = vsel %vm3651, %v3606, %v3715
          %v3732 = vsel %vm3652, %v3609, %v3716
          %v3733 = vsel %vm3653, %v3612, %v3717
          %v3734 = vsel %vm3654, %v3615, %v3718
          %v3735 = vsel %vm3655, %v3618, %v3719
          %v3736 = vsel %vm3656, %v3621, %v3720
          %v3737 = vsel %vm3657, %v3624, %v3721
          %v3738 = vsel %vm3658, %v3627, %v3722
          %v3739 = vsel %vm3659, %v3630, %v3723
          %v3740 = vsel %vm3660, %v3633, %v3724
          %v3741 = vsel %vm3661, %v3636, %v3725
          %v3742 = vsel %vm3662, %v3639, %v3726
          %v3743 = vsel %vm3663, %v3642, %v3727
          %v3744 = vsel %vm3664, %v3645, %v3728
          %v3745 = vsel %vm3665, %v3648, %v3729
          %v3746 = vld [vmem:[#allocation10] sm:$0xff]
          %v3747 = vld [vmem:[#allocation10 + $0x8] sm:$0xff]
          %v3748 = vld [vmem:[#allocation10 + $0x10] sm:$0xff]
          %v3749 = vld [vmem:[#allocation10 + $0x18] sm:$0xff]
          %v3750 = vld [vmem:[#allocation10 + $0x20] sm:$0xff]
          %v3751 = vld [vmem:[#allocation10 + $0x28] sm:$0xff]
          %v3752 = vld [vmem:[#allocation10 + $0x30] sm:$0xff]
          %v3753 = vld [vmem:[#allocation10 + $0x38] sm:$0xff]
          %v3754 = vld [vmem:[#allocation10 + $0x40] sm:$0xff]
          %v3755 = vld [vmem:[#allocation10 + $0x48] sm:$0xff]
          %v3756 = vld [vmem:[#allocation10 + $0x50] sm:$0xff]
          %v3757 = vld [vmem:[#allocation10 + $0x58] sm:$0xff]
          %v3758 = vld [vmem:[#allocation10 + $0x60] sm:$0xff]
          %v3759 = vld [vmem:[#allocation10 + $0x68] sm:$0xff]
          %v3760 = vld [vmem:[#allocation10 + $0x70] sm:$0xff]
          %v3761 = vld [vmem:[#allocation10 + $0x78] sm:$0xff]
          %v3762 = vld [vmem:[%s22] sm:$0x1]
          %v3764 = vperm.slane %v3762, 0
          %3766 = vmatpush.msra.mxu0 %v3761
          %3767 = vmatpush.msra.mxu0 %v3760
          %3768 = vmatpush.msra.mxu0 %v3759
          %3769 = vmatpush.msra.mxu0 %v3758
          %3770 = vmatpush.msra.mxu0 %v3757
          %3771 = vmatpush.msra.mxu0 %v3756
          %3772 = vmatpush.msra.mxu0 %v3755
          %3773 = vmatpush.msra.mxu0 %v3754
          %3774 = vmatpush.msra.mxu0 %v3753
          %3775 = vmatpush.msra.mxu0 %v3752
          %3776 = vmatpush.msra.mxu0 %v3751
          %3777 = vmatpush.msra.mxu0 %v3750
          %3778 = vmatpush.msra.mxu0 %v3749
          %3779 = vmatpush.msra.mxu0 %v3748
          %3780 = vmatpush.msra.mxu0 %v3747
          %3781 = vmatpush.msra.mxu0 %v3746
          %3782 = vmatmul.f32.gmra.mxu0 %v3730
          %v3783 = vpop.f32.mrf.mxu0
          %v3784 = vadd.f32 %v3764, %v3783
          %3785 = vmatmul.f32.gmra.mxu0 %v3731
          %v3786 = vpop.f32.mrf.mxu0
          %v3787 = vadd.f32 %v3764, %v3786
          %3788 = vmatmul.f32.gmra.mxu0 %v3732
          %v3789 = vpop.f32.mrf.mxu0
          %v3790 = vadd.f32 %v3764, %v3789
          %3791 = vmatmul.f32.gmra.mxu0 %v3733
          %v3792 = vpop.f32.mrf.mxu0
          %v3793 = vadd.f32 %v3764, %v3792
          %3794 = vmatmul.f32.gmra.mxu0 %v3734
          %v3795 = vpop.f32.mrf.mxu0
          %v3796 = vadd.f32 %v3764, %v3795
          %3797 = vmatmul.f32.gmra.mxu0 %v3735
          %v3798 = vpop.f32.mrf.mxu0
          %v3799 = vadd.f32 %v3764, %v3798
          %3800 = vmatmul.f32.gmra.mxu0 %v3736
          %v3801 = vpop.f32.mrf.mxu0
          %v3802 = vadd.f32 %v3764, %v3801
          %3803 = vmatmul.f32.gmra.mxu0 %v3737
          %v3804 = vpop.f32.mrf.mxu0
          %v3805 = vadd.f32 %v3764, %v3804
          %3806 = vmatmul.f32.gmra.mxu0 %v3738
          %v3807 = vpop.f32.mrf.mxu0
          %v3808 = vadd.f32 %v3764, %v3807
          %3809 = vmatmul.f32.gmra.mxu0 %v3739
          %v3810 = vpop.f32.mrf.mxu0
          %v3811 = vadd.f32 %v3764, %v3810
          %3812 = vmatmul.f32.gmra.mxu0 %v3740
          %v3813 = vpop.f32.mrf.mxu0
          %v3814 = vadd.f32 %v3764, %v3813
          %3815 = vmatmul.f32.gmra.mxu0 %v3741
          %v3816 = vpop.f32.mrf.mxu0
          %v3817 = vadd.f32 %v3764, %v3816
          %3818 = vmatmul.f32.gmra.mxu0 %v3742
          %v3819 = vpop.f32.mrf.mxu0
          %v3820 = vadd.f32 %v3764, %v3819
          %3821 = vmatmul.f32.gmra.mxu0 %v3743
          %v3822 = vpop.f32.mrf.mxu0
          %v3823 = vadd.f32 %v3764, %v3822
          %3824 = vmatmul.f32.gmra.mxu0 %v3744
          %v3825 = vpop.f32.mrf.mxu0
          %v3826 = vadd.f32 %v3764, %v3825
          %3827 = vmatmul.f32.gmra.mxu0 %v3745
          %v3828 = vpop.f32.mrf.mxu0
          %v3829 = vadd.f32 %v3764, %v3828
          %3830 = vdwg.mxu0
          %3831 = vst [vmem:[#allocation11] sm:$0xff] %v3784
          %3832 = vst [vmem:[#allocation11 + $0x8] sm:$0xff] %v3787
          %3833 = vst [vmem:[#allocation11 + $0x10] sm:$0xff] %v3790
          %3834 = vst [vmem:[#allocation11 + $0x18] sm:$0xff] %v3793
          %3835 = vst [vmem:[#allocation11 + $0x20] sm:$0xff] %v3796
          %3836 = vst [vmem:[#allocation11 + $0x28] sm:$0xff] %v3799
          %3837 = vst [vmem:[#allocation11 + $0x30] sm:$0xff] %v3802
          %3838 = vst [vmem:[#allocation11 + $0x38] sm:$0xff] %v3805
          %3839 = vst [vmem:[#allocation11 + $0x40] sm:$0xff] %v3808
          %3840 = vst [vmem:[#allocation11 + $0x48] sm:$0xff] %v3811
          %3841 = vst [vmem:[#allocation11 + $0x50] sm:$0xff] %v3814
          %3842 = vst [vmem:[#allocation11 + $0x58] sm:$0xff] %v3817
          %3843 = vst [vmem:[#allocation11 + $0x60] sm:$0xff] %v3820
          %3844 = vst [vmem:[#allocation11 + $0x68] sm:$0xff] %v3823
          %3845 = vst [vmem:[#allocation11 + $0x70] sm:$0xff] %v3826
          %3846 = vst [vmem:[#allocation11 + $0x78] sm:$0xff] %v3829
        $region140: #{tpu_custom_call.1} parent=111 // pred_fallthru
          _
        // Predicated region
        $region141: #{tpu_custom_call.1} parent=111 // pred_check
          %p3847 = pneg %p565
        $region142: #{tpu_custom_call.1} parent=111 // pred_check_branch
          %3849 = sbr.rel (%p3847) target = $region144
        $region143: #{tpu_custom_call.1} parent=111 // pred_region
          %3851 = vsyncadd [#allocation7], 0
          %s3852 = sshll.u32 [#allocation11], 4
          %s3853 = int_to_ptr.vmem [resolvable:$true] %s3852
          %s3854 = sshll.u32 %s23, 4
          %s3855 = int_to_ptr.hbm [resolvable:$true] %s3854
          %3860 = dma.vmem_to_hbm [thread:$0]  %s3853, 2048, %s3855, [#allocation7], 128, 128, 8
        $region144: #{tpu_custom_call.1} parent=111 // pred_fallthru
          _
        // Predicated region
        $region145: #{tpu_custom_call.1} parent=111 // pred_check
          %p3861 = pneg %p565
        $region146: #{tpu_custom_call.1} parent=111 // pred_check_branch
          %3863 = sbr.rel (%p3861) target = $region148
        $region147: #{tpu_custom_call.1} parent=111 // pred_region
          %3865 = dma.done [#allocation7], 2048
        $region148: #{tpu_custom_call.1} parent=111 // pred_fallthru
          _
      $region112: #{tpu_custom_call.1} parent=5 // pred_fallthru
        _
      %p3866 = scmp.le.s32.totalorder 2, %s32
      // Predicated region
      $region149: #{tpu_custom_call.1} parent=5 // pred_check
        %p3867 = pneg %p3866
      $region150: #{tpu_custom_call.1} parent=5 // pred_check_branch
        %3869 = sbr.rel (%p3867) target = $region152
      $region151: #{tpu_custom_call.1} parent=5 // pred_region
        %s3870 = ssub.s32 %s32, 2
      $region152: #{tpu_custom_call.1} parent=5 // pred_fallthru
        _
    $region6: #{tpu_custom_call.1} parent=1 // loop_footer
      %s36 = sadd.s32 1, %s32
    $region7: #{tpu_custom_call.1} parent=1 // loop_footer_branch
      %31 = sbr.rel target = $region3
    $region8: #{tpu_custom_call.1} parent=1 // loop_exit
      _
    %3871 = vsyncpa [#allocation6], 1
    %s3872 = scalar_lea.sflag [#allocation6], 1
    %3873 = vsyncpa %s3872, 1
    %3874 = vsyncpa [#allocation9], 1
    %3875 = vsyncpa [#allocation7], 1
    %s3876 = scalar_lea.sflag [#allocation7], 1
    %3877 = vsyncpa %s3876, 1

</llo_original>
